<compile_context>
chip_gen: v7x
topology: tpu7x:2x2x1
jax: 0.10.0
libtpu: 0.0.40
codegen_flags: <defaults>
</compile_context>

<pallas_src>
import math

import jax
import jax.numpy as jnp
import numpy as np
from jax.experimental import pallas as pl
from jax.experimental.pallas import tpu as pltpu

# ----------------------------- configuration --------------------------------
D_MODEL = 32            # d_model
NUM_HEAD = 4            # decoder_num_head
NUM_DECODER = 2         # num_decoder (small demo)
MLP_RATIO = 4.0         # decoder_mlp_ratio -> DFF = 128
NUM_CLASSES = 8         # num_classes (small)
NUM_QUERIES = 16        # num_queries (small)
BATCH = 2
MEM_LEN = 64            # encoder memory length N
DFF = int(D_MODEL * MLP_RATIO)
HEAD_DIM = D_MODEL // NUM_HEAD
ATTN_SCALE = 1.0 / math.sqrt(HEAD_DIM)
NEG_INF = -1e30
HEAD_PAD = 128          # lane-dense width of the prediction-head output slab


# ------------------------------- kernels -------------------------------------
def _decoder_kernel(qpos_ref, memk_ref, memv_ref, kbias_ref,
                    attn_w_ref, ffn_w1_ref, ffn_w2_ref, vec_ref, ffn_b1_ref,
                    out_ref):
    """One (batch, layer) grid step of the fused DETR decoder.

    Ref shapes (leading batch/layer dims squeezed away by BlockSpec `None`):
      qpos_ref   (Q, E)      learned query positions (shared across batch)
      memk_ref   (N, E)      memory + pos_embed  (cross-attn keys)
      memv_ref   (N, E)      memory              (cross-attn values)
      kbias_ref  (1, N)      additive key-padding bias (0 / -1e30)
      attn_w_ref (8, E, E)   [sa Wq,Wk,Wv,Wo, ca Wq,Wk,Wv,Wo], pre-transposed
      ffn_w1_ref (E, DFF), ffn_w2_ref (DFF, E), ffn_b1_ref (1, DFF)
      vec_ref    (16, E)     packed per-layer bias / LayerNorm vectors
      out_ref    (Q, E)      decoder state, resident across the layer axis
    """
    layer = pl.program_id(1)

    @pl.when(layer == 0)
    def _init():                                  # tgt = zeros_like(query_pos)
        out_ref[...] = jnp.zeros_like(out_ref)

    qpos = qpos_ref[...]
    tgt = out_ref[...]
    vec = vec_ref[...]                            # (16, E)

    def add_layernorm(x, y, g, b):                # LayerNorm(x + y), eps = 1e-5
        z = x + y
        mu = jnp.mean(z, axis=-1, keepdims=True)
        var = jnp.mean(jnp.square(z - mu), axis=-1, keepdims=True)
        return (z - mu) * jax.lax.rsqrt(var + 1e-5) * g + b

    def mha(q_in, k_in, v_in, base, key_bias):
        wq, wk, wv, wo = (attn_w_ref[base], attn_w_ref[base + 1],
                          attn_w_ref[base + 2], attn_w_ref[base + 3])
        bq, bk, bv, bo = (vec[base:base + 1], vec[base + 1:base + 2],
                          vec[base + 2:base + 3], vec[base + 3:base + 4])
        # Full-width projections: one (Lq,E)@(E,E) MXU matmul each
        # (no per-head K=8 projection matmuls, no per-head bias adds).
        qp = jnp.dot(q_in, wq, preferred_element_type=jnp.float32) + bq
        kp = jnp.dot(k_in, wk, preferred_element_type=jnp.float32) + bk
        vp = jnp.dot(v_in, wv, preferred_element_type=jnp.float32) + bv
        out = jnp.zeros((q_in.shape[0], D_MODEL), jnp.float32) + bo
        for h in range(NUM_HEAD):                 # per-head softmax is inherent
            lo, hi = h * HEAD_DIM, (h + 1) * HEAD_DIM
            s = jax.lax.dot_general(qp[:, lo:hi], kp[:, lo:hi],
                                    (((1,), (1,)), ((), ())),
                                    preferred_element_type=jnp.float32) * ATTN_SCALE
            if key_bias is not None:              # static flag: skipped for self-attn
                s = s + key_bias
            s = s - jnp.max(s, axis=-1, keepdims=True)
            p = jnp.exp(s)
            p = p * pl.reciprocal(jnp.sum(p, axis=-1, keepdims=True), approx=True)
            ctx = jnp.dot(p, vp[:, lo:hi], preferred_element_type=jnp.float32)
            # per-head row-slice of the single output projection
            # (sums to ctx_full @ Wo, no lane-concat needed)
            out = out + jnp.dot(ctx, wo[lo:hi, :], preferred_element_type=jnp.float32)
        return out

    # --- self attention (no key padding mask on queries) ---
    q1 = tgt + qpos
    sa = mha(q1, q1, tgt, 0, None)
    tgt = add_layernorm(tgt, sa, vec[9:10], vec[10:11])

    # --- cross attention over encoder memory (with key padding mask) ---
    q2 = tgt + qpos
    ca = mha(q2, memk_ref[...], memv_ref[...], 4, kbias_ref[...])
    tgt = add_layernorm(tgt, ca, vec[11:12], vec[12:13])

    # --- FFN: the (Q, DFF) intermediate never leaves VMEM/vregs ---
    h = jnp.dot(tgt, ffn_w1_ref[...], preferred_element_type=jnp.float32) + ffn_b1_ref[...]
    h = jnp.maximum(h, 0.0)
    h = jnp.dot(h, ffn_w2_ref[...], preferred_element_type=jnp.float32) + vec[8:9]
    tgt = add_layernorm(tgt, h, vec[13:14], vec[14:15])

    out_ref[...] = tgt


def _heads_kernel(x_ref, cw_ref, cb_ref, w1_ref, b1_ref, w2_ref, b2_ref,
                  w3_ref, b3_ref, o_ref):
    """Fused class linear + 3-layer bbox MLP + sigmoid.

    Class / final-bbox weights are pre-padded to HEAD_PAD columns so both
    matmuls and the single output store are lane-dense (no masked stores).
    Columns [0, C) hold logits, [C, C+4) hold sigmoid(bbox); the rest is 0.
    """
    x = x_ref[...]                                                     # (M, E)
    logits_slab = jnp.dot(x, cw_ref[...],
                          preferred_element_type=jnp.float32) + cb_ref[...]
    h = jnp.maximum(jnp.dot(x, w1_ref[...],
                            preferred_element_type=jnp.float32) + b1_ref[...], 0.0)
    h = jnp.maximum(jnp.dot(h, w2_ref[...],
                            preferred_element_type=jnp.float32) + b2_ref[...], 0.0)
    box_slab = jnp.dot(h, w3_ref[...],
                       preferred_element_type=jnp.float32) + b3_ref[...]
    box_slab = pl.reciprocal(1.0 + jnp.exp(-box_slab), approx=True)    # sigmoid
    col = jax.lax.broadcasted_iota(jnp.int32, logits_slab.shape, 1)
    is_box = jnp.logical_and(col >= NUM_CLASSES, col < NUM_CLASSES + 4)
    o_ref[...] = jnp.where(is_box, box_slab, logits_slab)


# --------------------------- parameter building ------------------------------
def xavier(key, shape):
    fan_out, fan_in = shape
    a = math.sqrt(6.0 / (fan_in + fan_out))
    return jax.random.uniform(key, shape, jnp.float32, -a, a)


def make_attn_params(key, E):
    k1, k2 = jax.random.split(key)
    return dict(
        w_in=xavier(k1, (3 * E, E)),
        b_in=jnp.zeros((3 * E,), jnp.float32),
        w_out=xavier(k2, (E, E)),
        b_out=jnp.zeros((E,), jnp.float32),
    )


def build_params(key):
    keys = iter(jax.random.split(key, 64))
    layers = []
    for _ in range(NUM_DECODER):
        layers.append(dict(
            self_attn=make_attn_params(next(keys), D_MODEL),
            cross_attn=make_attn_params(next(keys), D_MODEL),
            norm1_g=jnp.ones((D_MODEL,), jnp.float32),
            norm1_b=jnp.zeros((D_MODEL,), jnp.float32),
            norm2_g=jnp.ones((D_MODEL,), jnp.float32),
            norm2_b=jnp.zeros((D_MODEL,), jnp.float32),
            ffn_w1=xavier(next(keys), (DFF, D_MODEL)),
            ffn_b1=jnp.zeros((DFF,), jnp.float32),
            ffn_w2=xavier(next(keys), (D_MODEL, DFF)),
            ffn_b2=jnp.zeros((D_MODEL,), jnp.float32),
            norm3_g=jnp.ones((D_MODEL,), jnp.float32),
            norm3_b=jnp.zeros((D_MODEL,), jnp.float32),
        ))
    bias_value = -math.log((1.0 - 0.01) / 0.01)
    params = dict(
        layers=layers,
        query_embed=xavier(next(keys), (NUM_QUERIES, D_MODEL)),
        class_w=xavier(next(keys), (NUM_CLASSES, D_MODEL)),
        class_b=jnp.full((NUM_CLASSES,), bias_value, jnp.float32),
        bbox_w1=xavier(next(keys), (D_MODEL, D_MODEL)),
        bbox_b1=jnp.zeros((D_MODEL,), jnp.float32),
        bbox_w2=xavier(next(keys), (D_MODEL, D_MODEL)),
        bbox_b2=jnp.zeros((D_MODEL,), jnp.float32),
        bbox_w3=jnp.zeros((4, D_MODEL), jnp.float32),   # zero-init like module
        bbox_b3=jnp.zeros((4,), jnp.float32),
    )
    # NOTE: ref_point_head exists in the PyTorch module but is unused in forward().
    return params


def pack_params(params):
    """One-time packing / pre-transposition of weights into kernel layout."""
    E, C = D_MODEL, NUM_CLASSES
    attn_w, layer_vec, ffn_w1T, ffn_w2T, ffn_b1 = [], [], [], [], []
    for lp in params["layers"]:
        mats, vecs = [], []
        for attn in (lp["self_attn"], lp["cross_attn"]):
            wq, wk, wv = jnp.split(attn["w_in"], 3, axis=0)    # torch (out,in) layout
            mats += [wq.T, wk.T, wv.T, attn["w_out"].T]        # pre-transposed (in,out)
            vecs += list(jnp.split(attn["b_in"], 3)) + [attn["b_out"]]
        vecs += [lp["ffn_b2"],
                 lp["norm1_g"], lp["norm1_b"],
                 lp["norm2_g"], lp["norm2_b"],
                 lp["norm3_g"], lp["norm3_b"],
                 jnp.zeros((E,), jnp.float32)]                 # pad to 16 rows
        attn_w.append(jnp.stack(mats))                         # (8, E, E)
        layer_vec.append(jnp.stack(vecs))                      # (16, E)
        ffn_w1T.append(lp["ffn_w1"].T)                         # (E, DFF)
        ffn_w2T.append(lp["ffn_w2"].T)                         # (DFF, E)
        ffn_b1.append(lp["ffn_b1"].reshape(1, DFF))

    head_cls_wT = jnp.zeros((E, HEAD_PAD), jnp.float32).at[:, :C].set(params["class_w"].T)
    head_cls_b = jnp.zeros((1, HEAD_PAD), jnp.float32).at[0, :C].set(params["class_b"])
    head_box_wT = jnp.zeros((E, HEAD_PAD), jnp.float32).at[:, C:C + 4].set(params["bbox_w3"].T)
    head_box_b = jnp.zeros((1, HEAD_PAD), jnp.float32).at[0, C:C + 4].set(params["bbox_b3"])

    return dict(
        query_pos=params["query_embed"],
        attn_w=jnp.stack(attn_w),          # (L, 8, E, E)
        layer_vec=jnp.stack(layer_vec),    # (L, 16, E)
        ffn_w1T=jnp.stack(ffn_w1T),        # (L, E, DFF)
        ffn_w2T=jnp.stack(ffn_w2T),        # (L, DFF, E)
        ffn_b1=jnp.stack(ffn_b1),          # (L, 1, DFF)
        head_cls_wT=head_cls_wT, head_cls_b=head_cls_b,
        bbox_w1T=params["bbox_w1"].T, bbox_b1=params["bbox_b1"].reshape(1, E),
        bbox_w2T=params["bbox_w2"].T, bbox_b2=params["bbox_b2"].reshape(1, E),
        head_box_wT=head_box_wT, head_box_b=head_box_b,
    )


# ------------------------------ forward pass ---------------------------------
def detr_decoder_forward(src, src_mask, pos_embed, packed):
    """src, pos_embed: (B, N, E) f32; src_mask: (B, N) f32 (1.0 == padded key)."""
    B, N, E = src.shape
    Q = packed["query_pos"].shape[0]
    L = packed["attn_w"].shape[0]

    mem_k = src + pos_embed
    key_bias = jnp.where(src_mask.reshape(B, 1, N) > 0.5,
                         NEG_INF, 0.0).astype(jnp.float32)

    # ---- whole decoder stack in one pallas_call ----
    out = pl.pallas_call(
        _decoder_kernel,
        out_shape=jax.ShapeDtypeStruct((B, Q, E), jnp.float32),
        grid=(B, L),
        in_specs=[
            pl.BlockSpec((Q, E), lambda b, l: (0, 0)),               # query_pos
            pl.BlockSpec((None, N, E), lambda b, l: (b, 0, 0)),      # memory + pos
            pl.BlockSpec((None, N, E), lambda b, l: (b, 0, 0)),      # memory (values)
            pl.BlockSpec((None, 1, N), lambda b, l: (b, 0, 0)),      # key padding bias
            pl.BlockSpec((None, 8, E, E), lambda b, l: (l, 0, 0, 0)),
            pl.BlockSpec((None, E, DFF), lambda b, l: (l, 0, 0)),
            pl.BlockSpec((None, DFF, E), lambda b, l: (l, 0, 0)),
            pl.BlockSpec((None, 16, E), lambda b, l: (l, 0, 0)),
            pl.BlockSpec((None, 1, DFF), lambda b, l: (l, 0, 0)),
        ],
        out_specs=pl.BlockSpec((None, Q, E), lambda b, l: (b, 0, 0)),
        compiler_params=pltpu.CompilerParams(
            dimension_semantics=("parallel", "arbitrary")),
    )(packed["query_pos"], mem_k, src, key_bias,
      packed["attn_w"], packed["ffn_w1T"], packed["ffn_w2T"],
      packed["layer_vec"], packed["ffn_b1"])

    # ---- prediction heads (only the last layer's output is returned) ----
    flat = out.reshape(B * Q, E)
    slab = pl.pallas_call(
        _heads_kernel,
        out_shape=jax.ShapeDtypeStruct((B * Q, HEAD_PAD), jnp.float32),
    )(flat, packed["head_cls_wT"], packed["head_cls_b"],
      packed["bbox_w1T"], packed["bbox_b1"],
      packed["bbox_w2T"], packed["bbox_b2"],
      packed["head_box_wT"], packed["head_box_b"])

    pred_logits = slab[:, :NUM_CLASSES].reshape(B, Q, NUM_CLASSES)
    pred_boxes = slab[:, NUM_CLASSES:NUM_CLASSES + 4].reshape(B, Q, 4)
    return {"pred_logits": pred_logits, "pred_boxes": pred_boxes}


# ------------------------- pure-JAX reference (check) ------------------------
def _ref_mha(q, k, v, p, key_mask):
    B, Lq, E = q.shape
    Lk = k.shape[1]
    H, hd = NUM_HEAD, HEAD_DIM
    Wq, Wk, Wv = jnp.split(p["w_in"], 3, axis=0)
    bq, bk, bv = jnp.split(p["b_in"], 3)
    qh = (q @ Wq.T + bq).reshape(B, Lq, H, hd).transpose(0, 2, 1, 3)
    kh = (k @ Wk.T + bk).reshape(B, Lk, H, hd).transpose(0, 2, 1, 3)
    vh = (v @ Wv.T + bv).reshape(B, Lk, H, hd).transpose(0, 2, 1, 3)
    s = jnp.einsum("bhqd,bhkd->bhqk", qh, kh) / math.sqrt(hd)
    if key_mask is not None:
        s = s + jnp.where(key_mask.reshape(B, 1, 1, Lk) > 0.5, NEG_INF, 0.0)
    a = jax.nn.softmax(s, axis=-1)
    ctx = jnp.einsum("bhqk,bhkd->bhqd", a, vh).transpose(0, 2, 1, 3).reshape(B, Lq, E)
    return ctx @ p["w_out"].T + p["b_out"]


def _ref_ln(x, g, b):
    mu = x.mean(-1, keepdims=True)
    var = ((x - mu) ** 2).mean(-1, keepdims=True)
    return (x - mu) / jnp.sqrt(var + 1e-5) * g + b


def ref_forward(src, src_mask, pos_embed, params):
    B, N, E = src.shape
    Q = params["query_embed"].shape[0]
    query_pos = jnp.broadcast_to(params["query_embed"][None], (B, Q, E))
    out = jnp.zeros((B, Q, E), jnp.float32)
    for lp in params["layers"]:
        q1 = out + query_pos
        sa = _ref_mha(q1, q1, out, lp["self_attn"], None)
        out = _ref_ln(out + sa, lp["norm1_g"], lp["norm1_b"])
        q2 = out + query_pos
        ca = _ref_mha(q2, src + pos_embed, src, lp["cross_attn"], src_mask)
        out = _ref_ln(out + ca, lp["norm2_g"], lp["norm2_b"])
        h = jnp.maximum(out @ lp["ffn_w1"].T + lp["ffn_b1"], 0.0)
        h = h @ lp["ffn_w2"].T + lp["ffn_b2"]
        out = _ref_ln(out + h, lp["norm3_g"], lp["norm3_b"])
    logits = out @ params["class_w"].T + params["class_b"]
    bx = jnp.maximum(out @ params["bbox_w1"].T + params["bbox_b1"], 0.0)
    bx = jnp.maximum(bx @ params["bbox_w2"].T + params["bbox_b2"], 0.0)
    bx = jax.nn.sigmoid(bx @ params["bbox_w3"].T + params["bbox_b3"])
    return {"pred_logits": logits, "pred_boxes": bx}


# ---------------------------------- main --------------------------------------
if __name__ == "__main__":
    key = jax.random.PRNGKey(0)
    kp, k1, k2 = jax.random.split(key, 3)
    params = build_params(kp)
    packed = pack_params(params)     # one-time weight packing / pre-transpose

    src = jax.random.normal(k1, (BATCH, MEM_LEN, D_MODEL), jnp.float32)
    pos_embed = jax.random.normal(k2, (BATCH, MEM_LEN, D_MODEL), jnp.float32)
    # src_mask: 1.0 == padded key position (PyTorch key_padding_mask semantics)
    src_mask = jnp.zeros((BATCH, MEM_LEN), jnp.float32).at[1, MEM_LEN - 16:].set(1.0)

    fwd = jax.jit(detr_decoder_forward)
    out = jax.block_until_ready(fwd(src, src_mask, pos_embed, packed))

    ref = jax.block_until_ready(ref_forward(src, src_mask, pos_embed, params))
    # tolerance covers MXU default-precision matmul passes + approx EUP reciprocal
    np.testing.assert_allclose(np.asarray(out["pred_logits"]),
                               np.asarray(ref["pred_logits"]), rtol=2e-2, atol=2e-2)
    np.testing.assert_allclose(np.asarray(out["pred_boxes"]),
                               np.asarray(ref["pred_boxes"]), rtol=2e-2, atol=2e-2)

    assert out["pred_logits"].shape == (BATCH, NUM_QUERIES, NUM_CLASSES)
    assert out["pred_boxes"].shape == (BATCH, NUM_QUERIES, 4)
    print("KERNEL_OK")
</pallas_src>

<mosaic_0001>
module attributes {stable_mosaic.version = 11 : i64} {
  func.func @_heads_kernel(%arg0: memref<32x32xf32, #tpu.memory_space<vmem>>, %arg1: memref<32x128xf32, #tpu.memory_space<vmem>>, %arg2: memref<1x128xf32, #tpu.memory_space<vmem>>, %arg3: memref<32x32xf32, #tpu.memory_space<vmem>>, %arg4: memref<1x32xf32, #tpu.memory_space<vmem>>, %arg5: memref<32x32xf32, #tpu.memory_space<vmem>>, %arg6: memref<1x32xf32, #tpu.memory_space<vmem>>, %arg7: memref<32x128xf32, #tpu.memory_space<vmem>>, %arg8: memref<1x128xf32, #tpu.memory_space<vmem>>, %arg9: memref<32x128xf32, #tpu.memory_space<vmem>>) attributes {dimension_semantics = [], scalar_prefetch = 0 : i64, scratch_operands = 0 : i64, tpu.core_type = #tpu.core_type<tc>} {
    %c0 = arith.constant 0 : index
    %c0_0 = arith.constant 0 : index
    %0 = vector.load %arg0[%c0, %c0_0] : memref<32x32xf32, #tpu.memory_space<vmem>>, vector<32x32xf32>
    %c0_1 = arith.constant 0 : index
    %c0_2 = arith.constant 0 : index
    %1 = vector.load %arg1[%c0_1, %c0_2] : memref<32x128xf32, #tpu.memory_space<vmem>>, vector<32x128xf32>
    %cst = arith.constant dense<0.000000e+00> : vector<32x128xf32>
    %2 = tpu.matmul %0, %1, %cst {dimension_numbers = #tpu.dot_dimension_numbers<[1], [0], [0], [1], [0, 0, 1, 1], [], []>} : vector<32x32xf32>, vector<32x128xf32>, vector<32x128xf32> -> vector<32x128xf32>
    %c0_3 = arith.constant 0 : index
    %c0_4 = arith.constant 0 : index
    %3 = vector.load %arg2[%c0_3, %c0_4] : memref<1x128xf32, #tpu.memory_space<vmem>>, vector<1x128xf32>
    %4 = vector.broadcast %3 : vector<1x128xf32> to vector<32x128xf32>
    %5 = arith.addf %2, %4 : vector<32x128xf32>
    %c0_5 = arith.constant 0 : index
    %c0_6 = arith.constant 0 : index
    %6 = vector.load %arg3[%c0_5, %c0_6] : memref<32x32xf32, #tpu.memory_space<vmem>>, vector<32x32xf32>
    %cst_7 = arith.constant dense<0.000000e+00> : vector<32x32xf32>
    %7 = tpu.matmul %0, %6, %cst_7 {dimension_numbers = #tpu.dot_dimension_numbers<[1], [0], [0], [1], [0, 0, 1, 1], [], []>} : vector<32x32xf32>, vector<32x32xf32>, vector<32x32xf32> -> vector<32x32xf32>
    %c0_8 = arith.constant 0 : index
    %c0_9 = arith.constant 0 : index
    %8 = vector.load %arg4[%c0_8, %c0_9] : memref<1x32xf32, #tpu.memory_space<vmem>>, vector<1x32xf32>
    %9 = vector.broadcast %8 : vector<1x32xf32> to vector<32x32xf32>
    %10 = arith.addf %7, %9 : vector<32x32xf32>
    %cst_10 = arith.constant 0.000000e+00 : f32
    %11 = vector.broadcast %cst_10 : f32 to vector<32x32xf32>
    %12 = arith.maximumf %10, %11 : vector<32x32xf32>
    %c0_11 = arith.constant 0 : index
    %c0_12 = arith.constant 0 : index
    %13 = vector.load %arg5[%c0_11, %c0_12] : memref<32x32xf32, #tpu.memory_space<vmem>>, vector<32x32xf32>
    %cst_13 = arith.constant dense<0.000000e+00> : vector<32x32xf32>
    %14 = tpu.matmul %12, %13, %cst_13 {dimension_numbers = #tpu.dot_dimension_numbers<[1], [0], [0], [1], [0, 0, 1, 1], [], []>} : vector<32x32xf32>, vector<32x32xf32>, vector<32x32xf32> -> vector<32x32xf32>
    %c0_14 = arith.constant 0 : index
    %c0_15 = arith.constant 0 : index
    %15 = vector.load %arg6[%c0_14, %c0_15] : memref<1x32xf32, #tpu.memory_space<vmem>>, vector<1x32xf32>
    %16 = vector.broadcast %15 : vector<1x32xf32> to vector<32x32xf32>
    %17 = arith.addf %14, %16 : vector<32x32xf32>
    %cst_16 = arith.constant 0.000000e+00 : f32
    %18 = vector.broadcast %cst_16 : f32 to vector<32x32xf32>
    %19 = arith.maximumf %17, %18 : vector<32x32xf32>
    %c0_17 = arith.constant 0 : index
    %c0_18 = arith.constant 0 : index
    %20 = vector.load %arg7[%c0_17, %c0_18] : memref<32x128xf32, #tpu.memory_space<vmem>>, vector<32x128xf32>
    %cst_19 = arith.constant dense<0.000000e+00> : vector<32x128xf32>
    %21 = tpu.matmul %19, %20, %cst_19 {dimension_numbers = #tpu.dot_dimension_numbers<[1], [0], [0], [1], [0, 0, 1, 1], [], []>} : vector<32x32xf32>, vector<32x128xf32>, vector<32x128xf32> -> vector<32x128xf32>
    %c0_20 = arith.constant 0 : index
    %c0_21 = arith.constant 0 : index
    %22 = vector.load %arg8[%c0_20, %c0_21] : memref<1x128xf32, #tpu.memory_space<vmem>>, vector<1x128xf32>
    %23 = vector.broadcast %22 : vector<1x128xf32> to vector<32x128xf32>
    %24 = arith.addf %21, %23 : vector<32x128xf32>
    %cst_22 = arith.constant 0.000000e+00 : f32
    %25 = vector.broadcast %cst_22 : f32 to vector<32x128xf32>
    %26 = arith.subf %25, %24 : vector<32x128xf32>
    %27 = math.exp %26 : vector<32x128xf32>
    %cst_23 = arith.constant 1.000000e+00 : f32
    %28 = vector.broadcast %cst_23 : f32 to vector<32x128xf32>
    %29 = arith.addf %28, %27 : vector<32x128xf32>
    %30 = tpu.reciprocal %29 {approx = true} : vector<32x128xf32> -> vector<32x128xf32>
    %31 = tpu.iota {dimensions = array<i32: 1>} : vector<32x128xi32>
    %c8_i32 = arith.constant 8 : i32
    %32 = vector.broadcast %c8_i32 : i32 to vector<32x128xi32>
    %33 = arith.cmpi sge, %31, %32 : vector<32x128xi32>
    %c12_i32 = arith.constant 12 : i32
    %34 = vector.broadcast %c12_i32 : i32 to vector<32x128xi32>
    %35 = arith.cmpi slt, %31, %34 : vector<32x128xi32>
    %36 = arith.andi %33, %35 : vector<32x128xi1>
    %37 = arith.select %36, %30, %5 : vector<32x128xi1>, vector<32x128xf32>
    %c0_24 = arith.constant 0 : index
    %c0_25 = arith.constant 0 : index
    %38 = vector.load %arg9[%c0_24, %c0_25] : memref<32x128xf32, #tpu.memory_space<vmem>>, vector<32x128xf32>
    tpu.vector_store %arg9[%c0_24, %c0_25], %37 {strides = array<i32>} : memref<32x128xf32, #tpu.memory_space<vmem>>, vector<32x128xf32>,
    return
  }
}

module attributes {stable_mosaic.version = 11 : i64} {
  func.func @_decoder_kernel(%arg0: i32, %arg1: i32, %arg2: memref<16x32xf32, #tpu.memory_space<vmem>>, %arg3: memref<1x64x32xf32, #tpu.memory_space<vmem>>, %arg4: memref<1x64x32xf32, #tpu.memory_space<vmem>>, %arg5: memref<1x1x64xf32, #tpu.memory_space<vmem>>, %arg6: memref<1x8x32x32xf32, #tpu.memory_space<vmem>>, %arg7: memref<1x32x128xf32, #tpu.memory_space<vmem>>, %arg8: memref<1x128x32xf32, #tpu.memory_space<vmem>>, %arg9: memref<1x16x32xf32, #tpu.memory_space<vmem>>, %arg10: memref<1x1x128xf32, #tpu.memory_space<vmem>>, %arg11: memref<1x16x32xf32, #tpu.memory_space<vmem>>) attributes {dimension_semantics = [#tpu.dimension_semantics<parallel>, #tpu.dimension_semantics<arbitrary>], iteration_bounds = array<i64: 2, 2>, scalar_prefetch = 0 : i64, scratch_operands = 0 : i64, tpu.core_type = #tpu.core_type<tc>, window_params = [{pipeline_mode = #tpu.pipeline_mode<synchronous>, transform_indices = @transform_0, window_bounds = array<i64: 16, 32>}, {transform_indices = @transform_1, window_bounds = array<i64: 1, 64, 32>}, {transform_indices = @transform_2, window_bounds = array<i64: 1, 64, 32>}, {transform_indices = @transform_3, window_bounds = array<i64: 1, 1, 64>}, {transform_indices = @transform_4, window_bounds = array<i64: 1, 8, 32, 32>}, {transform_indices = @transform_5, window_bounds = array<i64: 1, 32, 128>}, {transform_indices = @transform_6, window_bounds = array<i64: 1, 128, 32>}, {transform_indices = @transform_7, window_bounds = array<i64: 1, 16, 32>}, {transform_indices = @transform_8, window_bounds = array<i64: 1, 1, 128>}, {transform_indices = @transform_9, window_bounds = array<i64: 1, 16, 32>}]} {
    %c0_i32 = arith.constant 0 : i32
    %0 = arith.cmpi eq, %arg1, %c0_i32 : i32
    %1 = arith.extui %0 : i1 to i32
    %c0_i32_0 = arith.constant 0 : i32
    %2 = arith.cmpi ne, %1, %c0_i32_0 : i32
    scf.if %2 {
      %cst_127 = arith.constant 0.000000e+00 : f32
      %325 = vector.broadcast %cst_127 : f32 to vector<16x32xf32>
      %c0_128 = arith.constant 0 : index
      %c0_129 = arith.constant 0 : index
      %c0_130 = arith.constant 0 : index
      %326 = vector.load %arg11[%c0_128, %c0_129, %c0_130] : memref<1x16x32xf32, #tpu.memory_space<vmem>>, vector<1x16x32xf32>
      %327 = vector.shape_cast %326 : vector<1x16x32xf32> to vector<16x32xf32>
      %328 = vector.shape_cast %325 : vector<16x32xf32> to vector<1x16x32xf32>
      tpu.vector_store %arg11[%c0_128, %c0_129, %c0_130], %328 {strides = array<i32>} : memref<1x16x32xf32, #tpu.memory_space<vmem>>, vector<1x16x32xf32>,
    } else {
    }
    %c0 = arith.constant 0 : index
    %c0_1 = arith.constant 0 : index
    %3 = vector.load %arg2[%c0, %c0_1] : memref<16x32xf32, #tpu.memory_space<vmem>>, vector<16x32xf32>
    %c0_2 = arith.constant 0 : index
    %c0_3 = arith.constant 0 : index
    %c0_4 = arith.constant 0 : index
    %4 = vector.load %arg11[%c0_2, %c0_3, %c0_4] : memref<1x16x32xf32, #tpu.memory_space<vmem>>, vector<1x16x32xf32>
    %5 = vector.shape_cast %4 : vector<1x16x32xf32> to vector<16x32xf32>
    %c0_5 = arith.constant 0 : index
    %c0_6 = arith.constant 0 : index
    %c0_7 = arith.constant 0 : index
    %6 = vector.load %arg9[%c0_5, %c0_6, %c0_7] : memref<1x16x32xf32, #tpu.memory_space<vmem>>, vector<1x16x32xf32>
    %7 = vector.shape_cast %6 : vector<1x16x32xf32> to vector<16x32xf32>
    %8 = arith.addf %5, %3 : vector<16x32xf32>
    %c0_8 = arith.constant 0 : index
    %c0_9 = arith.constant 0 : index
    %c0_10 = arith.constant 0 : index
    %c0_11 = arith.constant 0 : index
    %9 = vector.load %arg6[%c0_8, %c0_9, %c0_10, %c0_11] : memref<1x8x32x32xf32, #tpu.memory_space<vmem>>, vector<1x1x32x32xf32>
    %10 = vector.shape_cast %9 : vector<1x1x32x32xf32> to vector<32x32xf32>
    %c0_12 = arith.constant 0 : index
    %c1 = arith.constant 1 : index
    %c0_13 = arith.constant 0 : index
    %c0_14 = arith.constant 0 : index
    %11 = vector.load %arg6[%c0_12, %c1, %c0_13, %c0_14] : memref<1x8x32x32xf32, #tpu.memory_space<vmem>>, vector<1x1x32x32xf32>
    %12 = vector.shape_cast %11 : vector<1x1x32x32xf32> to vector<32x32xf32>
    %c0_15 = arith.constant 0 : index
    %c2 = arith.constant 2 : index
    %c0_16 = arith.constant 0 : index
    %c0_17 = arith.constant 0 : index
    %13 = vector.load %arg6[%c0_15, %c2, %c0_16, %c0_17] : memref<1x8x32x32xf32, #tpu.memory_space<vmem>>, vector<1x1x32x32xf32>
    %14 = vector.shape_cast %13 : vector<1x1x32x32xf32> to vector<32x32xf32>
    %c0_18 = arith.constant 0 : index
    %c3 = arith.constant 3 : index
    %c0_19 = arith.constant 0 : index
    %c0_20 = arith.constant 0 : index
    %15 = vector.load %arg6[%c0_18, %c3, %c0_19, %c0_20] : memref<1x8x32x32xf32, #tpu.memory_space<vmem>>, vector<1x1x32x32xf32>
    %16 = vector.shape_cast %15 : vector<1x1x32x32xf32> to vector<32x32xf32>
    %17 = vector.extract_strided_slice %7 {offsets = [0, 0], sizes = [1, 32], strides = [1, 1]} : vector<16x32xf32> to vector<1x32xf32>
    %18 = vector.extract_strided_slice %7 {offsets = [1, 0], sizes = [1, 32], strides = [1, 1]} : vector<16x32xf32> to vector<1x32xf32>
    %19 = vector.extract_strided_slice %7 {offsets = [2, 0], sizes = [1, 32], strides = [1, 1]} : vector<16x32xf32> to vector<1x32xf32>
    %20 = vector.extract_strided_slice %7 {offsets = [3, 0], sizes = [1, 32], strides = [1, 1]} : vector<16x32xf32> to vector<1x32xf32>
    %cst = arith.constant dense<0.000000e+00> : vector<16x32xf32>
    %21 = tpu.matmul %8, %10, %cst {dimension_numbers = #tpu.dot_dimension_numbers<[1], [0], [0], [1], [0, 0, 1, 1], [], []>} : vector<16x32xf32>, vector<32x32xf32>, vector<16x32xf32> -> vector<16x32xf32>
    %22 = vector.broadcast %17 : vector<1x32xf32> to vector<16x32xf32>
    %23 = arith.addf %21, %22 : vector<16x32xf32>
    %cst_21 = arith.constant dense<0.000000e+00> : vector<16x32xf32>
    %24 = tpu.matmul %8, %12, %cst_21 {dimension_numbers = #tpu.dot_dimension_numbers<[1], [0], [0], [1], [0, 0, 1, 1], [], []>} : vector<16x32xf32>, vector<32x32xf32>, vector<16x32xf32> -> vector<16x32xf32>
    %25 = vector.broadcast %18 : vector<1x32xf32> to vector<16x32xf32>
    %26 = arith.addf %24, %25 : vector<16x32xf32>
    %cst_22 = arith.constant dense<0.000000e+00> : vector<16x32xf32>
    %27 = tpu.matmul %5, %14, %cst_22 {dimension_numbers = #tpu.dot_dimension_numbers<[1], [0], [0], [1], [0, 0, 1, 1], [], []>} : vector<16x32xf32>, vector<32x32xf32>, vector<16x32xf32> -> vector<16x32xf32>
    %28 = vector.broadcast %19 : vector<1x32xf32> to vector<16x32xf32>
    %29 = arith.addf %27, %28 : vector<16x32xf32>
    %cst_23 = arith.constant 0.000000e+00 : f32
    %30 = vector.broadcast %cst_23 : f32 to vector<16x32xf32>
    %31 = vector.broadcast %20 : vector<1x32xf32> to vector<16x32xf32>
    %32 = arith.addf %30, %31 : vector<16x32xf32>
    %33 = vector.extract_strided_slice %23 {offsets = [0, 0], sizes = [16, 8], strides = [1, 1]} : vector<16x32xf32> to vector<16x8xf32>
    %34 = vector.extract_strided_slice %26 {offsets = [0, 0], sizes = [16, 8], strides = [1, 1]} : vector<16x32xf32> to vector<16x8xf32>
    %cst_24 = arith.constant dense<0.000000e+00> : vector<16x16xf32>
    %35 = tpu.matmul %33, %34, %cst_24 {dimension_numbers = #tpu.dot_dimension_numbers<[1], [1], [0], [0], [0, 0, 1, 0], [], []>} : vector<16x8xf32>, vector<16x8xf32>, vector<16x16xf32> -> vector<16x16xf32>
    %cst_25 = arith.constant 0.353553385 : f32
    %36 = vector.broadcast %cst_25 : f32 to vector<16x16xf32>
    %37 = arith.mulf %35, %36 : vector<16x16xf32>
    %cst_26 = arith.constant dense<0xFF800000> : vector<16xf32>
    %38 = vector.multi_reduction <maximumf>, %37, %cst_26 [1] : vector<16x16xf32> to vector<16xf32>
    %39 = vector.shape_cast %38 : vector<16xf32> to vector<16x1xf32>
    %40 = vector.broadcast %39 : vector<16x1xf32> to vector<16x16xf32>
    %41 = arith.subf %37, %40 : vector<16x16xf32>
    %42 = math.exp %41 : vector<16x16xf32>
    %cst_27 = arith.constant dense<0.000000e+00> : vector<16xf32>
    %43 = vector.multi_reduction <add>, %42, %cst_27 [1] : vector<16x16xf32> to vector<16xf32>
    %44 = vector.shape_cast %43 : vector<16xf32> to vector<16x1xf32>
    %45 = tpu.reciprocal %44 {approx = true} : vector<16x1xf32> -> vector<16x1xf32>
    %46 = vector.broadcast %45 : vector<16x1xf32> to vector<16x16xf32>
    %47 = arith.mulf %42, %46 : vector<16x16xf32>
    %48 = vector.extract_strided_slice %29 {offsets = [0, 0], sizes = [16, 8], strides = [1, 1]} : vector<16x32xf32> to vector<16x8xf32>
    %cst_28 = arith.constant dense<0.000000e+00> : vector<16x8xf32>
    %49 = tpu.matmul %47, %48, %cst_28 {dimension_numbers = #tpu.dot_dimension_numbers<[1], [0], [0], [1], [0, 0, 1, 1], [], []>} : vector<16x16xf32>, vector<16x8xf32>, vector<16x8xf32> -> vector<16x8xf32>
    %50 = vector.extract_strided_slice %16 {offsets = [0, 0], sizes = [8, 32], strides = [1, 1]} : vector<32x32xf32> to vector<8x32xf32>
    %cst_29 = arith.constant dense<0.000000e+00> : vector<16x32xf32>
    %51 = tpu.matmul %49, %50, %cst_29 {dimension_numbers = #tpu.dot_dimension_numbers<[1], [0], [0], [1], [0, 0, 1, 1], [], []>} : vector<16x8xf32>, vector<8x32xf32>, vector<16x32xf32> -> vector<16x32xf32>
    %52 = arith.addf %32, %51 : vector<16x32xf32>
    %53 = vector.extract_strided_slice %23 {offsets = [0, 8], sizes = [16, 8], strides = [1, 1]} : vector<16x32xf32> to vector<16x8xf32>
    %54 = vector.extract_strided_slice %26 {offsets = [0, 8], sizes = [16, 8], strides = [1, 1]} : vector<16x32xf32> to vector<16x8xf32>
    %cst_30 = arith.constant dense<0.000000e+00> : vector<16x16xf32>
    %55 = tpu.matmul %53, %54, %cst_30 {dimension_numbers = #tpu.dot_dimension_numbers<[1], [1], [0], [0], [0, 0, 1, 0], [], []>} : vector<16x8xf32>, vector<16x8xf32>, vector<16x16xf32> -> vector<16x16xf32>
    %cst_31 = arith.constant 0.353553385 : f32
    %56 = vector.broadcast %cst_31 : f32 to vector<16x16xf32>
    %57 = arith.mulf %55, %56 : vector<16x16xf32>
    %cst_32 = arith.constant dense<0xFF800000> : vector<16xf32>
    %58 = vector.multi_reduction <maximumf>, %57, %cst_32 [1] : vector<16x16xf32> to vector<16xf32>
    %59 = vector.shape_cast %58 : vector<16xf32> to vector<16x1xf32>
    %60 = vector.broadcast %59 : vector<16x1xf32> to vector<16x16xf32>
    %61 = arith.subf %57, %60 : vector<16x16xf32>
    %62 = math.exp %61 : vector<16x16xf32>
    %cst_33 = arith.constant dense<0.000000e+00> : vector<16xf32>
    %63 = vector.multi_reduction <add>, %62, %cst_33 [1] : vector<16x16xf32> to vector<16xf32>
    %64 = vector.shape_cast %63 : vector<16xf32> to vector<16x1xf32>
    %65 = tpu.reciprocal %64 {approx = true} : vector<16x1xf32> -> vector<16x1xf32>
    %66 = vector.broadcast %65 : vector<16x1xf32> to vector<16x16xf32>
    %67 = arith.mulf %62, %66 : vector<16x16xf32>
    %68 = vector.extract_strided_slice %29 {offsets = [0, 8], sizes = [16, 8], strides = [1, 1]} : vector<16x32xf32> to vector<16x8xf32>
    %cst_34 = arith.constant dense<0.000000e+00> : vector<16x8xf32>
    %69 = tpu.matmul %67, %68, %cst_34 {dimension_numbers = #tpu.dot_dimension_numbers<[1], [0], [0], [1], [0, 0, 1, 1], [], []>} : vector<16x16xf32>, vector<16x8xf32>, vector<16x8xf32> -> vector<16x8xf32>
    %70 = vector.extract_strided_slice %16 {offsets = [8, 0], sizes = [8, 32], strides = [1, 1]} : vector<32x32xf32> to vector<8x32xf32>
    %cst_35 = arith.constant dense<0.000000e+00> : vector<16x32xf32>
    %71 = tpu.matmul %69, %70, %cst_35 {dimension_numbers = #tpu.dot_dimension_numbers<[1], [0], [0], [1], [0, 0, 1, 1], [], []>} : vector<16x8xf32>, vector<8x32xf32>, vector<16x32xf32> -> vector<16x32xf32>
    %72 = arith.addf %52, %71 : vector<16x32xf32>
    %73 = vector.extract_strided_slice %23 {offsets = [0, 16], sizes = [16, 8], strides = [1, 1]} : vector<16x32xf32> to vector<16x8xf32>
    %74 = vector.extract_strided_slice %26 {offsets = [0, 16], sizes = [16, 8], strides = [1, 1]} : vector<16x32xf32> to vector<16x8xf32>
    %cst_36 = arith.constant dense<0.000000e+00> : vector<16x16xf32>
    %75 = tpu.matmul %73, %74, %cst_36 {dimension_numbers = #tpu.dot_dimension_numbers<[1], [1], [0], [0], [0, 0, 1, 0], [], []>} : vector<16x8xf32>, vector<16x8xf32>, vector<16x16xf32> -> vector<16x16xf32>
    %cst_37 = arith.constant 0.353553385 : f32
    %76 = vector.broadcast %cst_37 : f32 to vector<16x16xf32>
    %77 = arith.mulf %75, %76 : vector<16x16xf32>
    %cst_38 = arith.constant dense<0xFF800000> : vector<16xf32>
    %78 = vector.multi_reduction <maximumf>, %77, %cst_38 [1] : vector<16x16xf32> to vector<16xf32>
    %79 = vector.shape_cast %78 : vector<16xf32> to vector<16x1xf32>
    %80 = vector.broadcast %79 : vector<16x1xf32> to vector<16x16xf32>
    %81 = arith.subf %77, %80 : vector<16x16xf32>
    %82 = math.exp %81 : vector<16x16xf32>
    %cst_39 = arith.constant dense<0.000000e+00> : vector<16xf32>
    %83 = vector.multi_reduction <add>, %82, %cst_39 [1] : vector<16x16xf32> to vector<16xf32>
    %84 = vector.shape_cast %83 : vector<16xf32> to vector<16x1xf32>
    %85 = tpu.reciprocal %84 {approx = true} : vector<16x1xf32> -> vector<16x1xf32>
    %86 = vector.broadcast %85 : vector<16x1xf32> to vector<16x16xf32>
    %87 = arith.mulf %82, %86 : vector<16x16xf32>
    %88 = vector.extract_strided_slice %29 {offsets = [0, 16], sizes = [16, 8], strides = [1, 1]} : vector<16x32xf32> to vector<16x8xf32>
    %cst_40 = arith.constant dense<0.000000e+00> : vector<16x8xf32>
    %89 = tpu.matmul %87, %88, %cst_40 {dimension_numbers = #tpu.dot_dimension_numbers<[1], [0], [0], [1], [0, 0, 1, 1], [], []>} : vector<16x16xf32>, vector<16x8xf32>, vector<16x8xf32> -> vector<16x8xf32>
    %90 = vector.extract_strided_slice %16 {offsets = [16, 0], sizes = [8, 32], strides = [1, 1]} : vector<32x32xf32> to vector<8x32xf32>
    %cst_41 = arith.constant dense<0.000000e+00> : vector<16x32xf32>
    %91 = tpu.matmul %89, %90, %cst_41 {dimension_numbers = #tpu.dot_dimension_numbers<[1], [0], [0], [1], [0, 0, 1, 1], [], []>} : vector<16x8xf32>, vector<8x32xf32>, vector<16x32xf32> -> vector<16x32xf32>
    %92 = arith.addf %72, %91 : vector<16x32xf32>
    %93 = vector.extract_strided_slice %23 {offsets = [0, 24], sizes = [16, 8], strides = [1, 1]} : vector<16x32xf32> to vector<16x8xf32>
    %94 = vector.extract_strided_slice %26 {offsets = [0, 24], sizes = [16, 8], strides = [1, 1]} : vector<16x32xf32> to vector<16x8xf32>
    %cst_42 = arith.constant dense<0.000000e+00> : vector<16x16xf32>
    %95 = tpu.matmul %93, %94, %cst_42 {dimension_numbers = #tpu.dot_dimension_numbers<[1], [1], [0], [0], [0, 0, 1, 0], [], []>} : vector<16x8xf32>, vector<16x8xf32>, vector<16x16xf32> -> vector<16x16xf32>
    %cst_43 = arith.constant 0.353553385 : f32
    %96 = vector.broadcast %cst_43 : f32 to vector<16x16xf32>
    %97 = arith.mulf %95, %96 : vector<16x16xf32>
    %cst_44 = arith.constant dense<0xFF800000> : vector<16xf32>
    %98 = vector.multi_reduction <maximumf>, %97, %cst_44 [1] : vector<16x16xf32> to vector<16xf32>
    %99 = vector.shape_cast %98 : vector<16xf32> to vector<16x1xf32>
    %100 = vector.broadcast %99 : vector<16x1xf32> to vector<16x16xf32>
    %101 = arith.subf %97, %100 : vector<16x16xf32>
    %102 = math.exp %101 : vector<16x16xf32>
    %cst_45 = arith.constant dense<0.000000e+00> : vector<16xf32>
    %103 = vector.multi_reduction <add>, %102, %cst_45 [1] : vector<16x16xf32> to vector<16xf32>
    %104 = vector.shape_cast %103 : vector<16xf32> to vector<16x1xf32>
    %105 = tpu.reciprocal %104 {approx = true} : vector<16x1xf32> -> vector<16x1xf32>
    %106 = vector.broadcast %105 : vector<16x1xf32> to vector<16x16xf32>
    %107 = arith.mulf %102, %106 : vector<16x16xf32>
    %108 = vector.extract_strided_slice %29 {offsets = [0, 24], sizes = [16, 8], strides = [1, 1]} : vector<16x32xf32> to vector<16x8xf32>
    %cst_46 = arith.constant dense<0.000000e+00> : vector<16x8xf32>
    %109 = tpu.matmul %107, %108, %cst_46 {dimension_numbers = #tpu.dot_dimension_numbers<[1], [0], [0], [1], [0, 0, 1, 1], [], []>} : vector<16x16xf32>, vector<16x8xf32>, vector<16x8xf32> -> vector<16x8xf32>
    %110 = vector.extract_strided_slice %16 {offsets = [24, 0], sizes = [8, 32], strides = [1, 1]} : vector<32x32xf32> to vector<8x32xf32>
    %cst_47 = arith.constant dense<0.000000e+00> : vector<16x32xf32>
    %111 = tpu.matmul %109, %110, %cst_47 {dimension_numbers = #tpu.dot_dimension_numbers<[1], [0], [0], [1], [0, 0, 1, 1], [], []>} : vector<16x8xf32>, vector<8x32xf32>, vector<16x32xf32> -> vector<16x32xf32>
    %112 = arith.addf %92, %111 : vector<16x32xf32>
    %113 = vector.extract_strided_slice %7 {offsets = [9, 0], sizes = [1, 32], strides = [1, 1]} : vector<16x32xf32> to vector<1x32xf32>
    %114 = vector.extract_strided_slice %7 {offsets = [10, 0], sizes = [1, 32], strides = [1, 1]} : vector<16x32xf32> to vector<1x32xf32>
    %115 = arith.addf %5, %112 : vector<16x32xf32>
    %cst_48 = arith.constant dense<0.000000e+00> : vector<16xf32>
    %116 = vector.multi_reduction <add>, %115, %cst_48 [1] : vector<16x32xf32> to vector<16xf32>
    %117 = vector.shape_cast %116 : vector<16xf32> to vector<16x1xf32>
    %cst_49 = arith.constant 3.200000e+01 : f32
    %118 = vector.broadcast %cst_49 : f32 to vector<16x1xf32>
    %119 = arith.divf %117, %118 : vector<16x1xf32>
    %120 = vector.broadcast %119 : vector<16x1xf32> to vector<16x32xf32>
    %121 = arith.subf %115, %120 : vector<16x32xf32>
    %122 = arith.mulf %121, %121 : vector<16x32xf32>
    %cst_50 = arith.constant dense<0.000000e+00> : vector<16xf32>
    %123 = vector.multi_reduction <add>, %122, %cst_50 [1] : vector<16x32xf32> to vector<16xf32>
    %124 = vector.shape_cast %123 : vector<16xf32> to vector<16x1xf32>
    %cst_51 = arith.constant 3.200000e+01 : f32
    %125 = vector.broadcast %cst_51 : f32 to vector<16x1xf32>
    %126 = arith.divf %124, %125 : vector<16x1xf32>
    %127 = vector.broadcast %119 : vector<16x1xf32> to vector<16x32xf32>
    %128 = arith.subf %115, %127 : vector<16x32xf32>
    %cst_52 = arith.constant 9.99999974E-6 : f32
    %129 = vector.broadcast %cst_52 : f32 to vector<16x1xf32>
    %130 = arith.addf %126, %129 : vector<16x1xf32>
    %131 = math.rsqrt %130 : vector<16x1xf32>
    %132 = vector.broadcast %131 : vector<16x1xf32> to vector<16x32xf32>
    %133 = arith.mulf %128, %132 : vector<16x32xf32>
    %134 = vector.broadcast %113 : vector<1x32xf32> to vector<16x32xf32>
    %135 = arith.mulf %133, %134 : vector<16x32xf32>
    %136 = vector.broadcast %114 : vector<1x32xf32> to vector<16x32xf32>
    %137 = arith.addf %135, %136 : vector<16x32xf32>
    %138 = arith.addf %137, %3 : vector<16x32xf32>
    %c0_53 = arith.constant 0 : index
    %c0_54 = arith.constant 0 : index
    %c0_55 = arith.constant 0 : index
    %139 = vector.load %arg3[%c0_53, %c0_54, %c0_55] : memref<1x64x32xf32, #tpu.memory_space<vmem>>, vector<1x64x32xf32>
    %140 = vector.shape_cast %139 : vector<1x64x32xf32> to vector<64x32xf32>
    %c0_56 = arith.constant 0 : index
    %c0_57 = arith.constant 0 : index
    %c0_58 = arith.constant 0 : index
    %141 = vector.load %arg4[%c0_56, %c0_57, %c0_58] : memref<1x64x32xf32, #tpu.memory_space<vmem>>, vector<1x64x32xf32>
    %142 = vector.shape_cast %141 : vector<1x64x32xf32> to vector<64x32xf32>
    %c0_59 = arith.constant 0 : index
    %c0_60 = arith.constant 0 : index
    %c0_61 = arith.constant 0 : index
    %143 = vector.load %arg5[%c0_59, %c0_60, %c0_61] : memref<1x1x64xf32, #tpu.memory_space<vmem>>, vector<1x1x64xf32>
    %144 = vector.shape_cast %143 : vector<1x1x64xf32> to vector<1x64xf32>
    %c0_62 = arith.constant 0 : index
    %c4 = arith.constant 4 : index
    %c0_63 = arith.constant 0 : index
    %c0_64 = arith.constant 0 : index
    %145 = vector.load %arg6[%c0_62, %c4, %c0_63, %c0_64] : memref<1x8x32x32xf32, #tpu.memory_space<vmem>>, vector<1x1x32x32xf32>
    %146 = vector.shape_cast %145 : vector<1x1x32x32xf32> to vector<32x32xf32>
    %c0_65 = arith.constant 0 : index
    %c5 = arith.constant 5 : index
    %c0_66 = arith.constant 0 : index
    %c0_67 = arith.constant 0 : index
    %147 = vector.load %arg6[%c0_65, %c5, %c0_66, %c0_67] : memref<1x8x32x32xf32, #tpu.memory_space<vmem>>, vector<1x1x32x32xf32>
    %148 = vector.shape_cast %147 : vector<1x1x32x32xf32> to vector<32x32xf32>
    %c0_68 = arith.constant 0 : index
    %c6 = arith.constant 6 : index
    %c0_69 = arith.constant 0 : index
    %c0_70 = arith.constant 0 : index
    %149 = vector.load %arg6[%c0_68, %c6, %c0_69, %c0_70] : memref<1x8x32x32xf32, #tpu.memory_space<vmem>>, vector<1x1x32x32xf32>
    %150 = vector.shape_cast %149 : vector<1x1x32x32xf32> to vector<32x32xf32>
    %c0_71 = arith.constant 0 : index
    %c7 = arith.constant 7 : index
    %c0_72 = arith.constant 0 : index
    %c0_73 = arith.constant 0 : index
    %151 = vector.load %arg6[%c0_71, %c7, %c0_72, %c0_73] : memref<1x8x32x32xf32, #tpu.memory_space<vmem>>, vector<1x1x32x32xf32>
    %152 = vector.shape_cast %151 : vector<1x1x32x32xf32> to vector<32x32xf32>
    %153 = vector.extract_strided_slice %7 {offsets = [4, 0], sizes = [1, 32], strides = [1, 1]} : vector<16x32xf32> to vector<1x32xf32>
    %154 = vector.extract_strided_slice %7 {offsets = [5, 0], sizes = [1, 32], strides = [1, 1]} : vector<16x32xf32> to vector<1x32xf32>
    %155 = vector.extract_strided_slice %7 {offsets = [6, 0], sizes = [1, 32], strides = [1, 1]} : vector<16x32xf32> to vector<1x32xf32>
    %156 = vector.extract_strided_slice %7 {offsets = [7, 0], sizes = [1, 32], strides = [1, 1]} : vector<16x32xf32> to vector<1x32xf32>
    %cst_74 = arith.constant dense<0.000000e+00> : vector<16x32xf32>
    %157 = tpu.matmul %138, %146, %cst_74 {dimension_numbers = #tpu.dot_dimension_numbers<[1], [0], [0], [1], [0, 0, 1, 1], [], []>} : vector<16x32xf32>, vector<32x32xf32>, vector<16x32xf32> -> vector<16x32xf32>
    %158 = vector.broadcast %153 : vector<1x32xf32> to vector<16x32xf32>
    %159 = arith.addf %157, %158 : vector<16x32xf32>
    %cst_75 = arith.constant dense<0.000000e+00> : vector<64x32xf32>
    %160 = tpu.matmul %140, %148, %cst_75 {dimension_numbers = #tpu.dot_dimension_numbers<[1], [0], [0], [1], [0, 0, 1, 1], [], []>} : vector<64x32xf32>, vector<32x32xf32>, vector<64x32xf32> -> vector<64x32xf32>
    %161 = vector.broadcast %154 : vector<1x32xf32> to vector<64x32xf32>
    %162 = arith.addf %160, %161 : vector<64x32xf32>
    %cst_76 = arith.constant dense<0.000000e+00> : vector<64x32xf32>
    %163 = tpu.matmul %142, %150, %cst_76 {dimension_numbers = #tpu.dot_dimension_numbers<[1], [0], [0], [1], [0, 0, 1, 1], [], []>} : vector<64x32xf32>, vector<32x32xf32>, vector<64x32xf32> -> vector<64x32xf32>
    %164 = vector.broadcast %155 : vector<1x32xf32> to vector<64x32xf32>
    %165 = arith.addf %163, %164 : vector<64x32xf32>
    %cst_77 = arith.constant 0.000000e+00 : f32
    %166 = vector.broadcast %cst_77 : f32 to vector<16x32xf32>
    %167 = vector.broadcast %156 : vector<1x32xf32> to vector<16x32xf32>
    %168 = arith.addf %166, %167 : vector<16x32xf32>
    %169 = vector.extract_strided_slice %159 {offsets = [0, 0], sizes = [16, 8], strides = [1, 1]} : vector<16x32xf32> to vector<16x8xf32>
    %170 = vector.extract_strided_slice %162 {offsets = [0, 0], sizes = [64, 8], strides = [1, 1]} : vector<64x32xf32> to vector<64x8xf32>
    %cst_78 = arith.constant dense<0.000000e+00> : vector<16x64xf32>
    %171 = tpu.matmul %169, %170, %cst_78 {dimension_numbers = #tpu.dot_dimension_numbers<[1], [1], [0], [0], [0, 0, 1, 0], [], []>} : vector<16x8xf32>, vector<64x8xf32>, vector<16x64xf32> -> vector<16x64xf32>
    %cst_79 = arith.constant 0.353553385 : f32
    %172 = vector.broadcast %cst_79 : f32 to vector<16x64xf32>
    %173 = arith.mulf %171, %172 : vector<16x64xf32>
    %174 = vector.broadcast %144 : vector<1x64xf32> to vector<16x64xf32>
    %175 = arith.addf %173, %174 : vector<16x64xf32>
    %cst_80 = arith.constant dense<0xFF800000> : vector<16xf32>
    %176 = vector.multi_reduction <maximumf>, %175, %cst_80 [1] : vector<16x64xf32> to vector<16xf32>
    %177 = vector.shape_cast %176 : vector<16xf32> to vector<16x1xf32>
    %178 = vector.broadcast %177 : vector<16x1xf32> to vector<16x64xf32>
    %179 = arith.subf %175, %178 : vector<16x64xf32>
    %180 = math.exp %179 : vector<16x64xf32>
    %cst_81 = arith.constant dense<0.000000e+00> : vector<16xf32>
    %181 = vector.multi_reduction <add>, %180, %cst_81 [1] : vector<16x64xf32> to vector<16xf32>
    %182 = vector.shape_cast %181 : vector<16xf32> to vector<16x1xf32>
    %183 = tpu.reciprocal %182 {approx = true} : vector<16x1xf32> -> vector<16x1xf32>
    %184 = vector.broadcast %183 : vector<16x1xf32> to vector<16x64xf32>
    %185 = arith.mulf %180, %184 : vector<16x64xf32>
    %186 = vector.extract_strided_slice %165 {offsets = [0, 0], sizes = [64, 8], strides = [1, 1]} : vector<64x32xf32> to vector<64x8xf32>
    %cst_82 = arith.constant dense<0.000000e+00> : vector<16x8xf32>
    %187 = tpu.matmul %185, %186, %cst_82 {dimension_numbers = #tpu.dot_dimension_numbers<[1], [0], [0], [1], [0, 0, 1, 1], [], []>} : vector<16x64xf32>, vector<64x8xf32>, vector<16x8xf32> -> vector<16x8xf32>
    %188 = vector.extract_strided_slice %152 {offsets = [0, 0], sizes = [8, 32], strides = [1, 1]} : vector<32x32xf32> to vector<8x32xf32>
    %cst_83 = arith.constant dense<0.000000e+00> : vector<16x32xf32>
    %189 = tpu.matmul %187, %188, %cst_83 {dimension_numbers = #tpu.dot_dimension_numbers<[1], [0], [0], [1], [0, 0, 1, 1], [], []>} : vector<16x8xf32>, vector<8x32xf32>, vector<16x32xf32> -> vector<16x32xf32>
    %190 = arith.addf %168, %189 : vector<16x32xf32>
    %191 = vector.extract_strided_slice %159 {offsets = [0, 8], sizes = [16, 8], strides = [1, 1]} : vector<16x32xf32> to vector<16x8xf32>
    %192 = vector.extract_strided_slice %162 {offsets = [0, 8], sizes = [64, 8], strides = [1, 1]} : vector<64x32xf32> to vector<64x8xf32>
    %cst_84 = arith.constant dense<0.000000e+00> : vector<16x64xf32>
    %193 = tpu.matmul %191, %192, %cst_84 {dimension_numbers = #tpu.dot_dimension_numbers<[1], [1], [0], [0], [0, 0, 1, 0], [], []>} : vector<16x8xf32>, vector<64x8xf32>, vector<16x64xf32> -> vector<16x64xf32>
    %cst_85 = arith.constant 0.353553385 : f32
    %194 = vector.broadcast %cst_85 : f32 to vector<16x64xf32>
    %195 = arith.mulf %193, %194 : vector<16x64xf32>
    %196 = vector.broadcast %144 : vector<1x64xf32> to vector<16x64xf32>
    %197 = arith.addf %195, %196 : vector<16x64xf32>
    %cst_86 = arith.constant dense<0xFF800000> : vector<16xf32>
    %198 = vector.multi_reduction <maximumf>, %197, %cst_86 [1] : vector<16x64xf32> to vector<16xf32>
    %199 = vector.shape_cast %198 : vector<16xf32> to vector<16x1xf32>
    %200 = vector.broadcast %199 : vector<16x1xf32> to vector<16x64xf32>
    %201 = arith.subf %197, %200 : vector<16x64xf32>
    %202 = math.exp %201 : vector<16x64xf32>
    %cst_87 = arith.constant dense<0.000000e+00> : vector<16xf32>
    %203 = vector.multi_reduction <add>, %202, %cst_87 [1] : vector<16x64xf32> to vector<16xf32>
    %204 = vector.shape_cast %203 : vector<16xf32> to vector<16x1xf32>
    %205 = tpu.reciprocal %204 {approx = true} : vector<16x1xf32> -> vector<16x1xf32>
    %206 = vector.broadcast %205 : vector<16x1xf32> to vector<16x64xf32>
    %207 = arith.mulf %202, %206 : vector<16x64xf32>
    %208 = vector.extract_strided_slice %165 {offsets = [0, 8], sizes = [64, 8], strides = [1, 1]} : vector<64x32xf32> to vector<64x8xf32>
    %cst_88 = arith.constant dense<0.000000e+00> : vector<16x8xf32>
    %209 = tpu.matmul %207, %208, %cst_88 {dimension_numbers = #tpu.dot_dimension_numbers<[1], [0], [0], [1], [0, 0, 1, 1], [], []>} : vector<16x64xf32>, vector<64x8xf32>, vector<16x8xf32> -> vector<16x8xf32>
    %210 = vector.extract_strided_slice %152 {offsets = [8, 0], sizes = [8, 32], strides = [1, 1]} : vector<32x32xf32> to vector<8x32xf32>
    %cst_89 = arith.constant dense<0.000000e+00> : vector<16x32xf32>
    %211 = tpu.matmul %209, %210, %cst_89 {dimension_numbers = #tpu.dot_dimension_numbers<[1], [0], [0], [1], [0, 0, 1, 1], [], []>} : vector<16x8xf32>, vector<8x32xf32>, vector<16x32xf32> -> vector<16x32xf32>
    %212 = arith.addf %190, %211 : vector<16x32xf32>
    %213 = vector.extract_strided_slice %159 {offsets = [0, 16], sizes = [16, 8], strides = [1, 1]} : vector<16x32xf32> to vector<16x8xf32>
    %214 = vector.extract_strided_slice %162 {offsets = [0, 16], sizes = [64, 8], strides = [1, 1]} : vector<64x32xf32> to vector<64x8xf32>
    %cst_90 = arith.constant dense<0.000000e+00> : vector<16x64xf32>
    %215 = tpu.matmul %213, %214, %cst_90 {dimension_numbers = #tpu.dot_dimension_numbers<[1], [1], [0], [0], [0, 0, 1, 0], [], []>} : vector<16x8xf32>, vector<64x8xf32>, vector<16x64xf32> -> vector<16x64xf32>
    %cst_91 = arith.constant 0.353553385 : f32
    %216 = vector.broadcast %cst_91 : f32 to vector<16x64xf32>
    %217 = arith.mulf %215, %216 : vector<16x64xf32>
    %218 = vector.broadcast %144 : vector<1x64xf32> to vector<16x64xf32>
    %219 = arith.addf %217, %218 : vector<16x64xf32>
    %cst_92 = arith.constant dense<0xFF800000> : vector<16xf32>
    %220 = vector.multi_reduction <maximumf>, %219, %cst_92 [1] : vector<16x64xf32> to vector<16xf32>
    %221 = vector.shape_cast %220 : vector<16xf32> to vector<16x1xf32>
    %222 = vector.broadcast %221 : vector<16x1xf32> to vector<16x64xf32>
    %223 = arith.subf %219, %222 : vector<16x64xf32>
    %224 = math.exp %223 : vector<16x64xf32>
    %cst_93 = arith.constant dense<0.000000e+00> : vector<16xf32>
    %225 = vector.multi_reduction <add>, %224, %cst_93 [1] : vector<16x64xf32> to vector<16xf32>
    %226 = vector.shape_cast %225 : vector<16xf32> to vector<16x1xf32>
    %227 = tpu.reciprocal %226 {approx = true} : vector<16x1xf32> -> vector<16x1xf32>
    %228 = vector.broadcast %227 : vector<16x1xf32> to vector<16x64xf32>
    %229 = arith.mulf %224, %228 : vector<16x64xf32>
    %230 = vector.extract_strided_slice %165 {offsets = [0, 16], sizes = [64, 8], strides = [1, 1]} : vector<64x32xf32> to vector<64x8xf32>
    %cst_94 = arith.constant dense<0.000000e+00> : vector<16x8xf32>
    %231 = tpu.matmul %229, %230, %cst_94 {dimension_numbers = #tpu.dot_dimension_numbers<[1], [0], [0], [1], [0, 0, 1, 1], [], []>} : vector<16x64xf32>, vector<64x8xf32>, vector<16x8xf32> -> vector<16x8xf32>
    %232 = vector.extract_strided_slice %152 {offsets = [16, 0], sizes = [8, 32], strides = [1, 1]} : vector<32x32xf32> to vector<8x32xf32>
    %cst_95 = arith.constant dense<0.000000e+00> : vector<16x32xf32>
    %233 = tpu.matmul %231, %232, %cst_95 {dimension_numbers = #tpu.dot_dimension_numbers<[1], [0], [0], [1], [0, 0, 1, 1], [], []>} : vector<16x8xf32>, vector<8x32xf32>, vector<16x32xf32> -> vector<16x32xf32>
    %234 = arith.addf %212, %233 : vector<16x32xf32>
    %235 = vector.extract_strided_slice %159 {offsets = [0, 24], sizes = [16, 8], strides = [1, 1]} : vector<16x32xf32> to vector<16x8xf32>
    %236 = vector.extract_strided_slice %162 {offsets = [0, 24], sizes = [64, 8], strides = [1, 1]} : vector<64x32xf32> to vector<64x8xf32>
    %cst_96 = arith.constant dense<0.000000e+00> : vector<16x64xf32>
    %237 = tpu.matmul %235, %236, %cst_96 {dimension_numbers = #tpu.dot_dimension_numbers<[1], [1], [0], [0], [0, 0, 1, 0], [], []>} : vector<16x8xf32>, vector<64x8xf32>, vector<16x64xf32> -> vector<16x64xf32>
    %cst_97 = arith.constant 0.353553385 : f32
    %238 = vector.broadcast %cst_97 : f32 to vector<16x64xf32>
    %239 = arith.mulf %237, %238 : vector<16x64xf32>
    %240 = vector.broadcast %144 : vector<1x64xf32> to vector<16x64xf32>
    %241 = arith.addf %239, %240 : vector<16x64xf32>
    %cst_98 = arith.constant dense<0xFF800000> : vector<16xf32>
    %242 = vector.multi_reduction <maximumf>, %241, %cst_98 [1] : vector<16x64xf32> to vector<16xf32>
    %243 = vector.shape_cast %242 : vector<16xf32> to vector<16x1xf32>
    %244 = vector.broadcast %243 : vector<16x1xf32> to vector<16x64xf32>
    %245 = arith.subf %241, %244 : vector<16x64xf32>
    %246 = math.exp %245 : vector<16x64xf32>
    %cst_99 = arith.constant dense<0.000000e+00> : vector<16xf32>
    %247 = vector.multi_reduction <add>, %246, %cst_99 [1] : vector<16x64xf32> to vector<16xf32>
    %248 = vector.shape_cast %247 : vector<16xf32> to vector<16x1xf32>
    %249 = tpu.reciprocal %248 {approx = true} : vector<16x1xf32> -> vector<16x1xf32>
    %250 = vector.broadcast %249 : vector<16x1xf32> to vector<16x64xf32>
    %251 = arith.mulf %246, %250 : vector<16x64xf32>
    %252 = vector.extract_strided_slice %165 {offsets = [0, 24], sizes = [64, 8], strides = [1, 1]} : vector<64x32xf32> to vector<64x8xf32>
    %cst_100 = arith.constant dense<0.000000e+00> : vector<16x8xf32>
    %253 = tpu.matmul %251, %252, %cst_100 {dimension_numbers = #tpu.dot_dimension_numbers<[1], [0], [0], [1], [0, 0, 1, 1], [], []>} : vector<16x64xf32>, vector<64x8xf32>, vector<16x8xf32> -> vector<16x8xf32>
    %254 = vector.extract_strided_slice %152 {offsets = [24, 0], sizes = [8, 32], strides = [1, 1]} : vector<32x32xf32> to vector<8x32xf32>
    %cst_101 = arith.constant dense<0.000000e+00> : vector<16x32xf32>
    %255 = tpu.matmul %253, %254, %cst_101 {dimension_numbers = #tpu.dot_dimension_numbers<[1], [0], [0], [1], [0, 0, 1, 1], [], []>} : vector<16x8xf32>, vector<8x32xf32>, vector<16x32xf32> -> vector<16x32xf32>
    %256 = arith.addf %234, %255 : vector<16x32xf32>
    %257 = vector.extract_strided_slice %7 {offsets = [11, 0], sizes = [1, 32], strides = [1, 1]} : vector<16x32xf32> to vector<1x32xf32>
    %258 = vector.extract_strided_slice %7 {offsets = [12, 0], sizes = [1, 32], strides = [1, 1]} : vector<16x32xf32> to vector<1x32xf32>
    %259 = arith.addf %137, %256 : vector<16x32xf32>
    %cst_102 = arith.constant dense<0.000000e+00> : vector<16xf32>
    %260 = vector.multi_reduction <add>, %259, %cst_102 [1] : vector<16x32xf32> to vector<16xf32>
    %261 = vector.shape_cast %260 : vector<16xf32> to vector<16x1xf32>
    %cst_103 = arith.constant 3.200000e+01 : f32
    %262 = vector.broadcast %cst_103 : f32 to vector<16x1xf32>
    %263 = arith.divf %261, %262 : vector<16x1xf32>
    %264 = vector.broadcast %263 : vector<16x1xf32> to vector<16x32xf32>
    %265 = arith.subf %259, %264 : vector<16x32xf32>
    %266 = arith.mulf %265, %265 : vector<16x32xf32>
    %cst_104 = arith.constant dense<0.000000e+00> : vector<16xf32>
    %267 = vector.multi_reduction <add>, %266, %cst_104 [1] : vector<16x32xf32> to vector<16xf32>
    %268 = vector.shape_cast %267 : vector<16xf32> to vector<16x1xf32>
    %cst_105 = arith.constant 3.200000e+01 : f32
    %269 = vector.broadcast %cst_105 : f32 to vector<16x1xf32>
    %270 = arith.divf %268, %269 : vector<16x1xf32>
    %271 = vector.broadcast %263 : vector<16x1xf32> to vector<16x32xf32>
    %272 = arith.subf %259, %271 : vector<16x32xf32>
    %cst_106 = arith.constant 9.99999974E-6 : f32
    %273 = vector.broadcast %cst_106 : f32 to vector<16x1xf32>
    %274 = arith.addf %270, %273 : vector<16x1xf32>
    %275 = math.rsqrt %274 : vector<16x1xf32>
    %276 = vector.broadcast %275 : vector<16x1xf32> to vector<16x32xf32>
    %277 = arith.mulf %272, %276 : vector<16x32xf32>
    %278 = vector.broadcast %257 : vector<1x32xf32> to vector<16x32xf32>
    %279 = arith.mulf %277, %278 : vector<16x32xf32>
    %280 = vector.broadcast %258 : vector<1x32xf32> to vector<16x32xf32>
    %281 = arith.addf %279, %280 : vector<16x32xf32>
    %c0_107 = arith.constant 0 : index
    %c0_108 = arith.constant 0 : index
    %c0_109 = arith.constant 0 : index
    %282 = vector.load %arg7[%c0_107, %c0_108, %c0_109] : memref<1x32x128xf32, #tpu.memory_space<vmem>>, vector<1x32x128xf32>
    %283 = vector.shape_cast %282 : vector<1x32x128xf32> to vector<32x128xf32>
    %cst_110 = arith.constant dense<0.000000e+00> : vector<16x128xf32>
    %284 = tpu.matmul %281, %283, %cst_110 {dimension_numbers = #tpu.dot_dimension_numbers<[1], [0], [0], [1], [0, 0, 1, 1], [], []>} : vector<16x32xf32>, vector<32x128xf32>, vector<16x128xf32> -> vector<16x128xf32>
    %c0_111 = arith.constant 0 : index
    %c0_112 = arith.constant 0 : index
    %c0_113 = arith.constant 0 : index
    %285 = vector.load %arg10[%c0_111, %c0_112, %c0_113] : memref<1x1x128xf32, #tpu.memory_space<vmem>>, vector<1x1x128xf32>
    %286 = vector.shape_cast %285 : vector<1x1x128xf32> to vector<1x128xf32>
    %287 = vector.broadcast %286 : vector<1x128xf32> to vector<16x128xf32>
    %288 = arith.addf %284, %287 : vector<16x128xf32>
    %cst_114 = arith.constant 0.000000e+00 : f32
    %289 = vector.broadcast %cst_114 : f32 to vector<16x128xf32>
    %290 = arith.maximumf %288, %289 : vector<16x128xf32>
    %c0_115 = arith.constant 0 : index
    %c0_116 = arith.constant 0 : index
    %c0_117 = arith.constant 0 : index
    %291 = vector.load %arg8[%c0_115, %c0_116, %c0_117] : memref<1x128x32xf32, #tpu.memory_space<vmem>>, vector<1x128x32xf32>
    %292 = vector.shape_cast %291 : vector<1x128x32xf32> to vector<128x32xf32>
    %cst_118 = arith.constant dense<0.000000e+00> : vector<16x32xf32>
    %293 = tpu.matmul %290, %292, %cst_118 {dimension_numbers = #tpu.dot_dimension_numbers<[1], [0], [0], [1], [0, 0, 1, 1], [], []>} : vector<16x128xf32>, vector<128x32xf32>, vector<16x32xf32> -> vector<16x32xf32>
    %294 = vector.extract_strided_slice %7 {offsets = [8, 0], sizes = [1, 32], strides = [1, 1]} : vector<16x32xf32> to vector<1x32xf32>
    %295 = vector.broadcast %294 : vector<1x32xf32> to vector<16x32xf32>
    %296 = arith.addf %293, %295 : vector<16x32xf32>
    %297 = vector.extract_strided_slice %7 {offsets = [13, 0], sizes = [1, 32], strides = [1, 1]} : vector<16x32xf32> to vector<1x32xf32>
    %298 = vector.extract_strided_slice %7 {offsets = [14, 0], sizes = [1, 32], strides = [1, 1]} : vector<16x32xf32> to vector<1x32xf32>
    %299 = arith.addf %281, %296 : vector<16x32xf32>
    %cst_119 = arith.constant dense<0.000000e+00> : vector<16xf32>
    %300 = vector.multi_reduction <add>, %299, %cst_119 [1] : vector<16x32xf32> to vector<16xf32>
    %301 = vector.shape_cast %300 : vector<16xf32> to vector<16x1xf32>
    %cst_120 = arith.constant 3.200000e+01 : f32
    %302 = vector.broadcast %cst_120 : f32 to vector<16x1xf32>
    %303 = arith.divf %301, %302 : vector<16x1xf32>
    %304 = vector.broadcast %303 : vector<16x1xf32> to vector<16x32xf32>
    %305 = arith.subf %299, %304 : vector<16x32xf32>
    %306 = arith.mulf %305, %305 : vector<16x32xf32>
    %cst_121 = arith.constant dense<0.000000e+00> : vector<16xf32>
    %307 = vector.multi_reduction <add>, %306, %cst_121 [1] : vector<16x32xf32> to vector<16xf32>
    %308 = vector.shape_cast %307 : vector<16xf32> to vector<16x1xf32>
    %cst_122 = arith.constant 3.200000e+01 : f32
    %309 = vector.broadcast %cst_122 : f32 to vector<16x1xf32>
    %310 = arith.divf %308, %309 : vector<16x1xf32>
    %311 = vector.broadcast %303 : vector<16x1xf32> to vector<16x32xf32>
    %312 = arith.subf %299, %311 : vector<16x32xf32>
    %cst_123 = arith.constant 9.99999974E-6 : f32
    %313 = vector.broadcast %cst_123 : f32 to vector<16x1xf32>
    %314 = arith.addf %310, %313 : vector<16x1xf32>
    %315 = math.rsqrt %314 : vector<16x1xf32>
    %316 = vector.broadcast %315 : vector<16x1xf32> to vector<16x32xf32>
    %317 = arith.mulf %312, %316 : vector<16x32xf32>
    %318 = vector.broadcast %297 : vector<1x32xf32> to vector<16x32xf32>
    %319 = arith.mulf %317, %318 : vector<16x32xf32>
    %320 = vector.broadcast %298 : vector<1x32xf32> to vector<16x32xf32>
    %321 = arith.addf %319, %320 : vector<16x32xf32>
    %c0_124 = arith.constant 0 : index
    %c0_125 = arith.constant 0 : index
    %c0_126 = arith.constant 0 : index
    %322 = vector.load %arg11[%c0_124, %c0_125, %c0_126] : memref<1x16x32xf32, #tpu.memory_space<vmem>>, vector<1x16x32xf32>
    %323 = vector.shape_cast %322 : vector<1x16x32xf32> to vector<16x32xf32>
    %324 = vector.shape_cast %321 : vector<16x32xf32> to vector<1x16x32xf32>
    tpu.vector_store %arg11[%c0_124, %c0_125, %c0_126], %324 {strides = array<i32>} : memref<1x16x32xf32, #tpu.memory_space<vmem>>, vector<1x16x32xf32>,
    return
  }
  func.func @transform_0(%arg0: i32, %arg1: i32) -> (i32, i32) {
    %c0_i32 = arith.constant 0 : i32
    %c0_i32_0 = arith.constant 0 : i32
    %c0_i32_1 = arith.constant 0 : i32
    return %c0_i32, %c0_i32_0 : i32, i32
  }
  func.func @transform_1(%arg0: i32, %arg1: i32) -> (i32, i32, i32) {
    %c0_i32 = arith.constant 0 : i32
    %c0_i32_0 = arith.constant 0 : i32
    %c0_i32_1 = arith.constant 0 : i32
    return %arg0, %c0_i32, %c0_i32_0 : i32, i32, i32
  }
  func.func @transform_2(%arg0: i32, %arg1: i32) -> (i32, i32, i32) {
    %c0_i32 = arith.constant 0 : i32
    %c0_i32_0 = arith.constant 0 : i32
    %c0_i32_1 = arith.constant 0 : i32
    return %arg0, %c0_i32, %c0_i32_0 : i32, i32, i32
  }
  func.func @transform_3(%arg0: i32, %arg1: i32) -> (i32, i32, i32) {
    %c0_i32 = arith.constant 0 : i32
    %c0_i32_0 = arith.constant 0 : i32
    %c0_i32_1 = arith.constant 0 : i32
    return %arg0, %c0_i32, %c0_i32_0 : i32, i32, i32
  }
  func.func @transform_4(%arg0: i32, %arg1: i32) -> (i32, i32, i32, i32) {
    %c0_i32 = arith.constant 0 : i32
    %c0_i32_0 = arith.constant 0 : i32
    %c0_i32_1 = arith.constant 0 : i32
    %c0_i32_2 = arith.constant 0 : i32
    return %arg1, %c0_i32, %c0_i32_0, %c0_i32_1 : i32, i32, i32, i32
  }
  func.func @transform_5(%arg0: i32, %arg1: i32) -> (i32, i32, i32) {
    %c0_i32 = arith.constant 0 : i32
    %c0_i32_0 = arith.constant 0 : i32
    %c0_i32_1 = arith.constant 0 : i32
    return %arg1, %c0_i32, %c0_i32_0 : i32, i32, i32
  }
  func.func @transform_6(%arg0: i32, %arg1: i32) -> (i32, i32, i32) {
    %c0_i32 = arith.constant 0 : i32
    %c0_i32_0 = arith.constant 0 : i32
    %c0_i32_1 = arith.constant 0 : i32
    return %arg1, %c0_i32, %c0_i32_0 : i32, i32, i32
  }
  func.func @transform_7(%arg0: i32, %arg1: i32) -> (i32, i32, i32) {
    %c0_i32 = arith.constant 0 : i32
    %c0_i32_0 = arith.constant 0 : i32
    %c0_i32_1 = arith.constant 0 : i32
    return %arg1, %c0_i32, %c0_i32_0 : i32, i32, i32
  }
  func.func @transform_8(%arg0: i32, %arg1: i32) -> (i32, i32, i32) {
    %c0_i32 = arith.constant 0 : i32
    %c0_i32_0 = arith.constant 0 : i32
    %c0_i32_1 = arith.constant 0 : i32
    return %arg1, %c0_i32, %c0_i32_0 : i32, i32, i32
  }
  func.func @transform_9(%arg0: i32, %arg1: i32) -> (i32, i32, i32) {
    %c0_i32 = arith.constant 0 : i32
    %c0_i32_0 = arith.constant 0 : i32
    %c0_i32_1 = arith.constant 0 : i32
    return %arg0, %c0_i32, %c0_i32_0 : i32, i32, i32
  }
}

</mosaic_0001>

<llo_original>
// kernel: detr_decoder_forward.3
$region0: #{detr_decoder_forward.3}
  #allocation0 [shape = 'u32[]', space=smem, size = 0x4, offset = 0x4, fixed_abs, tag = 'smem constant byte address 0x4 - core index']
  #allocation1 [shape = 'u32[144,128]{1,0:T(1,128)}', space=vmem, size = 0x12000, scoped, tag = 'internal scratch']
  %s0 = inlined_call_operand.vmem [shape: f32[32,32], index: 0, kind: input, shape index: {}]
  %s1 = inlined_call_operand.vmem [shape: f32[32,128], index: 1, kind: input, shape index: {}]
  %s2 = inlined_call_operand.vmem [shape: f32[1,128], index: 2, kind: input, shape index: {}]
  %s3 = inlined_call_operand.vmem [shape: f32[32,32], index: 3, kind: input, shape index: {}]
  %s4 = inlined_call_operand.vmem [shape: f32[1,32], index: 4, kind: input, shape index: {}]
  %s5 = inlined_call_operand.vmem [shape: f32[32,32], index: 5, kind: input, shape index: {}]
  %s6 = inlined_call_operand.vmem [shape: f32[1,32], index: 6, kind: input, shape index: {}]
  %s7 = inlined_call_operand.vmem [shape: f32[32,128], index: 7, kind: input, shape index: {}]
  %s8 = inlined_call_operand.vmem [shape: f32[1,128], index: 8, kind: input, shape index: {}]
  %s9 = inlined_call_operand.vmem [shape: f32[32,128], index: 9, kind: output, shape index: {}]
  %s10 = sld [smem:[#allocation0]]
  $region46: #{detr_decoder_forward.3} parent=0
    _
  %s12 = ssub.s32 1, %s10
  %s13 = scalar_select 0, %s12, %s10
  // Predicated region
  $region2: #{detr_decoder_forward.3} parent=0 // pred_check
    _
  $region3: #{detr_decoder_forward.3} parent=0 // pred_check_branch
    %15 = sbr.rel (0) target = $region5
  $region4: #{detr_decoder_forward.3} parent=0 // pred_region
    _
  $region5: #{detr_decoder_forward.3} parent=0 // pred_fallthru
    _
  // Predicated region
  $region6: #{detr_decoder_forward.3} parent=0 // pred_check
    _
  $region7: #{detr_decoder_forward.3} parent=0 // pred_check_branch
    %17 = sbr.rel (0) target = $region9
  $region8: #{detr_decoder_forward.3} parent=0 // pred_region
    _
  $region9: #{detr_decoder_forward.3} parent=0 // pred_fallthru
    _
  // Predicated region
  $region10: #{detr_decoder_forward.3} parent=0 // pred_check
    _
  $region11: #{detr_decoder_forward.3} parent=0 // pred_check_branch
    %19 = sbr.rel (0) target = $region13
  $region12: #{detr_decoder_forward.3} parent=0 // pred_region
    _
  $region13: #{detr_decoder_forward.3} parent=0 // pred_fallthru
    _
  // Predicated region
  $region14: #{detr_decoder_forward.3} parent=0 // pred_check
    _
  $region15: #{detr_decoder_forward.3} parent=0 // pred_check_branch
    %21 = sbr.rel (0) target = $region17
  $region16: #{detr_decoder_forward.3} parent=0 // pred_region
    _
  $region17: #{detr_decoder_forward.3} parent=0 // pred_fallthru
    _
  // Predicated region
  $region18: #{detr_decoder_forward.3} parent=0 // pred_check
    _
  $region19: #{detr_decoder_forward.3} parent=0 // pred_check_branch
    %23 = sbr.rel (0) target = $region21
  $region20: #{detr_decoder_forward.3} parent=0 // pred_region
    _
  $region21: #{detr_decoder_forward.3} parent=0 // pred_fallthru
    _
  // Predicated region
  $region22: #{detr_decoder_forward.3} parent=0 // pred_check
    _
  $region23: #{detr_decoder_forward.3} parent=0 // pred_check_branch
    %25 = sbr.rel (0) target = $region25
  $region24: #{detr_decoder_forward.3} parent=0 // pred_region
    _
  $region25: #{detr_decoder_forward.3} parent=0 // pred_fallthru
    _
  // Predicated region
  $region26: #{detr_decoder_forward.3} parent=0 // pred_check
    _
  $region27: #{detr_decoder_forward.3} parent=0 // pred_check_branch
    %27 = sbr.rel (0) target = $region29
  $region28: #{detr_decoder_forward.3} parent=0 // pred_region
    _
  $region29: #{detr_decoder_forward.3} parent=0 // pred_fallthru
    _
  // Predicated region
  $region30: #{detr_decoder_forward.3} parent=0 // pred_check
    _
  $region31: #{detr_decoder_forward.3} parent=0 // pred_check_branch
    %29 = sbr.rel (0) target = $region33
  $region32: #{detr_decoder_forward.3} parent=0 // pred_region
    _
  $region33: #{detr_decoder_forward.3} parent=0 // pred_fallthru
    _
  // Predicated region
  $region34: #{detr_decoder_forward.3} parent=0 // pred_check
    _
  $region35: #{detr_decoder_forward.3} parent=0 // pred_check_branch
    %31 = sbr.rel (0) target = $region37
  $region36: #{detr_decoder_forward.3} parent=0 // pred_region
    _
  $region37: #{detr_decoder_forward.3} parent=0 // pred_fallthru
    _
  %v32 = vld [vmem:[%s0] sm:$0xff]
  %v33 = vld [vmem:[%s0 + $0x8] sm:$0xff]
  %v34 = vld [vmem:[%s0 + $0x10] sm:$0xff]
  %v35 = vld [vmem:[%s0 + $0x18] sm:$0xff]
  %v36 = vld [vmem:[%s1] sm:$0xff]
  %v37 = vld [vmem:[%s1 + $0x8] sm:$0xff]
  %v38 = vld [vmem:[%s1 + $0x10] sm:$0xff]
  %v39 = vld [vmem:[%s1 + $0x18] sm:$0xff]
  %v40 = vld [vmem:[%s2] sm:$0x1]
  %v42 = vlaneseq
  %v43 = vshrl.u32 %v42, 7
  %v44 = vsub.s32 0, %v43
  %v45 = vrot.slane %v40, %v44
  %vm47 = vcmask 261120
  %v49 = vsel %vm47, %v32, 0
  %v52 = vsel %vm47, %v33, 0
  %v55 = vsel %vm47, %v34, 0
  %v58 = vsel %vm47, %v35, 0
  %60 = vmatprep.subr.mxu0 0.0
  %61 = vmatpush1.msra.mxu0 %v36
  %62 = vmatprep.subr.mxu0 0.0
  %63 = vmatpush1.msra.mxu0 %v37
  %64 = vmatprep.subr.mxu0 0.0
  %65 = vmatpush1.msra.mxu0 %v38
  %66 = vmatprep.subr.mxu0 0.0
  %67 = vmatpush1.msra.mxu0 %v39
  %68 = vmatprep.subr.mxu0 0.0
  %69 = vmatpush1.msra.mxu0 0.0
  %70 = vmatprep.subr.mxu0 0.0
  %71 = vmatpush1.msra.mxu0 0.0
  %72 = vmatprep.subr.mxu0 0.0
  %73 = vmatpush1.msra.mxu0 0.0
  %74 = vmatprep.subr.mxu0 0.0
  %75 = vmatpush1.msra.mxu0 0.0
  %76 = vmatprep.subr.mxu0 0.0
  %77 = vmatpush1.msra.mxu0 0.0
  %78 = vmatprep.subr.mxu0 0.0
  %79 = vmatpush1.msra.mxu0 0.0
  %80 = vmatprep.subr.mxu0 0.0
  %81 = vmatpush1.msra.mxu0 0.0
  %82 = vmatprep.subr.mxu0 0.0
  %83 = vmatpush1.msra.mxu0 0.0
  %84 = vmatprep.subr.mxu0 0.0
  %85 = vmatpush1.msra.mxu0 0.0
  %86 = vmatprep.subr.mxu0 0.0
  %87 = vmatpush1.msra.mxu0 0.0
  %88 = vmatprep.subr.mxu0 0.0
  %89 = vmatpush1.msra.mxu0 0.0
  %90 = vmatprep.subr.mxu0 0.0
  %91 = vmatpush1.msra.mxu0 0.0
  %92 = vmatprep.subr.mxu0 0.0
  %93 = vmatpush1.msra.mxu0 0.0
  %94 = vmatprep.subr.mxu0 0.0
  %95 = vmatpush1.msra.mxu0 0.0
  %96 = vmatprep.subr.mxu0 0.0
  %97 = vmatpush1.msra.mxu0 0.0
  %98 = vmatprep.subr.mxu0 0.0
  %99 = vmatpush1.msra.mxu0 0.0
  %100 = vmatprep.subr.mxu0 0.0
  %101 = vmatpush1.msra.mxu0 0.0
  %102 = vmatprep.subr.mxu0 0.0
  %103 = vmatpush1.msra.mxu0 0.0
  %104 = vmatprep.subr.mxu0 0.0
  %105 = vmatpush1.msra.mxu0 0.0
  %106 = vmatprep.subr.mxu0 0.0
  %107 = vmatpush1.msra.mxu0 0.0
  %108 = vmatprep.subr.mxu0 0.0
  %109 = vmatpush1.msra.mxu0 0.0
  %110 = vmatprep.subr.mxu0 0.0
  %111 = vmatpush1.msra.mxu0 0.0
  %112 = vmatprep.subr.mxu0 0.0
  %113 = vmatpush1.msra.mxu0 0.0
  %114 = vmatprep.subr.mxu0 0.0
  %115 = vmatpush1.msra.mxu0 0.0
  %116 = vmatprep.subr.mxu0 0.0
  %117 = vmatpush1.msra.mxu0 0.0
  %118 = vmatprep.subr.mxu0 0.0
  %119 = vmatpush1.msra.mxu0 0.0
  %120 = vmatprep.subr.mxu0 0.0
  %121 = vmatpush1.msra.mxu0 0.0
  %122 = vmatprep.subr.mxu0 0.0
  %123 = vmatpush1.msra.mxu0 0.0
  %124 = vmatprep.mubr.f32.mxu0 0.0
  %125 = vmatmul.mubr.f32.gmra.mrb[0].mxu0 %v49
  %v126 = vpop.f32.mrb[0].mxu0
  %v127 = vadd.f32 %v45, %v126
  %v128 = vpop.f32.mrb[0].mxu0
  %129 = vmatprep.mubr.f32.mxu0 0.0
  %130 = vmatmul.mubr.f32.gmra.mrb[0].mxu0 %v52
  %v131 = vpop.f32.mrb[0].mxu0
  %v132 = vadd.f32 %v45, %v131
  %v133 = vpop.f32.mrb[0].mxu0
  %134 = vmatprep.mubr.f32.mxu0 0.0
  %135 = vmatmul.mubr.f32.gmra.mrb[0].mxu0 %v55
  %v136 = vpop.f32.mrb[0].mxu0
  %v137 = vadd.f32 %v45, %v136
  %v138 = vpop.f32.mrb[0].mxu0
  %139 = vmatprep.mubr.f32.mxu0 0.0
  %140 = vmatmul.mubr.f32.gmra.mrb[0].mxu0 %v58
  %v141 = vpop.f32.mrb[0].mxu0
  %v142 = vadd.f32 %v45, %v141
  %v143 = vpop.f32.mrb[0].mxu0
  %144 = vdwg.mxu0
  %v145 = vld [vmem:[%s3] sm:$0xff]
  %v146 = vld [vmem:[%s3 + $0x8] sm:$0xff]
  %v147 = vld [vmem:[%s3 + $0x10] sm:$0xff]
  %v148 = vld [vmem:[%s3 + $0x18] sm:$0xff]
  %v149 = vld [vmem:[%s4] sm:$0x1]
  %v151 = vlaneseq
  %v152 = vshrl.u32 %v151, 7
  %v153 = vsub.s32 0, %v152
  %v154 = vrot.slane %v149, %v153
  %156 = vmatprep.subr.mxu0 0.0
  %157 = vmatpush1.msra.mxu0 %v145
  %158 = vmatprep.subr.mxu0 0.0
  %159 = vmatpush1.msra.mxu0 %v146
  %160 = vmatprep.subr.mxu0 0.0
  %161 = vmatpush1.msra.mxu0 %v147
  %162 = vmatprep.subr.mxu0 0.0
  %163 = vmatpush1.msra.mxu0 %v148
  %164 = vmatprep.subr.mxu0 0.0
  %165 = vmatpush1.msra.mxu0 0.0
  %166 = vmatprep.subr.mxu0 0.0
  %167 = vmatpush1.msra.mxu0 0.0
  %168 = vmatprep.subr.mxu0 0.0
  %169 = vmatpush1.msra.mxu0 0.0
  %170 = vmatprep.subr.mxu0 0.0
  %171 = vmatpush1.msra.mxu0 0.0
  %172 = vmatprep.subr.mxu0 0.0
  %173 = vmatpush1.msra.mxu0 0.0
  %174 = vmatprep.subr.mxu0 0.0
  %175 = vmatpush1.msra.mxu0 0.0
  %176 = vmatprep.subr.mxu0 0.0
  %177 = vmatpush1.msra.mxu0 0.0
  %178 = vmatprep.subr.mxu0 0.0
  %179 = vmatpush1.msra.mxu0 0.0
  %180 = vmatprep.subr.mxu0 0.0
  %181 = vmatpush1.msra.mxu0 0.0
  %182 = vmatprep.subr.mxu0 0.0
  %183 = vmatpush1.msra.mxu0 0.0
  %184 = vmatprep.subr.mxu0 0.0
  %185 = vmatpush1.msra.mxu0 0.0
  %186 = vmatprep.subr.mxu0 0.0
  %187 = vmatpush1.msra.mxu0 0.0
  %188 = vmatprep.subr.mxu0 0.0
  %189 = vmatpush1.msra.mxu0 0.0
  %190 = vmatprep.subr.mxu0 0.0
  %191 = vmatpush1.msra.mxu0 0.0
  %192 = vmatprep.subr.mxu0 0.0
  %193 = vmatpush1.msra.mxu0 0.0
  %194 = vmatprep.subr.mxu0 0.0
  %195 = vmatpush1.msra.mxu0 0.0
  %196 = vmatprep.subr.mxu0 0.0
  %197 = vmatpush1.msra.mxu0 0.0
  %198 = vmatprep.subr.mxu0 0.0
  %199 = vmatpush1.msra.mxu0 0.0
  %200 = vmatprep.subr.mxu0 0.0
  %201 = vmatpush1.msra.mxu0 0.0
  %202 = vmatprep.subr.mxu0 0.0
  %203 = vmatpush1.msra.mxu0 0.0
  %204 = vmatprep.subr.mxu0 0.0
  %205 = vmatpush1.msra.mxu0 0.0
  %206 = vmatprep.subr.mxu0 0.0
  %207 = vmatpush1.msra.mxu0 0.0
  %208 = vmatprep.subr.mxu0 0.0
  %209 = vmatpush1.msra.mxu0 0.0
  %210 = vmatprep.subr.mxu0 0.0
  %211 = vmatpush1.msra.mxu0 0.0
  %212 = vmatprep.subr.mxu0 0.0
  %213 = vmatpush1.msra.mxu0 0.0
  %214 = vmatprep.subr.mxu0 0.0
  %215 = vmatpush1.msra.mxu0 0.0
  %216 = vmatprep.subr.mxu0 0.0
  %217 = vmatpush1.msra.mxu0 0.0
  %218 = vmatprep.subr.mxu0 0.0
  %219 = vmatpush1.msra.mxu0 0.0
  %220 = vmatprep.mubr.f32.mxu0 0.0
  %221 = vmatmul.mubr.f32.gmra.mrb[0].mxu0 %v49
  %v222 = vpop.f32.mrb[0].mxu0
  %v223 = vadd.f32 %v154, %v222
  %v224 = vpop.f32.mrb[0].mxu0
  %225 = vmatprep.mubr.f32.mxu0 0.0
  %226 = vmatmul.mubr.f32.gmra.mrb[0].mxu0 %v52
  %v227 = vpop.f32.mrb[0].mxu0
  %v228 = vadd.f32 %v154, %v227
  %v229 = vpop.f32.mrb[0].mxu0
  %230 = vmatprep.mubr.f32.mxu0 0.0
  %231 = vmatmul.mubr.f32.gmra.mrb[0].mxu0 %v55
  %v232 = vpop.f32.mrb[0].mxu0
  %v233 = vadd.f32 %v154, %v232
  %v234 = vpop.f32.mrb[0].mxu0
  %235 = vmatprep.mubr.f32.mxu0 0.0
  %236 = vmatmul.mubr.f32.gmra.mrb[0].mxu0 %v58
  %v237 = vpop.f32.mrb[0].mxu0
  %v238 = vadd.f32 %v154, %v237
  %v239 = vpop.f32.mrb[0].mxu0
  %240 = vdwg.mxu0
  %v241 = vmax.f32 %v223, 0.0
  %v242 = vmax.f32 %v228, 0.0
  %v243 = vmax.f32 %v233, 0.0
  %v244 = vmax.f32 %v238, 0.0
  %v245 = vld [vmem:[%s5] sm:$0xff]
  %v246 = vld [vmem:[%s5 + $0x8] sm:$0xff]
  %v247 = vld [vmem:[%s5 + $0x10] sm:$0xff]
  %v248 = vld [vmem:[%s5 + $0x18] sm:$0xff]
  %v249 = vld [vmem:[%s6] sm:$0x1]
  %v251 = vlaneseq
  %v252 = vshrl.u32 %v251, 7
  %v253 = vsub.s32 0, %v252
  %v254 = vrot.slane %v249, %v253
  %v257 = vsel %vm47, %v241, 0
  %v260 = vsel %vm47, %v242, 0
  %v263 = vsel %vm47, %v243, 0
  %v266 = vsel %vm47, %v244, 0
  %268 = vmatprep.subr.mxu0 0.0
  %269 = vmatpush1.msra.mxu0 %v245
  %270 = vmatprep.subr.mxu0 0.0
  %271 = vmatpush1.msra.mxu0 %v246
  %272 = vmatprep.subr.mxu0 0.0
  %273 = vmatpush1.msra.mxu0 %v247
  %274 = vmatprep.subr.mxu0 0.0
  %275 = vmatpush1.msra.mxu0 %v248
  %276 = vmatprep.subr.mxu0 0.0
  %277 = vmatpush1.msra.mxu0 0.0
  %278 = vmatprep.subr.mxu0 0.0
  %279 = vmatpush1.msra.mxu0 0.0
  %280 = vmatprep.subr.mxu0 0.0
  %281 = vmatpush1.msra.mxu0 0.0
  %282 = vmatprep.subr.mxu0 0.0
  %283 = vmatpush1.msra.mxu0 0.0
  %284 = vmatprep.subr.mxu0 0.0
  %285 = vmatpush1.msra.mxu0 0.0
  %286 = vmatprep.subr.mxu0 0.0
  %287 = vmatpush1.msra.mxu0 0.0
  %288 = vmatprep.subr.mxu0 0.0
  %289 = vmatpush1.msra.mxu0 0.0
  %290 = vmatprep.subr.mxu0 0.0
  %291 = vmatpush1.msra.mxu0 0.0
  %292 = vmatprep.subr.mxu0 0.0
  %293 = vmatpush1.msra.mxu0 0.0
  %294 = vmatprep.subr.mxu0 0.0
  %295 = vmatpush1.msra.mxu0 0.0
  %296 = vmatprep.subr.mxu0 0.0
  %297 = vmatpush1.msra.mxu0 0.0
  %298 = vmatprep.subr.mxu0 0.0
  %299 = vmatpush1.msra.mxu0 0.0
  %300 = vmatprep.subr.mxu0 0.0
  %301 = vmatpush1.msra.mxu0 0.0
  %302 = vmatprep.subr.mxu0 0.0
  %303 = vmatpush1.msra.mxu0 0.0
  %304 = vmatprep.subr.mxu0 0.0
  %305 = vmatpush1.msra.mxu0 0.0
  %306 = vmatprep.subr.mxu0 0.0
  %307 = vmatpush1.msra.mxu0 0.0
  %308 = vmatprep.subr.mxu0 0.0
  %309 = vmatpush1.msra.mxu0 0.0
  %310 = vmatprep.subr.mxu0 0.0
  %311 = vmatpush1.msra.mxu0 0.0
  %312 = vmatprep.subr.mxu0 0.0
  %313 = vmatpush1.msra.mxu0 0.0
  %314 = vmatprep.subr.mxu0 0.0
  %315 = vmatpush1.msra.mxu0 0.0
  %316 = vmatprep.subr.mxu0 0.0
  %317 = vmatpush1.msra.mxu0 0.0
  %318 = vmatprep.subr.mxu0 0.0
  %319 = vmatpush1.msra.mxu0 0.0
  %320 = vmatprep.subr.mxu0 0.0
  %321 = vmatpush1.msra.mxu0 0.0
  %322 = vmatprep.subr.mxu0 0.0
  %323 = vmatpush1.msra.mxu0 0.0
  %324 = vmatprep.subr.mxu0 0.0
  %325 = vmatpush1.msra.mxu0 0.0
  %326 = vmatprep.subr.mxu0 0.0
  %327 = vmatpush1.msra.mxu0 0.0
  %328 = vmatprep.subr.mxu0 0.0
  %329 = vmatpush1.msra.mxu0 0.0
  %330 = vmatprep.subr.mxu0 0.0
  %331 = vmatpush1.msra.mxu0 0.0
  %332 = vmatprep.mubr.f32.mxu0 0.0
  %333 = vmatmul.mubr.f32.gmra.mrb[0].mxu0 %v257
  %v334 = vpop.f32.mrb[0].mxu0
  %v335 = vadd.f32 %v254, %v334
  %v336 = vpop.f32.mrb[0].mxu0
  %337 = vmatprep.mubr.f32.mxu0 0.0
  %338 = vmatmul.mubr.f32.gmra.mrb[0].mxu0 %v260
  %v339 = vpop.f32.mrb[0].mxu0
  %v340 = vadd.f32 %v254, %v339
  %v341 = vpop.f32.mrb[0].mxu0
  %342 = vmatprep.mubr.f32.mxu0 0.0
  %343 = vmatmul.mubr.f32.gmra.mrb[0].mxu0 %v263
  %v344 = vpop.f32.mrb[0].mxu0
  %v345 = vadd.f32 %v254, %v344
  %v346 = vpop.f32.mrb[0].mxu0
  %347 = vmatprep.mubr.f32.mxu0 0.0
  %348 = vmatmul.mubr.f32.gmra.mrb[0].mxu0 %v266
  %v349 = vpop.f32.mrb[0].mxu0
  %v350 = vadd.f32 %v254, %v349
  %v351 = vpop.f32.mrb[0].mxu0
  %352 = vdwg.mxu0
  %v353 = vmax.f32 %v335, 0.0
  %v354 = vmax.f32 %v340, 0.0
  %v355 = vmax.f32 %v345, 0.0
  %v356 = vmax.f32 %v350, 0.0
  %v357 = vld [vmem:[%s7] sm:$0xff]
  %v358 = vld [vmem:[%s7 + $0x8] sm:$0xff]
  %v359 = vld [vmem:[%s7 + $0x10] sm:$0xff]
  %v360 = vld [vmem:[%s7 + $0x18] sm:$0xff]
  %v361 = vld [vmem:[%s8] sm:$0x1]
  %v363 = vlaneseq
  %v364 = vshrl.u32 %v363, 7
  %v365 = vsub.s32 0, %v364
  %v366 = vrot.slane %v361, %v365
  %v369 = vsel %vm47, %v353, 0
  %v372 = vsel %vm47, %v354, 0
  %v375 = vsel %vm47, %v355, 0
  %v378 = vsel %vm47, %v356, 0
  %380 = vmatprep.subr.mxu0 0.0
  %381 = vmatpush1.msra.mxu0 %v357
  %382 = vmatprep.subr.mxu0 0.0
  %383 = vmatpush1.msra.mxu0 %v358
  %384 = vmatprep.subr.mxu0 0.0
  %385 = vmatpush1.msra.mxu0 %v359
  %386 = vmatprep.subr.mxu0 0.0
  %387 = vmatpush1.msra.mxu0 %v360
  %388 = vmatprep.subr.mxu0 0.0
  %389 = vmatpush1.msra.mxu0 0.0
  %390 = vmatprep.subr.mxu0 0.0
  %391 = vmatpush1.msra.mxu0 0.0
  %392 = vmatprep.subr.mxu0 0.0
  %393 = vmatpush1.msra.mxu0 0.0
  %394 = vmatprep.subr.mxu0 0.0
  %395 = vmatpush1.msra.mxu0 0.0
  %396 = vmatprep.subr.mxu0 0.0
  %397 = vmatpush1.msra.mxu0 0.0
  %398 = vmatprep.subr.mxu0 0.0
  %399 = vmatpush1.msra.mxu0 0.0
  %400 = vmatprep.subr.mxu0 0.0
  %401 = vmatpush1.msra.mxu0 0.0
  %402 = vmatprep.subr.mxu0 0.0
  %403 = vmatpush1.msra.mxu0 0.0
  %404 = vmatprep.subr.mxu0 0.0
  %405 = vmatpush1.msra.mxu0 0.0
  %406 = vmatprep.subr.mxu0 0.0
  %407 = vmatpush1.msra.mxu0 0.0
  %408 = vmatprep.subr.mxu0 0.0
  %409 = vmatpush1.msra.mxu0 0.0
  %410 = vmatprep.subr.mxu0 0.0
  %411 = vmatpush1.msra.mxu0 0.0
  %412 = vmatprep.subr.mxu0 0.0
  %413 = vmatpush1.msra.mxu0 0.0
  %414 = vmatprep.subr.mxu0 0.0
  %415 = vmatpush1.msra.mxu0 0.0
  %416 = vmatprep.subr.mxu0 0.0
  %417 = vmatpush1.msra.mxu0 0.0
  %418 = vmatprep.subr.mxu0 0.0
  %419 = vmatpush1.msra.mxu0 0.0
  %420 = vmatprep.subr.mxu0 0.0
  %421 = vmatpush1.msra.mxu0 0.0
  %422 = vmatprep.subr.mxu0 0.0
  %423 = vmatpush1.msra.mxu0 0.0
  %424 = vmatprep.subr.mxu0 0.0
  %425 = vmatpush1.msra.mxu0 0.0
  %426 = vmatprep.subr.mxu0 0.0
  %427 = vmatpush1.msra.mxu0 0.0
  %428 = vmatprep.subr.mxu0 0.0
  %429 = vmatpush1.msra.mxu0 0.0
  %430 = vmatprep.subr.mxu0 0.0
  %431 = vmatpush1.msra.mxu0 0.0
  %432 = vmatprep.subr.mxu0 0.0
  %433 = vmatpush1.msra.mxu0 0.0
  %434 = vmatprep.subr.mxu0 0.0
  %435 = vmatpush1.msra.mxu0 0.0
  %436 = vmatprep.subr.mxu0 0.0
  %437 = vmatpush1.msra.mxu0 0.0
  %438 = vmatprep.subr.mxu0 0.0
  %439 = vmatpush1.msra.mxu0 0.0
  %440 = vmatprep.subr.mxu0 0.0
  %441 = vmatpush1.msra.mxu0 0.0
  %442 = vmatprep.subr.mxu0 0.0
  %443 = vmatpush1.msra.mxu0 0.0
  %444 = vmatprep.mubr.f32.mxu0 0.0
  %445 = vmatmul.mubr.f32.gmra.mrb[0].mxu0 %v369
  %v446 = vpop.f32.mrb[0].mxu0
  %v447 = vadd.f32 %v366, %v446
  %v448 = vpop.f32.mrb[0].mxu0
  %449 = vmatprep.mubr.f32.mxu0 0.0
  %450 = vmatmul.mubr.f32.gmra.mrb[0].mxu0 %v372
  %v451 = vpop.f32.mrb[0].mxu0
  %v452 = vadd.f32 %v366, %v451
  %v453 = vpop.f32.mrb[0].mxu0
  %454 = vmatprep.mubr.f32.mxu0 0.0
  %455 = vmatmul.mubr.f32.gmra.mrb[0].mxu0 %v375
  %v456 = vpop.f32.mrb[0].mxu0
  %v457 = vadd.f32 %v366, %v456
  %v458 = vpop.f32.mrb[0].mxu0
  %459 = vmatprep.mubr.f32.mxu0 0.0
  %460 = vmatmul.mubr.f32.gmra.mrb[0].mxu0 %v378
  %v461 = vpop.f32.mrb[0].mxu0
  %v462 = vadd.f32 %v366, %v461
  %v463 = vpop.f32.mrb[0].mxu0
  %464 = vdwg.mxu0
  %v465 = vsub.f32 0.0, %v447
  %v466 = vsub.f32 0.0, %v452
  %v467 = vsub.f32 0.0, %v457
  %v468 = vsub.f32 0.0, %v462
  %v469 = vmul.f32 %v465, 1.442695
  %v470 = vpow.pop %v469
  %v471 = vmul.f32 %v466, 1.442695
  %v472 = vpow.pop %v471
  %v473 = vmul.f32 %v467, 1.442695
  %v474 = vpow.pop %v473
  %v475 = vmul.f32 %v468, 1.442695
  %v476 = vpow.pop %v475
  %v477 = vadd.f32 %v470, 1.0
  %v478 = vadd.f32 %v472, 1.0
  %v479 = vadd.f32 %v474, 1.0
  %v480 = vadd.f32 %v476, 1.0
  %v481 = vrcp.pop %v477
  %v482 = vrcp.pop %v478
  %v483 = vrcp.pop %v479
  %v484 = vrcp.pop %v480
  %v485 = vlaneseq
  %v486 = vand.u32 %v485, 127
  %vm487 = vcmp.ge.s32.totalorder %v486, 8
  %vm488 = vcmp.lt.s32.totalorder %v486, 12
  %vm489 = vmand %vm487, %vm488
  %v490 = vsel %vm489, %v481, %v127
  %v491 = vsel %vm489, %v482, %v132
  %v492 = vsel %vm489, %v483, %v137
  %v493 = vsel %vm489, %v484, %v142
  %494 = vst [vmem:[%s9] sm:$0xff] %v490
  %495 = vst [vmem:[%s9 + $0x8] sm:$0xff] %v491
  %496 = vst [vmem:[%s9 + $0x10] sm:$0xff] %v492
  %497 = vst [vmem:[%s9 + $0x18] sm:$0xff] %v493
  // Predicated region
  $region38: #{detr_decoder_forward.3} parent=0 // pred_check
    _
  $region39: #{detr_decoder_forward.3} parent=0 // pred_check_branch
    %499 = sbr.rel (0) target = $region41
  $region40: #{detr_decoder_forward.3} parent=0 // pred_region
    _
  $region41: #{detr_decoder_forward.3} parent=0 // pred_fallthru
    _
  // Predicated region
  $region42: #{detr_decoder_forward.3} parent=0 // pred_check
    _
  $region43: #{detr_decoder_forward.3} parent=0 // pred_check_branch
    %501 = sbr.rel (0) target = $region45
  $region44: #{detr_decoder_forward.3} parent=0 // pred_region
    _
  $region45: #{detr_decoder_forward.3} parent=0 // pred_fallthru
    _

// kernel: detr_decoder_forward.2
$region0: #{detr_decoder_forward.2}
  #allocation0 [shape = 'u32[]', space=smem, size = 0x4, offset = 0x4, fixed_abs, tag = 'smem constant byte address 0x4 - core index']
  #allocation1 [shape = 'u32[144,128]{1,0:T(1,128)}', space=vmem, size = 0x12000, scoped, tag = 'internal scratch']
  %s0 = inlined_call_operand.vmem [shape: f32[16,32], index: 0, kind: input, shape index: {}]
  %s1 = inlined_call_operand.vmem [shape: f32[2,64,32], index: 1, kind: input, shape index: {}]
  %s2 = inlined_call_operand.vmem [shape: f32[2,64,32], index: 2, kind: input, shape index: {}]
  %s3 = inlined_call_operand.vmem [shape: f32[2,1,64], index: 3, kind: input, shape index: {}]
  %s4 = inlined_call_operand.vmem [shape: f32[2,8,32,32], index: 4, kind: input, shape index: {}]
  %s5 = inlined_call_operand.vmem [shape: f32[2,32,128], index: 5, kind: input, shape index: {}]
  %s6 = inlined_call_operand.vmem [shape: f32[2,128,32], index: 6, kind: input, shape index: {}]
  %s7 = inlined_call_operand.vmem [shape: f32[2,16,32], index: 7, kind: input, shape index: {}]
  %s8 = inlined_call_operand.vmem [shape: f32[2,1,128], index: 8, kind: input, shape index: {}]
  %s9 = inlined_call_operand.vmem [shape: f32[2,16,32], index: 9, kind: output, shape index: {}]
  %s10 = sld [smem:[#allocation0]]
  $region73: #{detr_decoder_forward.2} parent=0
    _
  %s12 = ssub.s32 1, %s10
  %s13 = scalar_select 0, %s12, %s10
  loop: start=0, step=1, limit=6
  $region2: #{detr_decoder_forward.2} parent=0 // loop_pre_header
    _
  $region3: #{detr_decoder_forward.2} parent=0 // loop_header
    %s15 = sphi 0, %s19
    %p16 = scmp.ge.s32.totalorder %s15, 6
    %s22 = sphi 0, %s34
    %s23 = sphi 0, %s30
    %s24 = sphi 0, %s22
    %s25 = sphi 0, %s23
    %s26 = sphi 0, %s24
    %s27 = sphi 0, %s25
    %s35 = sphi 0, %s35
    %s37 = sphi 0, %s35
    %s38 = sphi 0, %s37
    %s52 = sphi 0, %s38
    %s58 = sphi 0, %s60
    %s61 = sphi 0, %s58
    %s62 = sphi 0, %s61
    %s78 = sphi 0, %s62
    %s84 = sphi 0, %s86
    %s87 = sphi 0, %s84
    %s88 = sphi 0, %s87
    %s104 = sphi 0, %s88
    %s110 = sphi 0, %s112
    %s113 = sphi 0, %s110
    %s114 = sphi 0, %s113
    %s130 = sphi 0, %s114
    %s136 = sphi 0, %s138
    %s139 = sphi 0, %s136
    %s140 = sphi 0, %s139
    %s156 = sphi 0, %s140
    %s162 = sphi 0, %s164
    %s165 = sphi 0, %s162
    %s166 = sphi 0, %s165
    %s182 = sphi 0, %s166
    %s188 = sphi 0, %s190
    %s191 = sphi 0, %s188
    %s192 = sphi 0, %s191
    %s208 = sphi 0, %s192
    %s214 = sphi 0, %s216
    %s217 = sphi 0, %s214
    %s218 = sphi 0, %s217
    %s234 = sphi 0, %s218
    %s240 = sphi 0, %s242
    %s243 = sphi 0, %s240
    %s244 = sphi 0, %s243
    %s260 = sphi 0, %s244
    %s266 = sphi 0, %s268
    %s269 = sphi 0, %s266
    %s270 = sphi 0, %s269
    %s286 = sphi 0, %s270
  $region4: #{detr_decoder_forward.2} parent=0 // loop_header_branch
    %18 = sbr.rel (%p16) target = $region8
  $region5: #{detr_decoder_forward.2} parent=0 // loop_body
    %s20 = ssub.s32 %s15, 1
    %s21 = ssub.s32 %s15, 2
    %s28 = sadd.s32 1, %s23
    %p29 = scmp.ge.s32.totalorder %s28, 2
    %s30 = scalar_select %p29, 0, %s28
    %s31 = sadd.s32 1, %s22
    %s32 = scalar_select %p29, %s31, %s22
    %p33 = scmp.ge.s32.totalorder %s32, 2
    %s34 = scalar_select %p33, 0, %s32
    %s36 = sadd.s32 %s35, 1
    %p39 = scmp.eq.s32.totalorder %s15, 3
    %p40 = scmp.ne.s32.totalorder %s35, %s37
    %p41 = scmp.eq.s32.totalorder %s15, 0
    %p42 = por %p40, %p41
    %p43 = scmp.ne.s32.totalorder %s35, %s37
    %p44 = scmp.eq.s32.totalorder %s20, 3
    %p45 = por %p43, %p44
    %p46 = scmp.ne.s32.totalorder %s37, %s38
    %p47 = scmp.eq.s32.totalorder %s20, 0
    %p48 = por %p46, %p47
    %p49 = scmp.ne.s32.totalorder %s37, %s38
    %p50 = scmp.eq.s32.totalorder %s21, 3
    %p51 = por %p49, %p50
    %p53 = scmp.ne.s32.totalorder %s38, %s52
    %p54 = scmp.eq.s32.totalorder %s21, 0
    %p55 = por %p53, %p54
    %s56 = ssub.s32 %s22, %s34
    %p57 = scmp.eq.s32.totalorder %s56, 0
    %s59 = sadd.s32 %s58, 1
    %s60 = scalar_select %p57, %s58, %s59
    %p63 = pneg %p57
    %p64 = scmp.eq.s32.totalorder %s15, 3
    %p65 = por %p63, %p64
    %p66 = scmp.ne.s32.totalorder %s58, %s61
    %p67 = scmp.eq.s32.totalorder %s15, 0
    %p68 = por %p66, %p67
    %p69 = scmp.ne.s32.totalorder %s58, %s61
    %p70 = scmp.eq.s32.totalorder %s20, 3
    %p71 = por %p69, %p70
    %p72 = scmp.ne.s32.totalorder %s61, %s62
    %p73 = scmp.eq.s32.totalorder %s20, 0
    %p74 = por %p72, %p73
    %p75 = scmp.ne.s32.totalorder %s61, %s62
    %p76 = scmp.eq.s32.totalorder %s21, 3
    %p77 = por %p75, %p76
    %p79 = scmp.ne.s32.totalorder %s62, %s78
    %p80 = scmp.eq.s32.totalorder %s21, 0
    %p81 = por %p79, %p80
    %s82 = ssub.s32 %s22, %s34
    %p83 = scmp.eq.s32.totalorder %s82, 0
    %s85 = sadd.s32 %s84, 1
    %s86 = scalar_select %p83, %s84, %s85
    %p89 = pneg %p83
    %p90 = scmp.eq.s32.totalorder %s15, 3
    %p91 = por %p89, %p90
    %p92 = scmp.ne.s32.totalorder %s84, %s87
    %p93 = scmp.eq.s32.totalorder %s15, 0
    %p94 = por %p92, %p93
    %p95 = scmp.ne.s32.totalorder %s84, %s87
    %p96 = scmp.eq.s32.totalorder %s20, 3
    %p97 = por %p95, %p96
    %p98 = scmp.ne.s32.totalorder %s87, %s88
    %p99 = scmp.eq.s32.totalorder %s20, 0
    %p100 = por %p98, %p99
    %p101 = scmp.ne.s32.totalorder %s87, %s88
    %p102 = scmp.eq.s32.totalorder %s21, 3
    %p103 = por %p101, %p102
    %p105 = scmp.ne.s32.totalorder %s88, %s104
    %p106 = scmp.eq.s32.totalorder %s21, 0
    %p107 = por %p105, %p106
    %s108 = ssub.s32 %s22, %s34
    %p109 = scmp.eq.s32.totalorder %s108, 0
    %s111 = sadd.s32 %s110, 1
    %s112 = scalar_select %p109, %s110, %s111
    %p115 = pneg %p109
    %p116 = scmp.eq.s32.totalorder %s15, 3
    %p117 = por %p115, %p116
    %p118 = scmp.ne.s32.totalorder %s110, %s113
    %p119 = scmp.eq.s32.totalorder %s15, 0
    %p120 = por %p118, %p119
    %p121 = scmp.ne.s32.totalorder %s110, %s113
    %p122 = scmp.eq.s32.totalorder %s20, 3
    %p123 = por %p121, %p122
    %p124 = scmp.ne.s32.totalorder %s113, %s114
    %p125 = scmp.eq.s32.totalorder %s20, 0
    %p126 = por %p124, %p125
    %p127 = scmp.ne.s32.totalorder %s113, %s114
    %p128 = scmp.eq.s32.totalorder %s21, 3
    %p129 = por %p127, %p128
    %p131 = scmp.ne.s32.totalorder %s114, %s130
    %p132 = scmp.eq.s32.totalorder %s21, 0
    %p133 = por %p131, %p132
    %s134 = ssub.s32 %s23, %s30
    %p135 = scmp.eq.s32.totalorder %s134, 0
    %s137 = sadd.s32 %s136, 1
    %s138 = scalar_select %p135, %s136, %s137
    %p141 = pneg %p135
    %p142 = scmp.eq.s32.totalorder %s15, 3
    %p143 = por %p141, %p142
    %p144 = scmp.ne.s32.totalorder %s136, %s139
    %p145 = scmp.eq.s32.totalorder %s15, 0
    %p146 = por %p144, %p145
    %p147 = scmp.ne.s32.totalorder %s136, %s139
    %p148 = scmp.eq.s32.totalorder %s20, 3
    %p149 = por %p147, %p148
    %p150 = scmp.ne.s32.totalorder %s139, %s140
    %p151 = scmp.eq.s32.totalorder %s20, 0
    %p152 = por %p150, %p151
    %p153 = scmp.ne.s32.totalorder %s139, %s140
    %p154 = scmp.eq.s32.totalorder %s21, 3
    %p155 = por %p153, %p154
    %p157 = scmp.ne.s32.totalorder %s140, %s156
    %p158 = scmp.eq.s32.totalorder %s21, 0
    %p159 = por %p157, %p158
    %s160 = ssub.s32 %s23, %s30
    %p161 = scmp.eq.s32.totalorder %s160, 0
    %s163 = sadd.s32 %s162, 1
    %s164 = scalar_select %p161, %s162, %s163
    %p167 = pneg %p161
    %p168 = scmp.eq.s32.totalorder %s15, 3
    %p169 = por %p167, %p168
    %p170 = scmp.ne.s32.totalorder %s162, %s165
    %p171 = scmp.eq.s32.totalorder %s15, 0
    %p172 = por %p170, %p171
    %p173 = scmp.ne.s32.totalorder %s162, %s165
    %p174 = scmp.eq.s32.totalorder %s20, 3
    %p175 = por %p173, %p174
    %p176 = scmp.ne.s32.totalorder %s165, %s166
    %p177 = scmp.eq.s32.totalorder %s20, 0
    %p178 = por %p176, %p177
    %p179 = scmp.ne.s32.totalorder %s165, %s166
    %p180 = scmp.eq.s32.totalorder %s21, 3
    %p181 = por %p179, %p180
    %p183 = scmp.ne.s32.totalorder %s166, %s182
    %p184 = scmp.eq.s32.totalorder %s21, 0
    %p185 = por %p183, %p184
    %s186 = ssub.s32 %s23, %s30
    %p187 = scmp.eq.s32.totalorder %s186, 0
    %s189 = sadd.s32 %s188, 1
    %s190 = scalar_select %p187, %s188, %s189
    %p193 = pneg %p187
    %p194 = scmp.eq.s32.totalorder %s15, 3
    %p195 = por %p193, %p194
    %p196 = scmp.ne.s32.totalorder %s188, %s191
    %p197 = scmp.eq.s32.totalorder %s15, 0
    %p198 = por %p196, %p197
    %p199 = scmp.ne.s32.totalorder %s188, %s191
    %p200 = scmp.eq.s32.totalorder %s20, 3
    %p201 = por %p199, %p200
    %p202 = scmp.ne.s32.totalorder %s191, %s192
    %p203 = scmp.eq.s32.totalorder %s20, 0
    %p204 = por %p202, %p203
    %p205 = scmp.ne.s32.totalorder %s191, %s192
    %p206 = scmp.eq.s32.totalorder %s21, 3
    %p207 = por %p205, %p206
    %p209 = scmp.ne.s32.totalorder %s192, %s208
    %p210 = scmp.eq.s32.totalorder %s21, 0
    %p211 = por %p209, %p210
    %s212 = ssub.s32 %s23, %s30
    %p213 = scmp.eq.s32.totalorder %s212, 0
    %s215 = sadd.s32 %s214, 1
    %s216 = scalar_select %p213, %s214, %s215
    %p219 = pneg %p213
    %p220 = scmp.eq.s32.totalorder %s15, 3
    %p221 = por %p219, %p220
    %p222 = scmp.ne.s32.totalorder %s214, %s217
    %p223 = scmp.eq.s32.totalorder %s15, 0
    %p224 = por %p222, %p223
    %p225 = scmp.ne.s32.totalorder %s214, %s217
    %p226 = scmp.eq.s32.totalorder %s20, 3
    %p227 = por %p225, %p226
    %p228 = scmp.ne.s32.totalorder %s217, %s218
    %p229 = scmp.eq.s32.totalorder %s20, 0
    %p230 = por %p228, %p229
    %p231 = scmp.ne.s32.totalorder %s217, %s218
    %p232 = scmp.eq.s32.totalorder %s21, 3
    %p233 = por %p231, %p232
    %p235 = scmp.ne.s32.totalorder %s218, %s234
    %p236 = scmp.eq.s32.totalorder %s21, 0
    %p237 = por %p235, %p236
    %s238 = ssub.s32 %s23, %s30
    %p239 = scmp.eq.s32.totalorder %s238, 0
    %s241 = sadd.s32 %s240, 1
    %s242 = scalar_select %p239, %s240, %s241
    %p245 = pneg %p239
    %p246 = scmp.eq.s32.totalorder %s15, 3
    %p247 = por %p245, %p246
    %p248 = scmp.ne.s32.totalorder %s240, %s243
    %p249 = scmp.eq.s32.totalorder %s15, 0
    %p250 = por %p248, %p249
    %p251 = scmp.ne.s32.totalorder %s240, %s243
    %p252 = scmp.eq.s32.totalorder %s20, 3
    %p253 = por %p251, %p252
    %p254 = scmp.ne.s32.totalorder %s243, %s244
    %p255 = scmp.eq.s32.totalorder %s20, 0
    %p256 = por %p254, %p255
    %p257 = scmp.ne.s32.totalorder %s243, %s244
    %p258 = scmp.eq.s32.totalorder %s21, 3
    %p259 = por %p257, %p258
    %p261 = scmp.ne.s32.totalorder %s244, %s260
    %p262 = scmp.eq.s32.totalorder %s21, 0
    %p263 = por %p261, %p262
    %s264 = ssub.s32 %s22, %s34
    %p265 = scmp.eq.s32.totalorder %s264, 0
    %s267 = sadd.s32 %s266, 1
    %s268 = scalar_select %p265, %s266, %s267
    %p271 = pneg %p265
    %p272 = scmp.eq.s32.totalorder %s15, 3
    %p273 = por %p271, %p272
    %p274 = scmp.ne.s32.totalorder %s266, %s269
    %p275 = scmp.eq.s32.totalorder %s15, 0
    %p276 = por %p274, %p275
    %p277 = scmp.ne.s32.totalorder %s266, %s269
    %p278 = scmp.eq.s32.totalorder %s20, 3
    %p279 = por %p277, %p278
    %p280 = scmp.ne.s32.totalorder %s269, %s270
    %p281 = scmp.eq.s32.totalorder %s20, 0
    %p282 = por %p280, %p281
    %p283 = scmp.ne.s32.totalorder %s269, %s270
    %p284 = scmp.eq.s32.totalorder %s21, 3
    %p285 = por %p283, %p284
    %p287 = scmp.ne.s32.totalorder %s270, %s286
    %p288 = scmp.eq.s32.totalorder %s21, 0
    %p289 = por %p287, %p288
    %p290 = scmp.le.s32.totalorder 1, %s15
    %p291 = scmp.lt.s32.totalorder %s15, 5
    %p292 = pnand %p290, %p291
    %p293 = pneg %p292
    // Predicated region
    $region9: #{detr_decoder_forward.2} parent=5 // pred_check
      _
    $region10: #{detr_decoder_forward.2} parent=5 // pred_check_branch
      %295 = sbr.rel (%p292) target = $region12
    $region11: #{detr_decoder_forward.2} parent=5 // pred_region
      %s296 = ssub.s32 %s15, 1
      // Predicated region
      $region13: #{detr_decoder_forward.2} parent=11 // pred_check
        %p297 = pneg %p48
      $region14: #{detr_decoder_forward.2} parent=11 // pred_check_branch
        %299 = sbr.rel (%p297) target = $region16
      $region15: #{detr_decoder_forward.2} parent=11 // pred_region
        _
      $region16: #{detr_decoder_forward.2} parent=11 // pred_fallthru
        _
    $region12: #{detr_decoder_forward.2} parent=5 // pred_fallthru
      _
    %p300 = scmp.lt.s32.totalorder %s15, 4
    // Predicated region
    $region17: #{detr_decoder_forward.2} parent=5 // pred_check
      %p301 = pneg %p300
    $region18: #{detr_decoder_forward.2} parent=5 // pred_check_branch
      %303 = sbr.rel (%p301) target = $region20
    $region19: #{detr_decoder_forward.2} parent=5 // pred_region
      // Predicated region
      $region21: #{detr_decoder_forward.2} parent=19 // pred_check
        %p304 = pneg %p68
      $region22: #{detr_decoder_forward.2} parent=19 // pred_check_branch
        %306 = sbr.rel (%p304) target = $region24
      $region23: #{detr_decoder_forward.2} parent=19 // pred_region
        %p307 = scmp.lt.s32.totalorder %s22, 1
        %s308 = scalar_select %p307, %s22, 1
        %s309 = smul.addr %s308, 8
        %s310 = smul.addr %s309, 8
        %s311 = scalar_lea.vmem %s1, %s310
      $region24: #{detr_decoder_forward.2} parent=19 // pred_fallthru
        _
      // Predicated region
      $region25: #{detr_decoder_forward.2} parent=19 // pred_check
        %p312 = pneg %p94
      $region26: #{detr_decoder_forward.2} parent=19 // pred_check_branch
        %314 = sbr.rel (%p312) target = $region28
      $region27: #{detr_decoder_forward.2} parent=19 // pred_region
        %p315 = scmp.lt.s32.totalorder %s22, 1
        %s316 = scalar_select %p315, %s22, 1
        %s317 = smul.addr %s316, 8
        %s318 = smul.addr %s317, 8
        %s319 = scalar_lea.vmem %s2, %s318
      $region28: #{detr_decoder_forward.2} parent=19 // pred_fallthru
        _
      // Predicated region
      $region29: #{detr_decoder_forward.2} parent=19 // pred_check
        %p320 = pneg %p120
      $region30: #{detr_decoder_forward.2} parent=19 // pred_check_branch
        %322 = sbr.rel (%p320) target = $region32
      $region31: #{detr_decoder_forward.2} parent=19 // pred_region
        %p323 = scmp.lt.s32.totalorder %s22, 1
        %s324 = scalar_select %p323, %s22, 1
        %s325 = scalar_lea.vmem %s3, %s324
      $region32: #{detr_decoder_forward.2} parent=19 // pred_fallthru
        _
      // Predicated region
      $region33: #{detr_decoder_forward.2} parent=19 // pred_check
        %p326 = pneg %p146
      $region34: #{detr_decoder_forward.2} parent=19 // pred_check_branch
        %328 = sbr.rel (%p326) target = $region36
      $region35: #{detr_decoder_forward.2} parent=19 // pred_region
        %p329 = scmp.lt.s32.totalorder %s23, 1
        %s330 = scalar_select %p329, %s23, 1
        %s331 = smul.addr %s330, 32
        %s332 = smul.addr %s331, 8
        %s333 = scalar_lea.vmem %s4, %s332
      $region36: #{detr_decoder_forward.2} parent=19 // pred_fallthru
        _
      // Predicated region
      $region37: #{detr_decoder_forward.2} parent=19 // pred_check
        %p334 = pneg %p172
      $region38: #{detr_decoder_forward.2} parent=19 // pred_check_branch
        %336 = sbr.rel (%p334) target = $region40
      $region39: #{detr_decoder_forward.2} parent=19 // pred_region
        %p337 = scmp.lt.s32.totalorder %s23, 1
        %s338 = scalar_select %p337, %s23, 1
        %s339 = smul.addr %s338, 4
        %s340 = smul.addr %s339, 8
        %s341 = scalar_lea.vmem %s5, %s340
      $region40: #{detr_decoder_forward.2} parent=19 // pred_fallthru
        _
      // Predicated region
      $region41: #{detr_decoder_forward.2} parent=19 // pred_check
        %p342 = pneg %p198
      $region42: #{detr_decoder_forward.2} parent=19 // pred_check_branch
        %344 = sbr.rel (%p342) target = $region44
      $region43: #{detr_decoder_forward.2} parent=19 // pred_region
        %p345 = scmp.lt.s32.totalorder %s23, 1
        %s346 = scalar_select %p345, %s23, 1
        %s347 = smul.addr %s346, 16
        %s348 = smul.addr %s347, 8
        %s349 = scalar_lea.vmem %s6, %s348
      $region44: #{detr_decoder_forward.2} parent=19 // pred_fallthru
        _
      // Predicated region
      $region45: #{detr_decoder_forward.2} parent=19 // pred_check
        %p350 = pneg %p224
      $region46: #{detr_decoder_forward.2} parent=19 // pred_check_branch
        %352 = sbr.rel (%p350) target = $region48
      $region47: #{detr_decoder_forward.2} parent=19 // pred_region
        %p353 = scmp.lt.s32.totalorder %s23, 1
        %s354 = scalar_select %p353, %s23, 1
        %s355 = smul.addr %s354, 2
        %s356 = smul.addr %s355, 8
        %s357 = scalar_lea.vmem %s7, %s356
      $region48: #{detr_decoder_forward.2} parent=19 // pred_fallthru
        _
      // Predicated region
      $region49: #{detr_decoder_forward.2} parent=19 // pred_check
        %p358 = pneg %p250
      $region50: #{detr_decoder_forward.2} parent=19 // pred_check_branch
        %360 = sbr.rel (%p358) target = $region52
      $region51: #{detr_decoder_forward.2} parent=19 // pred_region
        %p361 = scmp.lt.s32.totalorder %s23, 1
        %s362 = scalar_select %p361, %s23, 1
        %s363 = scalar_lea.vmem %s8, %s362
      $region52: #{detr_decoder_forward.2} parent=19 // pred_fallthru
        _
    $region20: #{detr_decoder_forward.2} parent=5 // pred_fallthru
      _
    %p364 = scmp.le.s32.totalorder 1, %s15
    %p365 = scmp.lt.s32.totalorder %s15, 5
    %p366 = pnand %p364, %p365
    %p367 = pneg %p366
    // Predicated region
    $region53: #{detr_decoder_forward.2} parent=5 // pred_check
      _
    $region54: #{detr_decoder_forward.2} parent=5 // pred_check_branch
      %369 = sbr.rel (%p366) target = $region56
    $region55: #{detr_decoder_forward.2} parent=5 // pred_region
      %s370 = ssub.s32 %s15, 1
      %p371 = pneg %p48
      %p372 = pneg %p45
      %p373 = scmp.lt.s32.totalorder %s24, 1
      %s374 = scalar_select %p373, %s24, 1
      %s375 = smul.addr %s374, 8
      %s376 = smul.addr %s375, 8
      %s377 = scalar_lea.vmem %s1, %s376
      %p378 = pneg %p74
      %p379 = pneg %p71
      %p380 = scmp.lt.s32.totalorder %s24, 1
      %s381 = scalar_select %p380, %s24, 1
      %s382 = smul.addr %s381, 8
      %s383 = smul.addr %s382, 8
      %s384 = scalar_lea.vmem %s2, %s383
      %p385 = pneg %p100
      %p386 = pneg %p97
      %p387 = scmp.lt.s32.totalorder %s24, 1
      %s388 = scalar_select %p387, %s24, 1
      %s389 = scalar_lea.vmem %s3, %s388
      %p390 = pneg %p126
      %p391 = pneg %p123
      %p392 = scmp.lt.s32.totalorder %s25, 1
      %s393 = scalar_select %p392, %s25, 1
      %s394 = smul.addr %s393, 32
      %s395 = smul.addr %s394, 8
      %s396 = scalar_lea.vmem %s4, %s395
      %p397 = pneg %p152
      %p398 = pneg %p149
      %p399 = scmp.lt.s32.totalorder %s25, 1
      %s400 = scalar_select %p399, %s25, 1
      %s401 = smul.addr %s400, 4
      %s402 = smul.addr %s401, 8
      %s403 = scalar_lea.vmem %s5, %s402
      %p404 = pneg %p178
      %p405 = pneg %p175
      %p406 = scmp.lt.s32.totalorder %s25, 1
      %s407 = scalar_select %p406, %s25, 1
      %s408 = smul.addr %s407, 16
      %s409 = smul.addr %s408, 8
      %s410 = scalar_lea.vmem %s6, %s409
      %p411 = pneg %p204
      %p412 = pneg %p201
      %p413 = scmp.lt.s32.totalorder %s25, 1
      %s414 = scalar_select %p413, %s25, 1
      %s415 = smul.addr %s414, 2
      %s416 = smul.addr %s415, 8
      %s417 = scalar_lea.vmem %s7, %s416
      %p418 = pneg %p230
      %p419 = pneg %p227
      %p420 = scmp.lt.s32.totalorder %s25, 1
      %s421 = scalar_select %p420, %s25, 1
      %s422 = scalar_lea.vmem %s8, %s421
      %p423 = pneg %p256
      %p424 = pneg %p253
      %p425 = pneg %p282
      %p426 = pneg %p279
      %p427 = scmp.lt.s32.totalorder %s24, 1
      %s428 = scalar_select %p427, %s24, 1
      %s429 = smul.addr %s428, 2
      %s430 = smul.addr %s429, 8
      %s431 = scalar_lea.vmem %s9, %s430
      %p432 = scmp.lt.s32.totalorder %s24, 1
      %s433 = scalar_select %p432, %s24, 1
      %s434 = smul.addr %s433, 8
      %s435 = smul.addr %s434, 8
      %s436 = scalar_lea.vmem %s1, %s435
      %p437 = scmp.lt.s32.totalorder %s24, 1
      %s438 = scalar_select %p437, %s24, 1
      %s439 = smul.addr %s438, 8
      %s440 = smul.addr %s439, 8
      %s441 = scalar_lea.vmem %s2, %s440
      %p442 = scmp.lt.s32.totalorder %s24, 1
      %s443 = scalar_select %p442, %s24, 1
      %s444 = scalar_lea.vmem %s3, %s443
      %p445 = scmp.lt.s32.totalorder %s25, 1
      %s446 = scalar_select %p445, %s25, 1
      %s447 = smul.addr %s446, 32
      %s448 = smul.addr %s447, 8
      %s449 = scalar_lea.vmem %s4, %s448
      %p450 = scmp.lt.s32.totalorder %s25, 1
      %s451 = scalar_select %p450, %s25, 1
      %s452 = smul.addr %s451, 4
      %s453 = smul.addr %s452, 8
      %s454 = scalar_lea.vmem %s5, %s453
      %p455 = scmp.lt.s32.totalorder %s25, 1
      %s456 = scalar_select %p455, %s25, 1
      %s457 = smul.addr %s456, 16
      %s458 = smul.addr %s457, 8
      %s459 = scalar_lea.vmem %s6, %s458
      %p460 = scmp.lt.s32.totalorder %s25, 1
      %s461 = scalar_select %p460, %s25, 1
      %s462 = smul.addr %s461, 2
      %s463 = smul.addr %s462, 8
      %s464 = scalar_lea.vmem %s7, %s463
      %p465 = scmp.lt.s32.totalorder %s25, 1
      %s466 = scalar_select %p465, %s25, 1
      %s467 = scalar_lea.vmem %s8, %s466
      %p468 = scmp.lt.s32.totalorder %s24, 1
      %s469 = scalar_select %p468, %s24, 1
      %s470 = smul.addr %s469, 2
      %s471 = smul.addr %s470, 8
      %s472 = scalar_lea.vmem %s9, %s471
      %p473 = scmp.eq.s32.totalorder %s25, 0
      // Predicated region
      $region57: #{detr_decoder_forward.2} parent=55 // pred_check
        %p474 = pneg %p473
      $region58: #{detr_decoder_forward.2} parent=55 // pred_check_branch
        %476 = sbr.rel (%p474) target = $region60
      $region59: #{detr_decoder_forward.2} parent=55 // pred_region
        %vm477 = vcmask 261120
        %478 = vst.msk [vmem:[%s472] sm:$0xff] %vm477, 0.0
        %479 = vst.msk [vmem:[%s472 + $0x8] sm:$0xff] %vm477, 0.0
      $region60: #{detr_decoder_forward.2} parent=55 // pred_fallthru
        _
      %v480 = vld [vmem:[%s0] sm:$0xff]
      %v481 = vld [vmem:[%s0 + $0x8] sm:$0xff]
      %v482 = vld [vmem:[%s472] sm:$0xff]
      %v483 = vld [vmem:[%s472 + $0x8] sm:$0xff]
      %v484 = vld [vmem:[%s464] sm:$0xff]
      %v485 = vld [vmem:[%s464 + $0x8] sm:$0xff]
      %v486 = vadd.f32 %v482, %v480
      %v487 = vadd.f32 %v483, %v481
      %v488 = vld [vmem:[%s449] sm:$0xff]
      %v489 = vld [vmem:[%s449 + $0x8] sm:$0xff]
      %v490 = vld [vmem:[%s449 + $0x10] sm:$0xff]
      %v491 = vld [vmem:[%s449 + $0x18] sm:$0xff]
      %s492 = scalar_lea.vmem %s449, 32
      %v493 = vld [vmem:[%s492] sm:$0xff]
      %v494 = vld [vmem:[%s492 + $0x8] sm:$0xff]
      %v495 = vld [vmem:[%s492 + $0x10] sm:$0xff]
      %v496 = vld [vmem:[%s492 + $0x18] sm:$0xff]
      %s497 = scalar_lea.vmem %s449, 64
      %v498 = vld [vmem:[%s497] sm:$0xff]
      %v499 = vld [vmem:[%s497 + $0x8] sm:$0xff]
      %v500 = vld [vmem:[%s497 + $0x10] sm:$0xff]
      %v501 = vld [vmem:[%s497 + $0x18] sm:$0xff]
      %s502 = scalar_lea.vmem %s449, 96
      %v503 = vld [vmem:[%s502] sm:$0xff]
      %v504 = vld [vmem:[%s502 + $0x8] sm:$0xff]
      %v505 = vld [vmem:[%s502 + $0x10] sm:$0xff]
      %v506 = vld [vmem:[%s502 + $0x18] sm:$0xff]
      %v507 = vlaneseq
      %v508 = vshrl.u32 %v507, 7
      %v509 = vsub.s32 0, %v508
      %v510 = vrot.slane %v484, %v509
      %vm511 = vcmask 261120
      %v513 = vsel %vm511, %v486, 0
      %v516 = vsel %vm511, %v487, 0
      %518 = vmatprep.subr.mxu0 0.0
      %519 = vmatpush1.msra.mxu0 %v488
      %520 = vmatprep.subr.mxu0 0.0
      %521 = vmatpush1.msra.mxu0 %v489
      %522 = vmatprep.subr.mxu0 0.0
      %523 = vmatpush1.msra.mxu0 %v490
      %524 = vmatprep.subr.mxu0 0.0
      %525 = vmatpush1.msra.mxu0 %v491
      %526 = vmatprep.subr.mxu0 0.0
      %527 = vmatpush1.msra.mxu0 0.0
      %528 = vmatprep.subr.mxu0 0.0
      %529 = vmatpush1.msra.mxu0 0.0
      %530 = vmatprep.subr.mxu0 0.0
      %531 = vmatpush1.msra.mxu0 0.0
      %532 = vmatprep.subr.mxu0 0.0
      %533 = vmatpush1.msra.mxu0 0.0
      %534 = vmatprep.subr.mxu0 0.0
      %535 = vmatpush1.msra.mxu0 0.0
      %536 = vmatprep.subr.mxu0 0.0
      %537 = vmatpush1.msra.mxu0 0.0
      %538 = vmatprep.subr.mxu0 0.0
      %539 = vmatpush1.msra.mxu0 0.0
      %540 = vmatprep.subr.mxu0 0.0
      %541 = vmatpush1.msra.mxu0 0.0
      %542 = vmatprep.subr.mxu0 0.0
      %543 = vmatpush1.msra.mxu0 0.0
      %544 = vmatprep.subr.mxu0 0.0
      %545 = vmatpush1.msra.mxu0 0.0
      %546 = vmatprep.subr.mxu0 0.0
      %547 = vmatpush1.msra.mxu0 0.0
      %548 = vmatprep.subr.mxu0 0.0
      %549 = vmatpush1.msra.mxu0 0.0
      %550 = vmatprep.subr.mxu0 0.0
      %551 = vmatpush1.msra.mxu0 0.0
      %552 = vmatprep.subr.mxu0 0.0
      %553 = vmatpush1.msra.mxu0 0.0
      %554 = vmatprep.subr.mxu0 0.0
      %555 = vmatpush1.msra.mxu0 0.0
      %556 = vmatprep.subr.mxu0 0.0
      %557 = vmatpush1.msra.mxu0 0.0
      %558 = vmatprep.subr.mxu0 0.0
      %559 = vmatpush1.msra.mxu0 0.0
      %560 = vmatprep.subr.mxu0 0.0
      %561 = vmatpush1.msra.mxu0 0.0
      %562 = vmatprep.subr.mxu0 0.0
      %563 = vmatpush1.msra.mxu0 0.0
      %564 = vmatprep.subr.mxu0 0.0
      %565 = vmatpush1.msra.mxu0 0.0
      %566 = vmatprep.subr.mxu0 0.0
      %567 = vmatpush1.msra.mxu0 0.0
      %568 = vmatprep.subr.mxu0 0.0
      %569 = vmatpush1.msra.mxu0 0.0
      %570 = vmatprep.subr.mxu0 0.0
      %571 = vmatpush1.msra.mxu0 0.0
      %572 = vmatprep.subr.mxu0 0.0
      %573 = vmatpush1.msra.mxu0 0.0
      %574 = vmatprep.subr.mxu0 0.0
      %575 = vmatpush1.msra.mxu0 0.0
      %576 = vmatprep.subr.mxu0 0.0
      %577 = vmatpush1.msra.mxu0 0.0
      %578 = vmatprep.subr.mxu0 0.0
      %579 = vmatpush1.msra.mxu0 0.0
      %580 = vmatprep.subr.mxu0 0.0
      %581 = vmatpush1.msra.mxu0 0.0
      %582 = vmatprep.mubr.f32.mxu0 0.0
      %583 = vmatmul.mubr.f32.gmra.mrb[0].mxu0 %v513
      %v584 = vpop.f32.mrb[0].mxu0
      %v585 = vadd.f32 %v510, %v584
      %v586 = vpop.f32.mrb[0].mxu0
      %587 = vmatprep.mubr.f32.mxu0 0.0
      %588 = vmatmul.mubr.f32.gmra.mrb[0].mxu0 %v516
      %v589 = vpop.f32.mrb[0].mxu0
      %v590 = vadd.f32 %v510, %v589
      %v591 = vpop.f32.mrb[0].mxu0
      %592 = vdwg.mxu0
      %v593 = vlaneseq
      %v594 = vshrl.u32 %v593, 7
      %v595 = vsub.s32 1, %v594
      %v596 = vrot.slane %v484, %v595
      %597 = vmatprep.subr.mxu0 0.0
      %598 = vmatpush1.msra.mxu0 %v493
      %599 = vmatprep.subr.mxu0 0.0
      %600 = vmatpush1.msra.mxu0 %v494
      %601 = vmatprep.subr.mxu0 0.0
      %602 = vmatpush1.msra.mxu0 %v495
      %603 = vmatprep.subr.mxu0 0.0
      %604 = vmatpush1.msra.mxu0 %v496
      %605 = vmatprep.subr.mxu0 0.0
      %606 = vmatpush1.msra.mxu0 0.0
      %607 = vmatprep.subr.mxu0 0.0
      %608 = vmatpush1.msra.mxu0 0.0
      %609 = vmatprep.subr.mxu0 0.0
      %610 = vmatpush1.msra.mxu0 0.0
      %611 = vmatprep.subr.mxu0 0.0
      %612 = vmatpush1.msra.mxu0 0.0
      %613 = vmatprep.subr.mxu0 0.0
      %614 = vmatpush1.msra.mxu0 0.0
      %615 = vmatprep.subr.mxu0 0.0
      %616 = vmatpush1.msra.mxu0 0.0
      %617 = vmatprep.subr.mxu0 0.0
      %618 = vmatpush1.msra.mxu0 0.0
      %619 = vmatprep.subr.mxu0 0.0
      %620 = vmatpush1.msra.mxu0 0.0
      %621 = vmatprep.subr.mxu0 0.0
      %622 = vmatpush1.msra.mxu0 0.0
      %623 = vmatprep.subr.mxu0 0.0
      %624 = vmatpush1.msra.mxu0 0.0
      %625 = vmatprep.subr.mxu0 0.0
      %626 = vmatpush1.msra.mxu0 0.0
      %627 = vmatprep.subr.mxu0 0.0
      %628 = vmatpush1.msra.mxu0 0.0
      %629 = vmatprep.subr.mxu0 0.0
      %630 = vmatpush1.msra.mxu0 0.0
      %631 = vmatprep.subr.mxu0 0.0
      %632 = vmatpush1.msra.mxu0 0.0
      %633 = vmatprep.subr.mxu0 0.0
      %634 = vmatpush1.msra.mxu0 0.0
      %635 = vmatprep.subr.mxu0 0.0
      %636 = vmatpush1.msra.mxu0 0.0
      %637 = vmatprep.subr.mxu0 0.0
      %638 = vmatpush1.msra.mxu0 0.0
      %639 = vmatprep.subr.mxu0 0.0
      %640 = vmatpush1.msra.mxu0 0.0
      %641 = vmatprep.subr.mxu0 0.0
      %642 = vmatpush1.msra.mxu0 0.0
      %643 = vmatprep.subr.mxu0 0.0
      %644 = vmatpush1.msra.mxu0 0.0
      %645 = vmatprep.subr.mxu0 0.0
      %646 = vmatpush1.msra.mxu0 0.0
      %647 = vmatprep.subr.mxu0 0.0
      %648 = vmatpush1.msra.mxu0 0.0
      %649 = vmatprep.subr.mxu0 0.0
      %650 = vmatpush1.msra.mxu0 0.0
      %651 = vmatprep.subr.mxu0 0.0
      %652 = vmatpush1.msra.mxu0 0.0
      %653 = vmatprep.subr.mxu0 0.0
      %654 = vmatpush1.msra.mxu0 0.0
      %655 = vmatprep.subr.mxu0 0.0
      %656 = vmatpush1.msra.mxu0 0.0
      %657 = vmatprep.subr.mxu0 0.0
      %658 = vmatpush1.msra.mxu0 0.0
      %659 = vmatprep.subr.mxu0 0.0
      %660 = vmatpush1.msra.mxu0 0.0
      %661 = vmatprep.mubr.f32.mxu0 0.0
      %662 = vmatmul.mubr.f32.gmra.mrb[0].mxu0 %v513
      %v663 = vpop.f32.mrb[0].mxu0
      %v664 = vadd.f32 %v596, %v663
      %v665 = vpop.f32.mrb[0].mxu0
      %666 = vmatprep.mubr.f32.mxu0 0.0
      %667 = vmatmul.mubr.f32.gmra.mrb[0].mxu0 %v516
      %v668 = vpop.f32.mrb[0].mxu0
      %v669 = vadd.f32 %v596, %v668
      %v670 = vpop.f32.mrb[0].mxu0
      %671 = vdwg.mxu0
      %v672 = vlaneseq
      %v673 = vshrl.u32 %v672, 7
      %v674 = vsub.s32 2, %v673
      %v675 = vrot.slane %v484, %v674
      %v677 = vsel %vm511, %v482, 0
      %v680 = vsel %vm511, %v483, 0
      %682 = vmatprep.subr.mxu0 0.0
      %683 = vmatpush1.msra.mxu0 %v498
      %684 = vmatprep.subr.mxu0 0.0
      %685 = vmatpush1.msra.mxu0 %v499
      %686 = vmatprep.subr.mxu0 0.0
      %687 = vmatpush1.msra.mxu0 %v500
      %688 = vmatprep.subr.mxu0 0.0
      %689 = vmatpush1.msra.mxu0 %v501
      %690 = vmatprep.subr.mxu0 0.0
      %691 = vmatpush1.msra.mxu0 0.0
      %692 = vmatprep.subr.mxu0 0.0
      %693 = vmatpush1.msra.mxu0 0.0
      %694 = vmatprep.subr.mxu0 0.0
      %695 = vmatpush1.msra.mxu0 0.0
      %696 = vmatprep.subr.mxu0 0.0
      %697 = vmatpush1.msra.mxu0 0.0
      %698 = vmatprep.subr.mxu0 0.0
      %699 = vmatpush1.msra.mxu0 0.0
      %700 = vmatprep.subr.mxu0 0.0
      %701 = vmatpush1.msra.mxu0 0.0
      %702 = vmatprep.subr.mxu0 0.0
      %703 = vmatpush1.msra.mxu0 0.0
      %704 = vmatprep.subr.mxu0 0.0
      %705 = vmatpush1.msra.mxu0 0.0
      %706 = vmatprep.subr.mxu0 0.0
      %707 = vmatpush1.msra.mxu0 0.0
      %708 = vmatprep.subr.mxu0 0.0
      %709 = vmatpush1.msra.mxu0 0.0
      %710 = vmatprep.subr.mxu0 0.0
      %711 = vmatpush1.msra.mxu0 0.0
      %712 = vmatprep.subr.mxu0 0.0
      %713 = vmatpush1.msra.mxu0 0.0
      %714 = vmatprep.subr.mxu0 0.0
      %715 = vmatpush1.msra.mxu0 0.0
      %716 = vmatprep.subr.mxu0 0.0
      %717 = vmatpush1.msra.mxu0 0.0
      %718 = vmatprep.subr.mxu0 0.0
      %719 = vmatpush1.msra.mxu0 0.0
      %720 = vmatprep.subr.mxu0 0.0
      %721 = vmatpush1.msra.mxu0 0.0
      %722 = vmatprep.subr.mxu0 0.0
      %723 = vmatpush1.msra.mxu0 0.0
      %724 = vmatprep.subr.mxu0 0.0
      %725 = vmatpush1.msra.mxu0 0.0
      %726 = vmatprep.subr.mxu0 0.0
      %727 = vmatpush1.msra.mxu0 0.0
      %728 = vmatprep.subr.mxu0 0.0
      %729 = vmatpush1.msra.mxu0 0.0
      %730 = vmatprep.subr.mxu0 0.0
      %731 = vmatpush1.msra.mxu0 0.0
      %732 = vmatprep.subr.mxu0 0.0
      %733 = vmatpush1.msra.mxu0 0.0
      %734 = vmatprep.subr.mxu0 0.0
      %735 = vmatpush1.msra.mxu0 0.0
      %736 = vmatprep.subr.mxu0 0.0
      %737 = vmatpush1.msra.mxu0 0.0
      %738 = vmatprep.subr.mxu0 0.0
      %739 = vmatpush1.msra.mxu0 0.0
      %740 = vmatprep.subr.mxu0 0.0
      %741 = vmatpush1.msra.mxu0 0.0
      %742 = vmatprep.subr.mxu0 0.0
      %743 = vmatpush1.msra.mxu0 0.0
      %744 = vmatprep.subr.mxu0 0.0
      %745 = vmatpush1.msra.mxu0 0.0
      %746 = vmatprep.mubr.f32.mxu0 0.0
      %747 = vmatmul.mubr.f32.gmra.mrb[0].mxu0 %v677
      %v748 = vpop.f32.mrb[0].mxu0
      %v749 = vadd.f32 %v675, %v748
      %v750 = vpop.f32.mrb[0].mxu0
      %751 = vmatprep.mubr.f32.mxu0 0.0
      %752 = vmatmul.mubr.f32.gmra.mrb[0].mxu0 %v680
      %v753 = vpop.f32.mrb[0].mxu0
      %v754 = vadd.f32 %v675, %v753
      %v755 = vpop.f32.mrb[0].mxu0
      %756 = vdwg.mxu0
      %v757 = vlaneseq
      %v758 = vshrl.u32 %v757, 7
      %v759 = vsub.s32 3, %v758
      %v760 = vrot.slane %v484, %v759
      %v761 = vadd.f32 %v760, 0.0
      %vm762 = vcmask 64512
      %v764 = vsel %vm762, %v585, 0
      %v767 = vsel %vm762, %v590, 0
      %v770 = vsel %vm762, %v664, 0
      %v773 = vsel %vm762, %v669, 0
      %775 = vmatprep.subr.mxu0 0.0
      %776 = vmatpush1.xpose.msra.mxu0 %v770
      %777 = vmatprep.subr.mxu0 0.0
      %778 = vmatpush1.xpose.msra.mxu0 %v773
      %779 = vmatprep.subr.mxu0 0.0
      %780 = vmatpush1.xpose.msra.mxu0 0.0
      %781 = vmatprep.subr.mxu0 0.0
      %782 = vmatpush1.xpose.msra.mxu0 0.0
      %783 = vmatprep.subr.mxu0 0.0
      %784 = vmatpush1.xpose.msra.mxu0 0.0
      %785 = vmatprep.subr.mxu0 0.0
      %786 = vmatpush1.xpose.msra.mxu0 0.0
      %787 = vmatprep.subr.mxu0 0.0
      %788 = vmatpush1.xpose.msra.mxu0 0.0
      %789 = vmatprep.subr.mxu0 0.0
      %790 = vmatpush1.xpose.msra.mxu0 0.0
      %791 = vmatprep.subr.mxu0 0.0
      %792 = vmatpush1.xpose.msra.mxu0 0.0
      %793 = vmatprep.subr.mxu0 0.0
      %794 = vmatpush1.xpose.msra.mxu0 0.0
      %795 = vmatprep.subr.mxu0 0.0
      %796 = vmatpush1.xpose.msra.mxu0 0.0
      %797 = vmatprep.subr.mxu0 0.0
      %798 = vmatpush1.xpose.msra.mxu0 0.0
      %799 = vmatprep.subr.mxu0 0.0
      %800 = vmatpush1.xpose.msra.mxu0 0.0
      %801 = vmatprep.subr.mxu0 0.0
      %802 = vmatpush1.xpose.msra.mxu0 0.0
      %803 = vmatprep.subr.mxu0 0.0
      %804 = vmatpush1.xpose.msra.mxu0 0.0
      %805 = vmatprep.subr.mxu0 0.0
      %806 = vmatpush1.xpose.msra.mxu0 0.0
      %807 = vmatprep.subr.mxu0 0.0
      %808 = vmatpush1.xpose.msra.mxu0 0.0
      %809 = vmatprep.subr.mxu0 0.0
      %810 = vmatpush1.xpose.msra.mxu0 0.0
      %811 = vmatprep.subr.mxu0 0.0
      %812 = vmatpush1.xpose.msra.mxu0 0.0
      %813 = vmatprep.subr.mxu0 0.0
      %814 = vmatpush1.xpose.msra.mxu0 0.0
      %815 = vmatprep.subr.mxu0 0.0
      %816 = vmatpush1.xpose.msra.mxu0 0.0
      %817 = vmatprep.subr.mxu0 0.0
      %818 = vmatpush1.xpose.msra.mxu0 0.0
      %819 = vmatprep.subr.mxu0 0.0
      %820 = vmatpush1.xpose.msra.mxu0 0.0
      %821 = vmatprep.subr.mxu0 0.0
      %822 = vmatpush1.xpose.msra.mxu0 0.0
      %823 = vmatprep.subr.mxu0 0.0
      %824 = vmatpush1.xpose.msra.mxu0 0.0
      %825 = vmatprep.subr.mxu0 0.0
      %826 = vmatpush1.xpose.msra.mxu0 0.0
      %827 = vmatprep.subr.mxu0 0.0
      %828 = vmatpush1.xpose.msra.mxu0 0.0
      %829 = vmatprep.subr.mxu0 0.0
      %830 = vmatpush1.xpose.msra.mxu0 0.0
      %831 = vmatprep.subr.mxu0 0.0
      %832 = vmatpush1.xpose.msra.mxu0 0.0
      %833 = vmatprep.subr.mxu0 0.0
      %834 = vmatpush1.xpose.msra.mxu0 0.0
      %835 = vmatprep.subr.mxu0 0.0
      %836 = vmatpush1.xpose.msra.mxu0 0.0
      %837 = vmatprep.subr.mxu0 0.0
      %838 = vmatpush1.xpose.msra.mxu0 0.0
      %839 = vmatprep.mubr.f32.mxu0 0.0
      %840 = vmatmul.mubr.f32.gmra.mrb[0].mxu0 %v764
      %v841 = vpop.f32.mrb[0].mxu0
      %v842 = vadd.f32 0.0, %v841
      %v843 = vpop.f32.mrb[0].mxu0
      %844 = vmatprep.mubr.f32.mxu0 0.0
      %845 = vmatmul.mubr.f32.gmra.mrb[0].mxu0 %v767
      %v846 = vpop.f32.mrb[0].mxu0
      %v847 = vadd.f32 0.0, %v846
      %v848 = vpop.f32.mrb[0].mxu0
      %849 = vdwg.mxu0
      %v850 = vmul.f32 %v842, 0.35355338
      %v851 = vmul.f32 %v847, 0.35355338
      %vm852 = vcmask 130048
      %v853 = vsel %vm852, %v850, -inf
      %854 = vmax.xlane.f32.xlu0 %v853
      %v855 = vpop.xlane.xlu0 %854
      %v856 = vsel %vm852, %v851, -inf
      %857 = vmax.xlane.f32.xlu0 %v856
      %v858 = vpop.xlane.xlu0 %857
      %v859 = vsub.f32 %v850, %v855
      %v860 = vsub.f32 %v851, %v858
      %v861 = vmul.f32 %v859, 1.442695
      %v862 = vpow.pop %v861
      %v863 = vmul.f32 %v860, 1.442695
      %v864 = vpow.pop %v863
      %v865 = vsel %vm852, %v862, 0.0
      %866 = vadd.xlane.f32.xlu0 %v865
      %v867 = vpop.xlane.xlu0 %866
      %v868 = vsel %vm852, %v864, 0.0
      %869 = vadd.xlane.f32.xlu0 %v868
      %v870 = vpop.xlane.xlu0 %869
      %v871 = vrcp.pop %v867
      %v872 = vrcp.pop %v870
      %v873 = vmul.f32 %v862, %v871
      %v874 = vmul.f32 %v864, %v872
      %v876 = vsel %vm852, %v873, 0
      %v879 = vsel %vm852, %v874, 0
      %881 = vmatprep.subr.mxu0 0.0
      %882 = vmatpush1.msra.mxu0 %v749
      %883 = vmatprep.subr.mxu0 0.0
      %884 = vmatpush1.msra.mxu0 %v754
      %885 = vmatprep.subr.mxu0 0.0
      %886 = vmatpush1.msra.mxu0 0.0
      %887 = vmatprep.subr.mxu0 0.0
      %888 = vmatpush1.msra.mxu0 0.0
      %889 = vmatprep.subr.mxu0 0.0
      %890 = vmatpush1.msra.mxu0 0.0
      %891 = vmatprep.subr.mxu0 0.0
      %892 = vmatpush1.msra.mxu0 0.0
      %893 = vmatprep.subr.mxu0 0.0
      %894 = vmatpush1.msra.mxu0 0.0
      %895 = vmatprep.subr.mxu0 0.0
      %896 = vmatpush1.msra.mxu0 0.0
      %897 = vmatprep.subr.mxu0 0.0
      %898 = vmatpush1.msra.mxu0 0.0
      %899 = vmatprep.subr.mxu0 0.0
      %900 = vmatpush1.msra.mxu0 0.0
      %901 = vmatprep.subr.mxu0 0.0
      %902 = vmatpush1.msra.mxu0 0.0
      %903 = vmatprep.subr.mxu0 0.0
      %904 = vmatpush1.msra.mxu0 0.0
      %905 = vmatprep.subr.mxu0 0.0
      %906 = vmatpush1.msra.mxu0 0.0
      %907 = vmatprep.subr.mxu0 0.0
      %908 = vmatpush1.msra.mxu0 0.0
      %909 = vmatprep.subr.mxu0 0.0
      %910 = vmatpush1.msra.mxu0 0.0
      %911 = vmatprep.subr.mxu0 0.0
      %912 = vmatpush1.msra.mxu0 0.0
      %913 = vmatprep.subr.mxu0 0.0
      %914 = vmatpush1.msra.mxu0 0.0
      %915 = vmatprep.subr.mxu0 0.0
      %916 = vmatpush1.msra.mxu0 0.0
      %917 = vmatprep.subr.mxu0 0.0
      %918 = vmatpush1.msra.mxu0 0.0
      %919 = vmatprep.subr.mxu0 0.0
      %920 = vmatpush1.msra.mxu0 0.0
      %921 = vmatprep.subr.mxu0 0.0
      %922 = vmatpush1.msra.mxu0 0.0
      %923 = vmatprep.subr.mxu0 0.0
      %924 = vmatpush1.msra.mxu0 0.0
      %925 = vmatprep.subr.mxu0 0.0
      %926 = vmatpush1.msra.mxu0 0.0
      %927 = vmatprep.subr.mxu0 0.0
      %928 = vmatpush1.msra.mxu0 0.0
      %929 = vmatprep.subr.mxu0 0.0
      %930 = vmatpush1.msra.mxu0 0.0
      %931 = vmatprep.subr.mxu0 0.0
      %932 = vmatpush1.msra.mxu0 0.0
      %933 = vmatprep.subr.mxu0 0.0
      %934 = vmatpush1.msra.mxu0 0.0
      %935 = vmatprep.subr.mxu0 0.0
      %936 = vmatpush1.msra.mxu0 0.0
      %937 = vmatprep.subr.mxu0 0.0
      %938 = vmatpush1.msra.mxu0 0.0
      %939 = vmatprep.subr.mxu0 0.0
      %940 = vmatpush1.msra.mxu0 0.0
      %941 = vmatprep.subr.mxu0 0.0
      %942 = vmatpush1.msra.mxu0 0.0
      %943 = vmatprep.subr.mxu0 0.0
      %944 = vmatpush1.msra.mxu0 0.0
      %945 = vmatprep.mubr.f32.mxu0 0.0
      %946 = vmatmul.mubr.f32.gmra.mrb[0].mxu0 %v876
      %v947 = vpop.f32.mrb[0].mxu0
      %v948 = vadd.f32 0.0, %v947
      %v949 = vpop.f32.mrb[0].mxu0
      %950 = vmatprep.mubr.f32.mxu0 0.0
      %951 = vmatmul.mubr.f32.gmra.mrb[0].mxu0 %v879
      %v952 = vpop.f32.mrb[0].mxu0
      %v953 = vadd.f32 0.0, %v952
      %v954 = vpop.f32.mrb[0].mxu0
      %955 = vdwg.mxu0
      %v957 = vsel %vm762, %v948, 0
      %v960 = vsel %vm762, %v953, 0
      %962 = vmatprep.subr.mxu0 0.0
      %963 = vmatpush1.msra.mxu0 %v503
      %964 = vmatprep.subr.mxu0 0.0
      %965 = vmatpush1.msra.mxu0 0.0
      %966 = vmatprep.subr.mxu0 0.0
      %967 = vmatpush1.msra.mxu0 0.0
      %968 = vmatprep.subr.mxu0 0.0
      %969 = vmatpush1.msra.mxu0 0.0
      %970 = vmatprep.subr.mxu0 0.0
      %971 = vmatpush1.msra.mxu0 0.0
      %972 = vmatprep.subr.mxu0 0.0
      %973 = vmatpush1.msra.mxu0 0.0
      %974 = vmatprep.subr.mxu0 0.0
      %975 = vmatpush1.msra.mxu0 0.0
      %976 = vmatprep.subr.mxu0 0.0
      %977 = vmatpush1.msra.mxu0 0.0
      %978 = vmatprep.subr.mxu0 0.0
      %979 = vmatpush1.msra.mxu0 0.0
      %980 = vmatprep.subr.mxu0 0.0
      %981 = vmatpush1.msra.mxu0 0.0
      %982 = vmatprep.subr.mxu0 0.0
      %983 = vmatpush1.msra.mxu0 0.0
      %984 = vmatprep.subr.mxu0 0.0
      %985 = vmatpush1.msra.mxu0 0.0
      %986 = vmatprep.subr.mxu0 0.0
      %987 = vmatpush1.msra.mxu0 0.0
      %988 = vmatprep.subr.mxu0 0.0
      %989 = vmatpush1.msra.mxu0 0.0
      %990 = vmatprep.subr.mxu0 0.0
      %991 = vmatpush1.msra.mxu0 0.0
      %992 = vmatprep.subr.mxu0 0.0
      %993 = vmatpush1.msra.mxu0 0.0
      %994 = vmatprep.subr.mxu0 0.0
      %995 = vmatpush1.msra.mxu0 0.0
      %996 = vmatprep.subr.mxu0 0.0
      %997 = vmatpush1.msra.mxu0 0.0
      %998 = vmatprep.subr.mxu0 0.0
      %999 = vmatpush1.msra.mxu0 0.0
      %1000 = vmatprep.subr.mxu0 0.0
      %1001 = vmatpush1.msra.mxu0 0.0
      %1002 = vmatprep.subr.mxu0 0.0
      %1003 = vmatpush1.msra.mxu0 0.0
      %1004 = vmatprep.subr.mxu0 0.0
      %1005 = vmatpush1.msra.mxu0 0.0
      %1006 = vmatprep.subr.mxu0 0.0
      %1007 = vmatpush1.msra.mxu0 0.0
      %1008 = vmatprep.subr.mxu0 0.0
      %1009 = vmatpush1.msra.mxu0 0.0
      %1010 = vmatprep.subr.mxu0 0.0
      %1011 = vmatpush1.msra.mxu0 0.0
      %1012 = vmatprep.subr.mxu0 0.0
      %1013 = vmatpush1.msra.mxu0 0.0
      %1014 = vmatprep.subr.mxu0 0.0
      %1015 = vmatpush1.msra.mxu0 0.0
      %1016 = vmatprep.subr.mxu0 0.0
      %1017 = vmatpush1.msra.mxu0 0.0
      %1018 = vmatprep.subr.mxu0 0.0
      %1019 = vmatpush1.msra.mxu0 0.0
      %1020 = vmatprep.subr.mxu0 0.0
      %1021 = vmatpush1.msra.mxu0 0.0
      %1022 = vmatprep.subr.mxu0 0.0
      %1023 = vmatpush1.msra.mxu0 0.0
      %1024 = vmatprep.subr.mxu0 0.0
      %1025 = vmatpush1.msra.mxu0 0.0
      %1026 = vmatprep.mubr.f32.mxu0 0.0
      %1027 = vmatmul.mubr.f32.gmra.mrb[0].mxu0 %v957
      %v1028 = vpop.f32.mrb[0].mxu0
      %v1029 = vadd.f32 0.0, %v1028
      %v1030 = vpop.f32.mrb[0].mxu0
      %1031 = vmatprep.mubr.f32.mxu0 0.0
      %1032 = vmatmul.mubr.f32.gmra.mrb[0].mxu0 %v960
      %v1033 = vpop.f32.mrb[0].mxu0
      %v1034 = vadd.f32 0.0, %v1033
      %v1035 = vpop.f32.mrb[0].mxu0
      %1036 = vdwg.mxu0
      %v1037 = vadd.f32 %v761, %v1029
      %v1038 = vadd.f32 %v761, %v1034
      %1039 = vrot.lane.b32.xlu0 %v585, 120
      %v1040 = vpop.permute.xlu0 %1039
      %1041 = vrot.lane.b32.xlu0 %v590, 120
      %v1042 = vpop.permute.xlu0 %1041
      %1043 = vrot.lane.b32.xlu0 %v664, 120
      %v1044 = vpop.permute.xlu0 %1043
      %1045 = vrot.lane.b32.xlu0 %v669, 120
      %v1046 = vpop.permute.xlu0 %1045
      %v1047 = vsel %vm762, %v1040, 0
      %v1049 = vsel %vm762, %v1042, 0
      %v1051 = vsel %vm762, %v1044, 0
      %v1053 = vsel %vm762, %v1046, 0
      %1055 = vmatprep.subr.mxu0 0.0
      %1056 = vmatpush1.xpose.msra.mxu0 %v1051
      %1057 = vmatprep.subr.mxu0 0.0
      %1058 = vmatpush1.xpose.msra.mxu0 %v1053
      %1059 = vmatprep.subr.mxu0 0.0
      %1060 = vmatpush1.xpose.msra.mxu0 0.0
      %1061 = vmatprep.subr.mxu0 0.0
      %1062 = vmatpush1.xpose.msra.mxu0 0.0
      %1063 = vmatprep.subr.mxu0 0.0
      %1064 = vmatpush1.xpose.msra.mxu0 0.0
      %1065 = vmatprep.subr.mxu0 0.0
      %1066 = vmatpush1.xpose.msra.mxu0 0.0
      %1067 = vmatprep.subr.mxu0 0.0
      %1068 = vmatpush1.xpose.msra.mxu0 0.0
      %1069 = vmatprep.subr.mxu0 0.0
      %1070 = vmatpush1.xpose.msra.mxu0 0.0
      %1071 = vmatprep.subr.mxu0 0.0
      %1072 = vmatpush1.xpose.msra.mxu0 0.0
      %1073 = vmatprep.subr.mxu0 0.0
      %1074 = vmatpush1.xpose.msra.mxu0 0.0
      %1075 = vmatprep.subr.mxu0 0.0
      %1076 = vmatpush1.xpose.msra.mxu0 0.0
      %1077 = vmatprep.subr.mxu0 0.0
      %1078 = vmatpush1.xpose.msra.mxu0 0.0
      %1079 = vmatprep.subr.mxu0 0.0
      %1080 = vmatpush1.xpose.msra.mxu0 0.0
      %1081 = vmatprep.subr.mxu0 0.0
      %1082 = vmatpush1.xpose.msra.mxu0 0.0
      %1083 = vmatprep.subr.mxu0 0.0
      %1084 = vmatpush1.xpose.msra.mxu0 0.0
      %1085 = vmatprep.subr.mxu0 0.0
      %1086 = vmatpush1.xpose.msra.mxu0 0.0
      %1087 = vmatprep.subr.mxu0 0.0
      %1088 = vmatpush1.xpose.msra.mxu0 0.0
      %1089 = vmatprep.subr.mxu0 0.0
      %1090 = vmatpush1.xpose.msra.mxu0 0.0
      %1091 = vmatprep.subr.mxu0 0.0
      %1092 = vmatpush1.xpose.msra.mxu0 0.0
      %1093 = vmatprep.subr.mxu0 0.0
      %1094 = vmatpush1.xpose.msra.mxu0 0.0
      %1095 = vmatprep.subr.mxu0 0.0
      %1096 = vmatpush1.xpose.msra.mxu0 0.0
      %1097 = vmatprep.subr.mxu0 0.0
      %1098 = vmatpush1.xpose.msra.mxu0 0.0
      %1099 = vmatprep.subr.mxu0 0.0
      %1100 = vmatpush1.xpose.msra.mxu0 0.0
      %1101 = vmatprep.subr.mxu0 0.0
      %1102 = vmatpush1.xpose.msra.mxu0 0.0
      %1103 = vmatprep.subr.mxu0 0.0
      %1104 = vmatpush1.xpose.msra.mxu0 0.0
      %1105 = vmatprep.subr.mxu0 0.0
      %1106 = vmatpush1.xpose.msra.mxu0 0.0
      %1107 = vmatprep.subr.mxu0 0.0
      %1108 = vmatpush1.xpose.msra.mxu0 0.0
      %1109 = vmatprep.subr.mxu0 0.0
      %1110 = vmatpush1.xpose.msra.mxu0 0.0
      %1111 = vmatprep.subr.mxu0 0.0
      %1112 = vmatpush1.xpose.msra.mxu0 0.0
      %1113 = vmatprep.subr.mxu0 0.0
      %1114 = vmatpush1.xpose.msra.mxu0 0.0
      %1115 = vmatprep.subr.mxu0 0.0
      %1116 = vmatpush1.xpose.msra.mxu0 0.0
      %1117 = vmatprep.subr.mxu0 0.0
      %1118 = vmatpush1.xpose.msra.mxu0 0.0
      %1119 = vmatprep.mubr.f32.mxu0 0.0
      %1120 = vmatmul.mubr.f32.gmra.mrb[0].mxu0 %v1047
      %v1121 = vpop.f32.mrb[0].mxu0
      %v1122 = vadd.f32 0.0, %v1121
      %v1123 = vpop.f32.mrb[0].mxu0
      %1124 = vmatprep.mubr.f32.mxu0 0.0
      %1125 = vmatmul.mubr.f32.gmra.mrb[0].mxu0 %v1049
      %v1126 = vpop.f32.mrb[0].mxu0
      %v1127 = vadd.f32 0.0, %v1126
      %v1128 = vpop.f32.mrb[0].mxu0
      %1129 = vdwg.mxu0
      %v1130 = vmul.f32 %v1122, 0.35355338
      %v1131 = vmul.f32 %v1127, 0.35355338
      %v1132 = vsel %vm852, %v1130, -inf
      %1133 = vmax.xlane.f32.xlu0 %v1132
      %v1134 = vpop.xlane.xlu0 %1133
      %v1135 = vsel %vm852, %v1131, -inf
      %1136 = vmax.xlane.f32.xlu0 %v1135
      %v1137 = vpop.xlane.xlu0 %1136
      %v1138 = vsub.f32 %v1130, %v1134
      %v1139 = vsub.f32 %v1131, %v1137
      %v1140 = vmul.f32 %v1138, 1.442695
      %v1141 = vpow.pop %v1140
      %v1142 = vmul.f32 %v1139, 1.442695
      %v1143 = vpow.pop %v1142
      %v1144 = vsel %vm852, %v1141, 0.0
      %1145 = vadd.xlane.f32.xlu0 %v1144
      %v1146 = vpop.xlane.xlu0 %1145
      %v1147 = vsel %vm852, %v1143, 0.0
      %1148 = vadd.xlane.f32.xlu0 %v1147
      %v1149 = vpop.xlane.xlu0 %1148
      %v1150 = vrcp.pop %v1146
      %v1151 = vrcp.pop %v1149
      %v1152 = vmul.f32 %v1141, %v1150
      %v1153 = vmul.f32 %v1143, %v1151
      %1156 = vrot.lane.b32.xlu0 %v749, 120
      %v1157 = vpop.permute.xlu0 %1156
      %1158 = vrot.lane.b32.xlu0 %v754, 120
      %v1159 = vpop.permute.xlu0 %1158
      %v1163 = vsel %vm852, %v1152, 0
      %v1166 = vsel %vm852, %v1153, 0
      %1168 = vmatprep.subr.mxu0 0.0
      %1169 = vmatpush1.msra.mxu0 %v1157
      %1170 = vmatprep.subr.mxu0 0.0
      %1171 = vmatpush1.msra.mxu0 %v1159
      %1172 = vmatprep.subr.mxu0 0.0
      %1173 = vmatpush1.msra.mxu0 0.0
      %1174 = vmatprep.subr.mxu0 0.0
      %1175 = vmatpush1.msra.mxu0 0.0
      %1176 = vmatprep.subr.mxu0 0.0
      %1177 = vmatpush1.msra.mxu0 0.0
      %1178 = vmatprep.subr.mxu0 0.0
      %1179 = vmatpush1.msra.mxu0 0.0
      %1180 = vmatprep.subr.mxu0 0.0
      %1181 = vmatpush1.msra.mxu0 0.0
      %1182 = vmatprep.subr.mxu0 0.0
      %1183 = vmatpush1.msra.mxu0 0.0
      %1184 = vmatprep.subr.mxu0 0.0
      %1185 = vmatpush1.msra.mxu0 0.0
      %1186 = vmatprep.subr.mxu0 0.0
      %1187 = vmatpush1.msra.mxu0 0.0
      %1188 = vmatprep.subr.mxu0 0.0
      %1189 = vmatpush1.msra.mxu0 0.0
      %1190 = vmatprep.subr.mxu0 0.0
      %1191 = vmatpush1.msra.mxu0 0.0
      %1192 = vmatprep.subr.mxu0 0.0
      %1193 = vmatpush1.msra.mxu0 0.0
      %1194 = vmatprep.subr.mxu0 0.0
      %1195 = vmatpush1.msra.mxu0 0.0
      %1196 = vmatprep.subr.mxu0 0.0
      %1197 = vmatpush1.msra.mxu0 0.0
      %1198 = vmatprep.subr.mxu0 0.0
      %1199 = vmatpush1.msra.mxu0 0.0
      %1200 = vmatprep.subr.mxu0 0.0
      %1201 = vmatpush1.msra.mxu0 0.0
      %1202 = vmatprep.subr.mxu0 0.0
      %1203 = vmatpush1.msra.mxu0 0.0
      %1204 = vmatprep.subr.mxu0 0.0
      %1205 = vmatpush1.msra.mxu0 0.0
      %1206 = vmatprep.subr.mxu0 0.0
      %1207 = vmatpush1.msra.mxu0 0.0
      %1208 = vmatprep.subr.mxu0 0.0
      %1209 = vmatpush1.msra.mxu0 0.0
      %1210 = vmatprep.subr.mxu0 0.0
      %1211 = vmatpush1.msra.mxu0 0.0
      %1212 = vmatprep.subr.mxu0 0.0
      %1213 = vmatpush1.msra.mxu0 0.0
      %1214 = vmatprep.subr.mxu0 0.0
      %1215 = vmatpush1.msra.mxu0 0.0
      %1216 = vmatprep.subr.mxu0 0.0
      %1217 = vmatpush1.msra.mxu0 0.0
      %1218 = vmatprep.subr.mxu0 0.0
      %1219 = vmatpush1.msra.mxu0 0.0
      %1220 = vmatprep.subr.mxu0 0.0
      %1221 = vmatpush1.msra.mxu0 0.0
      %1222 = vmatprep.subr.mxu0 0.0
      %1223 = vmatpush1.msra.mxu0 0.0
      %1224 = vmatprep.subr.mxu0 0.0
      %1225 = vmatpush1.msra.mxu0 0.0
      %1226 = vmatprep.subr.mxu0 0.0
      %1227 = vmatpush1.msra.mxu0 0.0
      %1228 = vmatprep.subr.mxu0 0.0
      %1229 = vmatpush1.msra.mxu0 0.0
      %1230 = vmatprep.subr.mxu0 0.0
      %1231 = vmatpush1.msra.mxu0 0.0
      %1232 = vmatprep.mubr.f32.mxu0 0.0
      %1233 = vmatmul.mubr.f32.gmra.mrb[0].mxu0 %v1163
      %v1234 = vpop.f32.mrb[0].mxu0
      %v1235 = vadd.f32 0.0, %v1234
      %v1236 = vpop.f32.mrb[0].mxu0
      %1237 = vmatprep.mubr.f32.mxu0 0.0
      %1238 = vmatmul.mubr.f32.gmra.mrb[0].mxu0 %v1166
      %v1239 = vpop.f32.mrb[0].mxu0
      %v1240 = vadd.f32 0.0, %v1239
      %v1241 = vpop.f32.mrb[0].mxu0
      %1242 = vdwg.mxu0
      %v1244 = vsel %vm762, %v1235, 0
      %v1247 = vsel %vm762, %v1240, 0
      %1249 = vmatprep.subr.mxu0 0.0
      %1250 = vmatpush1.msra.mxu0 %v504
      %1251 = vmatprep.subr.mxu0 0.0
      %1252 = vmatpush1.msra.mxu0 0.0
      %1253 = vmatprep.subr.mxu0 0.0
      %1254 = vmatpush1.msra.mxu0 0.0
      %1255 = vmatprep.subr.mxu0 0.0
      %1256 = vmatpush1.msra.mxu0 0.0
      %1257 = vmatprep.subr.mxu0 0.0
      %1258 = vmatpush1.msra.mxu0 0.0
      %1259 = vmatprep.subr.mxu0 0.0
      %1260 = vmatpush1.msra.mxu0 0.0
      %1261 = vmatprep.subr.mxu0 0.0
      %1262 = vmatpush1.msra.mxu0 0.0
      %1263 = vmatprep.subr.mxu0 0.0
      %1264 = vmatpush1.msra.mxu0 0.0
      %1265 = vmatprep.subr.mxu0 0.0
      %1266 = vmatpush1.msra.mxu0 0.0
      %1267 = vmatprep.subr.mxu0 0.0
      %1268 = vmatpush1.msra.mxu0 0.0
      %1269 = vmatprep.subr.mxu0 0.0
      %1270 = vmatpush1.msra.mxu0 0.0
      %1271 = vmatprep.subr.mxu0 0.0
      %1272 = vmatpush1.msra.mxu0 0.0
      %1273 = vmatprep.subr.mxu0 0.0
      %1274 = vmatpush1.msra.mxu0 0.0
      %1275 = vmatprep.subr.mxu0 0.0
      %1276 = vmatpush1.msra.mxu0 0.0
      %1277 = vmatprep.subr.mxu0 0.0
      %1278 = vmatpush1.msra.mxu0 0.0
      %1279 = vmatprep.subr.mxu0 0.0
      %1280 = vmatpush1.msra.mxu0 0.0
      %1281 = vmatprep.subr.mxu0 0.0
      %1282 = vmatpush1.msra.mxu0 0.0
      %1283 = vmatprep.subr.mxu0 0.0
      %1284 = vmatpush1.msra.mxu0 0.0
      %1285 = vmatprep.subr.mxu0 0.0
      %1286 = vmatpush1.msra.mxu0 0.0
      %1287 = vmatprep.subr.mxu0 0.0
      %1288 = vmatpush1.msra.mxu0 0.0
      %1289 = vmatprep.subr.mxu0 0.0
      %1290 = vmatpush1.msra.mxu0 0.0
      %1291 = vmatprep.subr.mxu0 0.0
      %1292 = vmatpush1.msra.mxu0 0.0
      %1293 = vmatprep.subr.mxu0 0.0
      %1294 = vmatpush1.msra.mxu0 0.0
      %1295 = vmatprep.subr.mxu0 0.0
      %1296 = vmatpush1.msra.mxu0 0.0
      %1297 = vmatprep.subr.mxu0 0.0
      %1298 = vmatpush1.msra.mxu0 0.0
      %1299 = vmatprep.subr.mxu0 0.0
      %1300 = vmatpush1.msra.mxu0 0.0
      %1301 = vmatprep.subr.mxu0 0.0
      %1302 = vmatpush1.msra.mxu0 0.0
      %1303 = vmatprep.subr.mxu0 0.0
      %1304 = vmatpush1.msra.mxu0 0.0
      %1305 = vmatprep.subr.mxu0 0.0
      %1306 = vmatpush1.msra.mxu0 0.0
      %1307 = vmatprep.subr.mxu0 0.0
      %1308 = vmatpush1.msra.mxu0 0.0
      %1309 = vmatprep.subr.mxu0 0.0
      %1310 = vmatpush1.msra.mxu0 0.0
      %1311 = vmatprep.subr.mxu0 0.0
      %1312 = vmatpush1.msra.mxu0 0.0
      %1313 = vmatprep.mubr.f32.mxu0 0.0
      %1314 = vmatmul.mubr.f32.gmra.mrb[0].mxu0 %v1244
      %v1315 = vpop.f32.mrb[0].mxu0
      %v1316 = vadd.f32 0.0, %v1315
      %v1317 = vpop.f32.mrb[0].mxu0
      %1318 = vmatprep.mubr.f32.mxu0 0.0
      %1319 = vmatmul.mubr.f32.gmra.mrb[0].mxu0 %v1247
      %v1320 = vpop.f32.mrb[0].mxu0
      %v1321 = vadd.f32 0.0, %v1320
      %v1322 = vpop.f32.mrb[0].mxu0
      %1323 = vdwg.mxu0
      %v1324 = vadd.f32 %v1037, %v1316
      %v1325 = vadd.f32 %v1038, %v1321
      %1326 = vrot.lane.b32.xlu0 %v585, 112
      %v1327 = vpop.permute.xlu0 %1326
      %1328 = vrot.lane.b32.xlu0 %v590, 112
      %v1329 = vpop.permute.xlu0 %1328
      %1330 = vrot.lane.b32.xlu0 %v664, 112
      %v1331 = vpop.permute.xlu0 %1330
      %1332 = vrot.lane.b32.xlu0 %v669, 112
      %v1333 = vpop.permute.xlu0 %1332
      %v1334 = vsel %vm762, %v1327, 0
      %v1336 = vsel %vm762, %v1329, 0
      %v1338 = vsel %vm762, %v1331, 0
      %v1340 = vsel %vm762, %v1333, 0
      %1342 = vmatprep.subr.mxu0 0.0
      %1343 = vmatpush1.xpose.msra.mxu0 %v1338
      %1344 = vmatprep.subr.mxu0 0.0
      %1345 = vmatpush1.xpose.msra.mxu0 %v1340
      %1346 = vmatprep.subr.mxu0 0.0
      %1347 = vmatpush1.xpose.msra.mxu0 0.0
      %1348 = vmatprep.subr.mxu0 0.0
      %1349 = vmatpush1.xpose.msra.mxu0 0.0
      %1350 = vmatprep.subr.mxu0 0.0
      %1351 = vmatpush1.xpose.msra.mxu0 0.0
      %1352 = vmatprep.subr.mxu0 0.0
      %1353 = vmatpush1.xpose.msra.mxu0 0.0
      %1354 = vmatprep.subr.mxu0 0.0
      %1355 = vmatpush1.xpose.msra.mxu0 0.0
      %1356 = vmatprep.subr.mxu0 0.0
      %1357 = vmatpush1.xpose.msra.mxu0 0.0
      %1358 = vmatprep.subr.mxu0 0.0
      %1359 = vmatpush1.xpose.msra.mxu0 0.0
      %1360 = vmatprep.subr.mxu0 0.0
      %1361 = vmatpush1.xpose.msra.mxu0 0.0
      %1362 = vmatprep.subr.mxu0 0.0
      %1363 = vmatpush1.xpose.msra.mxu0 0.0
      %1364 = vmatprep.subr.mxu0 0.0
      %1365 = vmatpush1.xpose.msra.mxu0 0.0
      %1366 = vmatprep.subr.mxu0 0.0
      %1367 = vmatpush1.xpose.msra.mxu0 0.0
      %1368 = vmatprep.subr.mxu0 0.0
      %1369 = vmatpush1.xpose.msra.mxu0 0.0
      %1370 = vmatprep.subr.mxu0 0.0
      %1371 = vmatpush1.xpose.msra.mxu0 0.0
      %1372 = vmatprep.subr.mxu0 0.0
      %1373 = vmatpush1.xpose.msra.mxu0 0.0
      %1374 = vmatprep.subr.mxu0 0.0
      %1375 = vmatpush1.xpose.msra.mxu0 0.0
      %1376 = vmatprep.subr.mxu0 0.0
      %1377 = vmatpush1.xpose.msra.mxu0 0.0
      %1378 = vmatprep.subr.mxu0 0.0
      %1379 = vmatpush1.xpose.msra.mxu0 0.0
      %1380 = vmatprep.subr.mxu0 0.0
      %1381 = vmatpush1.xpose.msra.mxu0 0.0
      %1382 = vmatprep.subr.mxu0 0.0
      %1383 = vmatpush1.xpose.msra.mxu0 0.0
      %1384 = vmatprep.subr.mxu0 0.0
      %1385 = vmatpush1.xpose.msra.mxu0 0.0
      %1386 = vmatprep.subr.mxu0 0.0
      %1387 = vmatpush1.xpose.msra.mxu0 0.0
      %1388 = vmatprep.subr.mxu0 0.0
      %1389 = vmatpush1.xpose.msra.mxu0 0.0
      %1390 = vmatprep.subr.mxu0 0.0
      %1391 = vmatpush1.xpose.msra.mxu0 0.0
      %1392 = vmatprep.subr.mxu0 0.0
      %1393 = vmatpush1.xpose.msra.mxu0 0.0
      %1394 = vmatprep.subr.mxu0 0.0
      %1395 = vmatpush1.xpose.msra.mxu0 0.0
      %1396 = vmatprep.subr.mxu0 0.0
      %1397 = vmatpush1.xpose.msra.mxu0 0.0
      %1398 = vmatprep.subr.mxu0 0.0
      %1399 = vmatpush1.xpose.msra.mxu0 0.0
      %1400 = vmatprep.subr.mxu0 0.0
      %1401 = vmatpush1.xpose.msra.mxu0 0.0
      %1402 = vmatprep.subr.mxu0 0.0
      %1403 = vmatpush1.xpose.msra.mxu0 0.0
      %1404 = vmatprep.subr.mxu0 0.0
      %1405 = vmatpush1.xpose.msra.mxu0 0.0
      %1406 = vmatprep.mubr.f32.mxu0 0.0
      %1407 = vmatmul.mubr.f32.gmra.mrb[0].mxu0 %v1334
      %v1408 = vpop.f32.mrb[0].mxu0
      %v1409 = vadd.f32 0.0, %v1408
      %v1410 = vpop.f32.mrb[0].mxu0
      %1411 = vmatprep.mubr.f32.mxu0 0.0
      %1412 = vmatmul.mubr.f32.gmra.mrb[0].mxu0 %v1336
      %v1413 = vpop.f32.mrb[0].mxu0
      %v1414 = vadd.f32 0.0, %v1413
      %v1415 = vpop.f32.mrb[0].mxu0
      %1416 = vdwg.mxu0
      %v1417 = vmul.f32 %v1409, 0.35355338
      %v1418 = vmul.f32 %v1414, 0.35355338
      %v1419 = vsel %vm852, %v1417, -inf
      %1420 = vmax.xlane.f32.xlu0 %v1419
      %v1421 = vpop.xlane.xlu0 %1420
      %v1422 = vsel %vm852, %v1418, -inf
      %1423 = vmax.xlane.f32.xlu0 %v1422
      %v1424 = vpop.xlane.xlu0 %1423
      %v1425 = vsub.f32 %v1417, %v1421
      %v1426 = vsub.f32 %v1418, %v1424
      %v1427 = vmul.f32 %v1425, 1.442695
      %v1428 = vpow.pop %v1427
      %v1429 = vmul.f32 %v1426, 1.442695
      %v1430 = vpow.pop %v1429
      %v1431 = vsel %vm852, %v1428, 0.0
      %1432 = vadd.xlane.f32.xlu0 %v1431
      %v1433 = vpop.xlane.xlu0 %1432
      %v1434 = vsel %vm852, %v1430, 0.0
      %1435 = vadd.xlane.f32.xlu0 %v1434
      %v1436 = vpop.xlane.xlu0 %1435
      %v1437 = vrcp.pop %v1433
      %v1438 = vrcp.pop %v1436
      %v1439 = vmul.f32 %v1428, %v1437
      %v1440 = vmul.f32 %v1430, %v1438
      %1441 = vrot.lane.b32.xlu0 %v749, 112
      %v1442 = vpop.permute.xlu0 %1441
      %1443 = vrot.lane.b32.xlu0 %v754, 112
      %v1444 = vpop.permute.xlu0 %1443
      %v1448 = vsel %vm852, %v1439, 0
      %v1451 = vsel %vm852, %v1440, 0
      %1453 = vmatprep.subr.mxu0 0.0
      %1454 = vmatpush1.msra.mxu0 %v1442
      %1455 = vmatprep.subr.mxu0 0.0
      %1456 = vmatpush1.msra.mxu0 %v1444
      %1457 = vmatprep.subr.mxu0 0.0
      %1458 = vmatpush1.msra.mxu0 0.0
      %1459 = vmatprep.subr.mxu0 0.0
      %1460 = vmatpush1.msra.mxu0 0.0
      %1461 = vmatprep.subr.mxu0 0.0
      %1462 = vmatpush1.msra.mxu0 0.0
      %1463 = vmatprep.subr.mxu0 0.0
      %1464 = vmatpush1.msra.mxu0 0.0
      %1465 = vmatprep.subr.mxu0 0.0
      %1466 = vmatpush1.msra.mxu0 0.0
      %1467 = vmatprep.subr.mxu0 0.0
      %1468 = vmatpush1.msra.mxu0 0.0
      %1469 = vmatprep.subr.mxu0 0.0
      %1470 = vmatpush1.msra.mxu0 0.0
      %1471 = vmatprep.subr.mxu0 0.0
      %1472 = vmatpush1.msra.mxu0 0.0
      %1473 = vmatprep.subr.mxu0 0.0
      %1474 = vmatpush1.msra.mxu0 0.0
      %1475 = vmatprep.subr.mxu0 0.0
      %1476 = vmatpush1.msra.mxu0 0.0
      %1477 = vmatprep.subr.mxu0 0.0
      %1478 = vmatpush1.msra.mxu0 0.0
      %1479 = vmatprep.subr.mxu0 0.0
      %1480 = vmatpush1.msra.mxu0 0.0
      %1481 = vmatprep.subr.mxu0 0.0
      %1482 = vmatpush1.msra.mxu0 0.0
      %1483 = vmatprep.subr.mxu0 0.0
      %1484 = vmatpush1.msra.mxu0 0.0
      %1485 = vmatprep.subr.mxu0 0.0
      %1486 = vmatpush1.msra.mxu0 0.0
      %1487 = vmatprep.subr.mxu0 0.0
      %1488 = vmatpush1.msra.mxu0 0.0
      %1489 = vmatprep.subr.mxu0 0.0
      %1490 = vmatpush1.msra.mxu0 0.0
      %1491 = vmatprep.subr.mxu0 0.0
      %1492 = vmatpush1.msra.mxu0 0.0
      %1493 = vmatprep.subr.mxu0 0.0
      %1494 = vmatpush1.msra.mxu0 0.0
      %1495 = vmatprep.subr.mxu0 0.0
      %1496 = vmatpush1.msra.mxu0 0.0
      %1497 = vmatprep.subr.mxu0 0.0
      %1498 = vmatpush1.msra.mxu0 0.0
      %1499 = vmatprep.subr.mxu0 0.0
      %1500 = vmatpush1.msra.mxu0 0.0
      %1501 = vmatprep.subr.mxu0 0.0
      %1502 = vmatpush1.msra.mxu0 0.0
      %1503 = vmatprep.subr.mxu0 0.0
      %1504 = vmatpush1.msra.mxu0 0.0
      %1505 = vmatprep.subr.mxu0 0.0
      %1506 = vmatpush1.msra.mxu0 0.0
      %1507 = vmatprep.subr.mxu0 0.0
      %1508 = vmatpush1.msra.mxu0 0.0
      %1509 = vmatprep.subr.mxu0 0.0
      %1510 = vmatpush1.msra.mxu0 0.0
      %1511 = vmatprep.subr.mxu0 0.0
      %1512 = vmatpush1.msra.mxu0 0.0
      %1513 = vmatprep.subr.mxu0 0.0
      %1514 = vmatpush1.msra.mxu0 0.0
      %1515 = vmatprep.subr.mxu0 0.0
      %1516 = vmatpush1.msra.mxu0 0.0
      %1517 = vmatprep.mubr.f32.mxu0 0.0
      %1518 = vmatmul.mubr.f32.gmra.mrb[0].mxu0 %v1448
      %v1519 = vpop.f32.mrb[0].mxu0
      %v1520 = vadd.f32 0.0, %v1519
      %v1521 = vpop.f32.mrb[0].mxu0
      %1522 = vmatprep.mubr.f32.mxu0 0.0
      %1523 = vmatmul.mubr.f32.gmra.mrb[0].mxu0 %v1451
      %v1524 = vpop.f32.mrb[0].mxu0
      %v1525 = vadd.f32 0.0, %v1524
      %v1526 = vpop.f32.mrb[0].mxu0
      %1527 = vdwg.mxu0
      %v1529 = vsel %vm762, %v1520, 0
      %v1532 = vsel %vm762, %v1525, 0
      %1534 = vmatprep.subr.mxu0 0.0
      %1535 = vmatpush1.msra.mxu0 %v505
      %1536 = vmatprep.subr.mxu0 0.0
      %1537 = vmatpush1.msra.mxu0 0.0
      %1538 = vmatprep.subr.mxu0 0.0
      %1539 = vmatpush1.msra.mxu0 0.0
      %1540 = vmatprep.subr.mxu0 0.0
      %1541 = vmatpush1.msra.mxu0 0.0
      %1542 = vmatprep.subr.mxu0 0.0
      %1543 = vmatpush1.msra.mxu0 0.0
      %1544 = vmatprep.subr.mxu0 0.0
      %1545 = vmatpush1.msra.mxu0 0.0
      %1546 = vmatprep.subr.mxu0 0.0
      %1547 = vmatpush1.msra.mxu0 0.0
      %1548 = vmatprep.subr.mxu0 0.0
      %1549 = vmatpush1.msra.mxu0 0.0
      %1550 = vmatprep.subr.mxu0 0.0
      %1551 = vmatpush1.msra.mxu0 0.0
      %1552 = vmatprep.subr.mxu0 0.0
      %1553 = vmatpush1.msra.mxu0 0.0
      %1554 = vmatprep.subr.mxu0 0.0
      %1555 = vmatpush1.msra.mxu0 0.0
      %1556 = vmatprep.subr.mxu0 0.0
      %1557 = vmatpush1.msra.mxu0 0.0
      %1558 = vmatprep.subr.mxu0 0.0
      %1559 = vmatpush1.msra.mxu0 0.0
      %1560 = vmatprep.subr.mxu0 0.0
      %1561 = vmatpush1.msra.mxu0 0.0
      %1562 = vmatprep.subr.mxu0 0.0
      %1563 = vmatpush1.msra.mxu0 0.0
      %1564 = vmatprep.subr.mxu0 0.0
      %1565 = vmatpush1.msra.mxu0 0.0
      %1566 = vmatprep.subr.mxu0 0.0
      %1567 = vmatpush1.msra.mxu0 0.0
      %1568 = vmatprep.subr.mxu0 0.0
      %1569 = vmatpush1.msra.mxu0 0.0
      %1570 = vmatprep.subr.mxu0 0.0
      %1571 = vmatpush1.msra.mxu0 0.0
      %1572 = vmatprep.subr.mxu0 0.0
      %1573 = vmatpush1.msra.mxu0 0.0
      %1574 = vmatprep.subr.mxu0 0.0
      %1575 = vmatpush1.msra.mxu0 0.0
      %1576 = vmatprep.subr.mxu0 0.0
      %1577 = vmatpush1.msra.mxu0 0.0
      %1578 = vmatprep.subr.mxu0 0.0
      %1579 = vmatpush1.msra.mxu0 0.0
      %1580 = vmatprep.subr.mxu0 0.0
      %1581 = vmatpush1.msra.mxu0 0.0
      %1582 = vmatprep.subr.mxu0 0.0
      %1583 = vmatpush1.msra.mxu0 0.0
      %1584 = vmatprep.subr.mxu0 0.0
      %1585 = vmatpush1.msra.mxu0 0.0
      %1586 = vmatprep.subr.mxu0 0.0
      %1587 = vmatpush1.msra.mxu0 0.0
      %1588 = vmatprep.subr.mxu0 0.0
      %1589 = vmatpush1.msra.mxu0 0.0
      %1590 = vmatprep.subr.mxu0 0.0
      %1591 = vmatpush1.msra.mxu0 0.0
      %1592 = vmatprep.subr.mxu0 0.0
      %1593 = vmatpush1.msra.mxu0 0.0
      %1594 = vmatprep.subr.mxu0 0.0
      %1595 = vmatpush1.msra.mxu0 0.0
      %1596 = vmatprep.subr.mxu0 0.0
      %1597 = vmatpush1.msra.mxu0 0.0
      %1598 = vmatprep.mubr.f32.mxu0 0.0
      %1599 = vmatmul.mubr.f32.gmra.mrb[0].mxu0 %v1529
      %v1600 = vpop.f32.mrb[0].mxu0
      %v1601 = vadd.f32 0.0, %v1600
      %v1602 = vpop.f32.mrb[0].mxu0
      %1603 = vmatprep.mubr.f32.mxu0 0.0
      %1604 = vmatmul.mubr.f32.gmra.mrb[0].mxu0 %v1532
      %v1605 = vpop.f32.mrb[0].mxu0
      %v1606 = vadd.f32 0.0, %v1605
      %v1607 = vpop.f32.mrb[0].mxu0
      %1608 = vdwg.mxu0
      %v1609 = vadd.f32 %v1324, %v1601
      %v1610 = vadd.f32 %v1325, %v1606
      %1611 = vrot.lane.b32.xlu0 %v585, 104
      %v1612 = vpop.permute.xlu0 %1611
      %1613 = vrot.lane.b32.xlu0 %v590, 104
      %v1614 = vpop.permute.xlu0 %1613
      %1615 = vrot.lane.b32.xlu0 %v664, 104
      %v1616 = vpop.permute.xlu0 %1615
      %1617 = vrot.lane.b32.xlu0 %v669, 104
      %v1618 = vpop.permute.xlu0 %1617
      %v1619 = vsel %vm762, %v1612, 0
      %v1621 = vsel %vm762, %v1614, 0
      %v1623 = vsel %vm762, %v1616, 0
      %v1625 = vsel %vm762, %v1618, 0
      %1627 = vmatprep.subr.mxu0 0.0
      %1628 = vmatpush1.xpose.msra.mxu0 %v1623
      %1629 = vmatprep.subr.mxu0 0.0
      %1630 = vmatpush1.xpose.msra.mxu0 %v1625
      %1631 = vmatprep.subr.mxu0 0.0
      %1632 = vmatpush1.xpose.msra.mxu0 0.0
      %1633 = vmatprep.subr.mxu0 0.0
      %1634 = vmatpush1.xpose.msra.mxu0 0.0
      %1635 = vmatprep.subr.mxu0 0.0
      %1636 = vmatpush1.xpose.msra.mxu0 0.0
      %1637 = vmatprep.subr.mxu0 0.0
      %1638 = vmatpush1.xpose.msra.mxu0 0.0
      %1639 = vmatprep.subr.mxu0 0.0
      %1640 = vmatpush1.xpose.msra.mxu0 0.0
      %1641 = vmatprep.subr.mxu0 0.0
      %1642 = vmatpush1.xpose.msra.mxu0 0.0
      %1643 = vmatprep.subr.mxu0 0.0
      %1644 = vmatpush1.xpose.msra.mxu0 0.0
      %1645 = vmatprep.subr.mxu0 0.0
      %1646 = vmatpush1.xpose.msra.mxu0 0.0
      %1647 = vmatprep.subr.mxu0 0.0
      %1648 = vmatpush1.xpose.msra.mxu0 0.0
      %1649 = vmatprep.subr.mxu0 0.0
      %1650 = vmatpush1.xpose.msra.mxu0 0.0
      %1651 = vmatprep.subr.mxu0 0.0
      %1652 = vmatpush1.xpose.msra.mxu0 0.0
      %1653 = vmatprep.subr.mxu0 0.0
      %1654 = vmatpush1.xpose.msra.mxu0 0.0
      %1655 = vmatprep.subr.mxu0 0.0
      %1656 = vmatpush1.xpose.msra.mxu0 0.0
      %1657 = vmatprep.subr.mxu0 0.0
      %1658 = vmatpush1.xpose.msra.mxu0 0.0
      %1659 = vmatprep.subr.mxu0 0.0
      %1660 = vmatpush1.xpose.msra.mxu0 0.0
      %1661 = vmatprep.subr.mxu0 0.0
      %1662 = vmatpush1.xpose.msra.mxu0 0.0
      %1663 = vmatprep.subr.mxu0 0.0
      %1664 = vmatpush1.xpose.msra.mxu0 0.0
      %1665 = vmatprep.subr.mxu0 0.0
      %1666 = vmatpush1.xpose.msra.mxu0 0.0
      %1667 = vmatprep.subr.mxu0 0.0
      %1668 = vmatpush1.xpose.msra.mxu0 0.0
      %1669 = vmatprep.subr.mxu0 0.0
      %1670 = vmatpush1.xpose.msra.mxu0 0.0
      %1671 = vmatprep.subr.mxu0 0.0
      %1672 = vmatpush1.xpose.msra.mxu0 0.0
      %1673 = vmatprep.subr.mxu0 0.0
      %1674 = vmatpush1.xpose.msra.mxu0 0.0
      %1675 = vmatprep.subr.mxu0 0.0
      %1676 = vmatpush1.xpose.msra.mxu0 0.0
      %1677 = vmatprep.subr.mxu0 0.0
      %1678 = vmatpush1.xpose.msra.mxu0 0.0
      %1679 = vmatprep.subr.mxu0 0.0
      %1680 = vmatpush1.xpose.msra.mxu0 0.0
      %1681 = vmatprep.subr.mxu0 0.0
      %1682 = vmatpush1.xpose.msra.mxu0 0.0
      %1683 = vmatprep.subr.mxu0 0.0
      %1684 = vmatpush1.xpose.msra.mxu0 0.0
      %1685 = vmatprep.subr.mxu0 0.0
      %1686 = vmatpush1.xpose.msra.mxu0 0.0
      %1687 = vmatprep.subr.mxu0 0.0
      %1688 = vmatpush1.xpose.msra.mxu0 0.0
      %1689 = vmatprep.subr.mxu0 0.0
      %1690 = vmatpush1.xpose.msra.mxu0 0.0
      %1691 = vmatprep.mubr.f32.mxu0 0.0
      %1692 = vmatmul.mubr.f32.gmra.mrb[0].mxu0 %v1619
      %v1693 = vpop.f32.mrb[0].mxu0
      %v1694 = vadd.f32 0.0, %v1693
      %v1695 = vpop.f32.mrb[0].mxu0
      %1696 = vmatprep.mubr.f32.mxu0 0.0
      %1697 = vmatmul.mubr.f32.gmra.mrb[0].mxu0 %v1621
      %v1698 = vpop.f32.mrb[0].mxu0
      %v1699 = vadd.f32 0.0, %v1698
      %v1700 = vpop.f32.mrb[0].mxu0
      %1701 = vdwg.mxu0
      %v1702 = vmul.f32 %v1694, 0.35355338
      %v1703 = vmul.f32 %v1699, 0.35355338
      %v1704 = vsel %vm852, %v1702, -inf
      %1705 = vmax.xlane.f32.xlu0 %v1704
      %v1706 = vpop.xlane.xlu0 %1705
      %v1707 = vsel %vm852, %v1703, -inf
      %1708 = vmax.xlane.f32.xlu0 %v1707
      %v1709 = vpop.xlane.xlu0 %1708
      %v1710 = vsub.f32 %v1702, %v1706
      %v1711 = vsub.f32 %v1703, %v1709
      %v1712 = vmul.f32 %v1710, 1.442695
      %v1713 = vpow.pop %v1712
      %v1714 = vmul.f32 %v1711, 1.442695
      %v1715 = vpow.pop %v1714
      %v1716 = vsel %vm852, %v1713, 0.0
      %1717 = vadd.xlane.f32.xlu0 %v1716
      %v1718 = vpop.xlane.xlu0 %1717
      %v1719 = vsel %vm852, %v1715, 0.0
      %1720 = vadd.xlane.f32.xlu0 %v1719
      %v1721 = vpop.xlane.xlu0 %1720
      %v1722 = vrcp.pop %v1718
      %v1723 = vrcp.pop %v1721
      %v1724 = vmul.f32 %v1713, %v1722
      %v1725 = vmul.f32 %v1715, %v1723
      %1726 = vrot.lane.b32.xlu0 %v749, 104
      %v1727 = vpop.permute.xlu0 %1726
      %1728 = vrot.lane.b32.xlu0 %v754, 104
      %v1729 = vpop.permute.xlu0 %1728
      %v1733 = vsel %vm852, %v1724, 0
      %v1736 = vsel %vm852, %v1725, 0
      %1738 = vmatprep.subr.mxu0 0.0
      %1739 = vmatpush1.msra.mxu0 %v1727
      %1740 = vmatprep.subr.mxu0 0.0
      %1741 = vmatpush1.msra.mxu0 %v1729
      %1742 = vmatprep.subr.mxu0 0.0
      %1743 = vmatpush1.msra.mxu0 0.0
      %1744 = vmatprep.subr.mxu0 0.0
      %1745 = vmatpush1.msra.mxu0 0.0
      %1746 = vmatprep.subr.mxu0 0.0
      %1747 = vmatpush1.msra.mxu0 0.0
      %1748 = vmatprep.subr.mxu0 0.0
      %1749 = vmatpush1.msra.mxu0 0.0
      %1750 = vmatprep.subr.mxu0 0.0
      %1751 = vmatpush1.msra.mxu0 0.0
      %1752 = vmatprep.subr.mxu0 0.0
      %1753 = vmatpush1.msra.mxu0 0.0
      %1754 = vmatprep.subr.mxu0 0.0
      %1755 = vmatpush1.msra.mxu0 0.0
      %1756 = vmatprep.subr.mxu0 0.0
      %1757 = vmatpush1.msra.mxu0 0.0
      %1758 = vmatprep.subr.mxu0 0.0
      %1759 = vmatpush1.msra.mxu0 0.0
      %1760 = vmatprep.subr.mxu0 0.0
      %1761 = vmatpush1.msra.mxu0 0.0
      %1762 = vmatprep.subr.mxu0 0.0
      %1763 = vmatpush1.msra.mxu0 0.0
      %1764 = vmatprep.subr.mxu0 0.0
      %1765 = vmatpush1.msra.mxu0 0.0
      %1766 = vmatprep.subr.mxu0 0.0
      %1767 = vmatpush1.msra.mxu0 0.0
      %1768 = vmatprep.subr.mxu0 0.0
      %1769 = vmatpush1.msra.mxu0 0.0
      %1770 = vmatprep.subr.mxu0 0.0
      %1771 = vmatpush1.msra.mxu0 0.0
      %1772 = vmatprep.subr.mxu0 0.0
      %1773 = vmatpush1.msra.mxu0 0.0
      %1774 = vmatprep.subr.mxu0 0.0
      %1775 = vmatpush1.msra.mxu0 0.0
      %1776 = vmatprep.subr.mxu0 0.0
      %1777 = vmatpush1.msra.mxu0 0.0
      %1778 = vmatprep.subr.mxu0 0.0
      %1779 = vmatpush1.msra.mxu0 0.0
      %1780 = vmatprep.subr.mxu0 0.0
      %1781 = vmatpush1.msra.mxu0 0.0
      %1782 = vmatprep.subr.mxu0 0.0
      %1783 = vmatpush1.msra.mxu0 0.0
      %1784 = vmatprep.subr.mxu0 0.0
      %1785 = vmatpush1.msra.mxu0 0.0
      %1786 = vmatprep.subr.mxu0 0.0
      %1787 = vmatpush1.msra.mxu0 0.0
      %1788 = vmatprep.subr.mxu0 0.0
      %1789 = vmatpush1.msra.mxu0 0.0
      %1790 = vmatprep.subr.mxu0 0.0
      %1791 = vmatpush1.msra.mxu0 0.0
      %1792 = vmatprep.subr.mxu0 0.0
      %1793 = vmatpush1.msra.mxu0 0.0
      %1794 = vmatprep.subr.mxu0 0.0
      %1795 = vmatpush1.msra.mxu0 0.0
      %1796 = vmatprep.subr.mxu0 0.0
      %1797 = vmatpush1.msra.mxu0 0.0
      %1798 = vmatprep.subr.mxu0 0.0
      %1799 = vmatpush1.msra.mxu0 0.0
      %1800 = vmatprep.subr.mxu0 0.0
      %1801 = vmatpush1.msra.mxu0 0.0
      %1802 = vmatprep.mubr.f32.mxu0 0.0
      %1803 = vmatmul.mubr.f32.gmra.mrb[0].mxu0 %v1733
      %v1804 = vpop.f32.mrb[0].mxu0
      %v1805 = vadd.f32 0.0, %v1804
      %v1806 = vpop.f32.mrb[0].mxu0
      %1807 = vmatprep.mubr.f32.mxu0 0.0
      %1808 = vmatmul.mubr.f32.gmra.mrb[0].mxu0 %v1736
      %v1809 = vpop.f32.mrb[0].mxu0
      %v1810 = vadd.f32 0.0, %v1809
      %v1811 = vpop.f32.mrb[0].mxu0
      %1812 = vdwg.mxu0
      %v1814 = vsel %vm762, %v1805, 0
      %v1817 = vsel %vm762, %v1810, 0
      %1819 = vmatprep.subr.mxu0 0.0
      %1820 = vmatpush1.msra.mxu0 %v506
      %1821 = vmatprep.subr.mxu0 0.0
      %1822 = vmatpush1.msra.mxu0 0.0
      %1823 = vmatprep.subr.mxu0 0.0
      %1824 = vmatpush1.msra.mxu0 0.0
      %1825 = vmatprep.subr.mxu0 0.0
      %1826 = vmatpush1.msra.mxu0 0.0
      %1827 = vmatprep.subr.mxu0 0.0
      %1828 = vmatpush1.msra.mxu0 0.0
      %1829 = vmatprep.subr.mxu0 0.0
      %1830 = vmatpush1.msra.mxu0 0.0
      %1831 = vmatprep.subr.mxu0 0.0
      %1832 = vmatpush1.msra.mxu0 0.0
      %1833 = vmatprep.subr.mxu0 0.0
      %1834 = vmatpush1.msra.mxu0 0.0
      %1835 = vmatprep.subr.mxu0 0.0
      %1836 = vmatpush1.msra.mxu0 0.0
      %1837 = vmatprep.subr.mxu0 0.0
      %1838 = vmatpush1.msra.mxu0 0.0
      %1839 = vmatprep.subr.mxu0 0.0
      %1840 = vmatpush1.msra.mxu0 0.0
      %1841 = vmatprep.subr.mxu0 0.0
      %1842 = vmatpush1.msra.mxu0 0.0
      %1843 = vmatprep.subr.mxu0 0.0
      %1844 = vmatpush1.msra.mxu0 0.0
      %1845 = vmatprep.subr.mxu0 0.0
      %1846 = vmatpush1.msra.mxu0 0.0
      %1847 = vmatprep.subr.mxu0 0.0
      %1848 = vmatpush1.msra.mxu0 0.0
      %1849 = vmatprep.subr.mxu0 0.0
      %1850 = vmatpush1.msra.mxu0 0.0
      %1851 = vmatprep.subr.mxu0 0.0
      %1852 = vmatpush1.msra.mxu0 0.0
      %1853 = vmatprep.subr.mxu0 0.0
      %1854 = vmatpush1.msra.mxu0 0.0
      %1855 = vmatprep.subr.mxu0 0.0
      %1856 = vmatpush1.msra.mxu0 0.0
      %1857 = vmatprep.subr.mxu0 0.0
      %1858 = vmatpush1.msra.mxu0 0.0
      %1859 = vmatprep.subr.mxu0 0.0
      %1860 = vmatpush1.msra.mxu0 0.0
      %1861 = vmatprep.subr.mxu0 0.0
      %1862 = vmatpush1.msra.mxu0 0.0
      %1863 = vmatprep.subr.mxu0 0.0
      %1864 = vmatpush1.msra.mxu0 0.0
      %1865 = vmatprep.subr.mxu0 0.0
      %1866 = vmatpush1.msra.mxu0 0.0
      %1867 = vmatprep.subr.mxu0 0.0
      %1868 = vmatpush1.msra.mxu0 0.0
      %1869 = vmatprep.subr.mxu0 0.0
      %1870 = vmatpush1.msra.mxu0 0.0
      %1871 = vmatprep.subr.mxu0 0.0
      %1872 = vmatpush1.msra.mxu0 0.0
      %1873 = vmatprep.subr.mxu0 0.0
      %1874 = vmatpush1.msra.mxu0 0.0
      %1875 = vmatprep.subr.mxu0 0.0
      %1876 = vmatpush1.msra.mxu0 0.0
      %1877 = vmatprep.subr.mxu0 0.0
      %1878 = vmatpush1.msra.mxu0 0.0
      %1879 = vmatprep.subr.mxu0 0.0
      %1880 = vmatpush1.msra.mxu0 0.0
      %1881 = vmatprep.subr.mxu0 0.0
      %1882 = vmatpush1.msra.mxu0 0.0
      %1883 = vmatprep.mubr.f32.mxu0 0.0
      %1884 = vmatmul.mubr.f32.gmra.mrb[0].mxu0 %v1814
      %v1885 = vpop.f32.mrb[0].mxu0
      %v1886 = vadd.f32 0.0, %v1885
      %v1887 = vpop.f32.mrb[0].mxu0
      %1888 = vmatprep.mubr.f32.mxu0 0.0
      %1889 = vmatmul.mubr.f32.gmra.mrb[0].mxu0 %v1817
      %v1890 = vpop.f32.mrb[0].mxu0
      %v1891 = vadd.f32 0.0, %v1890
      %v1892 = vpop.f32.mrb[0].mxu0
      %1893 = vdwg.mxu0
      %v1894 = vadd.f32 %v1609, %v1886
      %v1895 = vadd.f32 %v1610, %v1891
      %v1896 = vadd.f32 %v482, %v1894
      %v1897 = vadd.f32 %v483, %v1895
      %v1898 = vsel %vm511, %v1896, 0.0
      %1899 = vadd.xlane.f32.xlu0 %v1898
      %v1900 = vpop.xlane.xlu0 %1899
      %v1901 = vsel %vm511, %v1897, 0.0
      %1902 = vadd.xlane.f32.xlu0 %v1901
      %v1903 = vpop.xlane.xlu0 %1902
      %v1904 = vrcp.pop 32.0
      %v1905 = vmul.f32 %v1900, %v1904
      %v1906 = vmul.f32 %v1903, %v1904
      %v1907 = vsub.f32 %v1896, %v1905
      %v1908 = vsub.f32 %v1897, %v1906
      %v1909 = vmul.f32 %v1907, %v1907
      %v1910 = vmul.f32 %v1908, %v1908
      %v1911 = vsel %vm511, %v1909, 0.0
      %1912 = vadd.xlane.f32.xlu0 %v1911
      %v1913 = vpop.xlane.xlu0 %1912
      %v1914 = vsel %vm511, %v1910, 0.0
      %1915 = vadd.xlane.f32.xlu0 %v1914
      %v1916 = vpop.xlane.xlu0 %1915
      %v1917 = vmul.f32 %v1913, %v1904
      %v1918 = vmul.f32 %v1916, %v1904
      %v1919 = vadd.f32 %v1917, 1e-05
      %v1920 = vadd.f32 %v1918, 1e-05
      %v1921 = vrsqrt.pop %v1919
      %v1922 = vrsqrt.pop %v1920
      %v1923 = vmul.f32 %v1907, %v1921
      %v1924 = vmul.f32 %v1908, %v1922
      %v1925 = vlaneseq
      %v1926 = vshrl.u32 %v1925, 7
      %v1927 = vsub.s32 1, %v1926
      %v1928 = vrot.slane %v485, %v1927
      %v1929 = vmul.f32 %v1923, %v1928
      %v1930 = vmul.f32 %v1924, %v1928
      %v1931 = vlaneseq
      %v1932 = vshrl.u32 %v1931, 7
      %v1933 = vsub.s32 2, %v1932
      %v1934 = vrot.slane %v485, %v1933
      %v1935 = vadd.f32 %v1929, %v1934
      %v1936 = vadd.f32 %v1930, %v1934
      %v1937 = vadd.f32 %v1935, %v480
      %v1938 = vadd.f32 %v1936, %v481
      %v1939 = vld [vmem:[%s436] sm:$0xff]
      %v1940 = vld [vmem:[%s436 + $0x8] sm:$0xff]
      %v1941 = vld [vmem:[%s436 + $0x10] sm:$0xff]
      %v1942 = vld [vmem:[%s436 + $0x18] sm:$0xff]
      %v1943 = vld [vmem:[%s436 + $0x20] sm:$0xff]
      %v1944 = vld [vmem:[%s436 + $0x28] sm:$0xff]
      %v1945 = vld [vmem:[%s436 + $0x30] sm:$0xff]
      %v1946 = vld [vmem:[%s436 + $0x38] sm:$0xff]
      %v1947 = vld [vmem:[%s441] sm:$0xff]
      %v1948 = vld [vmem:[%s441 + $0x8] sm:$0xff]
      %v1949 = vld [vmem:[%s441 + $0x10] sm:$0xff]
      %v1950 = vld [vmem:[%s441 + $0x18] sm:$0xff]
      %v1951 = vld [vmem:[%s441 + $0x20] sm:$0xff]
      %v1952 = vld [vmem:[%s441 + $0x28] sm:$0xff]
      %v1953 = vld [vmem:[%s441 + $0x30] sm:$0xff]
      %v1954 = vld [vmem:[%s441 + $0x38] sm:$0xff]
      %v1955 = vld [vmem:[%s444] sm:$0x1]
      %s1956 = scalar_lea.vmem %s449, 128
      %v1957 = vld [vmem:[%s1956] sm:$0xff]
      %v1958 = vld [vmem:[%s1956 + $0x8] sm:$0xff]
      %v1959 = vld [vmem:[%s1956 + $0x10] sm:$0xff]
      %v1960 = vld [vmem:[%s1956 + $0x18] sm:$0xff]
      %s1961 = scalar_lea.vmem %s449, 160
      %v1962 = vld [vmem:[%s1961] sm:$0xff]
      %v1963 = vld [vmem:[%s1961 + $0x8] sm:$0xff]
      %v1964 = vld [vmem:[%s1961 + $0x10] sm:$0xff]
      %v1965 = vld [vmem:[%s1961 + $0x18] sm:$0xff]
      %s1966 = scalar_lea.vmem %s449, 192
      %v1967 = vld [vmem:[%s1966] sm:$0xff]
      %v1968 = vld [vmem:[%s1966 + $0x8] sm:$0xff]
      %v1969 = vld [vmem:[%s1966 + $0x10] sm:$0xff]
      %v1970 = vld [vmem:[%s1966 + $0x18] sm:$0xff]
      %s1971 = scalar_lea.vmem %s449, 224
      %v1972 = vld [vmem:[%s1971] sm:$0xff]
      %v1973 = vld [vmem:[%s1971 + $0x8] sm:$0xff]
      %v1974 = vld [vmem:[%s1971 + $0x10] sm:$0xff]
      %v1975 = vld [vmem:[%s1971 + $0x18] sm:$0xff]
      %v1976 = vlaneseq
      %v1977 = vshrl.u32 %v1976, 7
      %v1978 = vsub.s32 4, %v1977
      %v1979 = vrot.slane %v484, %v1978
      %v1981 = vsel %vm511, %v1937, 0
      %v1984 = vsel %vm511, %v1938, 0
      %1986 = vmatprep.subr.mxu0 0.0
      %1987 = vmatpush1.msra.mxu0 %v1957
      %1988 = vmatprep.subr.mxu0 0.0
      %1989 = vmatpush1.msra.mxu0 %v1958
      %1990 = vmatprep.subr.mxu0 0.0
      %1991 = vmatpush1.msra.mxu0 %v1959
      %1992 = vmatprep.subr.mxu0 0.0
      %1993 = vmatpush1.msra.mxu0 %v1960
      %1994 = vmatprep.subr.mxu0 0.0
      %1995 = vmatpush1.msra.mxu0 0.0
      %1996 = vmatprep.subr.mxu0 0.0
      %1997 = vmatpush1.msra.mxu0 0.0
      %1998 = vmatprep.subr.mxu0 0.0
      %1999 = vmatpush1.msra.mxu0 0.0
      %2000 = vmatprep.subr.mxu0 0.0
      %2001 = vmatpush1.msra.mxu0 0.0
      %2002 = vmatprep.subr.mxu0 0.0
      %2003 = vmatpush1.msra.mxu0 0.0
      %2004 = vmatprep.subr.mxu0 0.0
      %2005 = vmatpush1.msra.mxu0 0.0
      %2006 = vmatprep.subr.mxu0 0.0
      %2007 = vmatpush1.msra.mxu0 0.0
      %2008 = vmatprep.subr.mxu0 0.0
      %2009 = vmatpush1.msra.mxu0 0.0
      %2010 = vmatprep.subr.mxu0 0.0
      %2011 = vmatpush1.msra.mxu0 0.0
      %2012 = vmatprep.subr.mxu0 0.0
      %2013 = vmatpush1.msra.mxu0 0.0
      %2014 = vmatprep.subr.mxu0 0.0
      %2015 = vmatpush1.msra.mxu0 0.0
      %2016 = vmatprep.subr.mxu0 0.0
      %2017 = vmatpush1.msra.mxu0 0.0
      %2018 = vmatprep.subr.mxu0 0.0
      %2019 = vmatpush1.msra.mxu0 0.0
      %2020 = vmatprep.subr.mxu0 0.0
      %2021 = vmatpush1.msra.mxu0 0.0
      %2022 = vmatprep.subr.mxu0 0.0
      %2023 = vmatpush1.msra.mxu0 0.0
      %2024 = vmatprep.subr.mxu0 0.0
      %2025 = vmatpush1.msra.mxu0 0.0
      %2026 = vmatprep.subr.mxu0 0.0
      %2027 = vmatpush1.msra.mxu0 0.0
      %2028 = vmatprep.subr.mxu0 0.0
      %2029 = vmatpush1.msra.mxu0 0.0
      %2030 = vmatprep.subr.mxu0 0.0
      %2031 = vmatpush1.msra.mxu0 0.0
      %2032 = vmatprep.subr.mxu0 0.0
      %2033 = vmatpush1.msra.mxu0 0.0
      %2034 = vmatprep.subr.mxu0 0.0
      %2035 = vmatpush1.msra.mxu0 0.0
      %2036 = vmatprep.subr.mxu0 0.0
      %2037 = vmatpush1.msra.mxu0 0.0
      %2038 = vmatprep.subr.mxu0 0.0
      %2039 = vmatpush1.msra.mxu0 0.0
      %2040 = vmatprep.subr.mxu0 0.0
      %2041 = vmatpush1.msra.mxu0 0.0
      %2042 = vmatprep.subr.mxu0 0.0
      %2043 = vmatpush1.msra.mxu0 0.0
      %2044 = vmatprep.subr.mxu0 0.0
      %2045 = vmatpush1.msra.mxu0 0.0
      %2046 = vmatprep.subr.mxu0 0.0
      %2047 = vmatpush1.msra.mxu0 0.0
      %2048 = vmatprep.subr.mxu0 0.0
      %2049 = vmatpush1.msra.mxu0 0.0
      %2050 = vmatprep.mubr.f32.mxu0 0.0
      %2051 = vmatmul.mubr.f32.gmra.mrb[0].mxu0 %v1981
      %v2052 = vpop.f32.mrb[0].mxu0
      %v2053 = vadd.f32 %v1979, %v2052
      %v2054 = vpop.f32.mrb[0].mxu0
      %2055 = vmatprep.mubr.f32.mxu0 0.0
      %2056 = vmatmul.mubr.f32.gmra.mrb[0].mxu0 %v1984
      %v2057 = vpop.f32.mrb[0].mxu0
      %v2058 = vadd.f32 %v1979, %v2057
      %v2059 = vpop.f32.mrb[0].mxu0
      %2060 = vdwg.mxu0
      %v2061 = vlaneseq
      %v2062 = vshrl.u32 %v2061, 7
      %v2063 = vsub.s32 5, %v2062
      %v2064 = vrot.slane %v484, %v2063
      %v2066 = vsel %vm511, %v1939, 0
      %v2069 = vsel %vm511, %v1940, 0
      %v2072 = vsel %vm511, %v1941, 0
      %v2075 = vsel %vm511, %v1942, 0
      %v2078 = vsel %vm511, %v1943, 0
      %v2081 = vsel %vm511, %v1944, 0
      %v2084 = vsel %vm511, %v1945, 0
      %v2087 = vsel %vm511, %v1946, 0
      %2089 = vmatprep.subr.mxu0 0.0
      %2090 = vmatpush1.msra.mxu0 %v1962
      %2091 = vmatprep.subr.mxu0 0.0
      %2092 = vmatpush1.msra.mxu0 %v1963
      %2093 = vmatprep.subr.mxu0 0.0
      %2094 = vmatpush1.msra.mxu0 %v1964
      %2095 = vmatprep.subr.mxu0 0.0
      %2096 = vmatpush1.msra.mxu0 %v1965
      %2097 = vmatprep.subr.mxu0 0.0
      %2098 = vmatpush1.msra.mxu0 0.0
      %2099 = vmatprep.subr.mxu0 0.0
      %2100 = vmatpush1.msra.mxu0 0.0
      %2101 = vmatprep.subr.mxu0 0.0
      %2102 = vmatpush1.msra.mxu0 0.0
      %2103 = vmatprep.subr.mxu0 0.0
      %2104 = vmatpush1.msra.mxu0 0.0
      %2105 = vmatprep.subr.mxu0 0.0
      %2106 = vmatpush1.msra.mxu0 0.0
      %2107 = vmatprep.subr.mxu0 0.0
      %2108 = vmatpush1.msra.mxu0 0.0
      %2109 = vmatprep.subr.mxu0 0.0
      %2110 = vmatpush1.msra.mxu0 0.0
      %2111 = vmatprep.subr.mxu0 0.0
      %2112 = vmatpush1.msra.mxu0 0.0
      %2113 = vmatprep.subr.mxu0 0.0
      %2114 = vmatpush1.msra.mxu0 0.0
      %2115 = vmatprep.subr.mxu0 0.0
      %2116 = vmatpush1.msra.mxu0 0.0
      %2117 = vmatprep.subr.mxu0 0.0
      %2118 = vmatpush1.msra.mxu0 0.0
      %2119 = vmatprep.subr.mxu0 0.0
      %2120 = vmatpush1.msra.mxu0 0.0
      %2121 = vmatprep.subr.mxu0 0.0
      %2122 = vmatpush1.msra.mxu0 0.0
      %2123 = vmatprep.subr.mxu0 0.0
      %2124 = vmatpush1.msra.mxu0 0.0
      %2125 = vmatprep.subr.mxu0 0.0
      %2126 = vmatpush1.msra.mxu0 0.0
      %2127 = vmatprep.subr.mxu0 0.0
      %2128 = vmatpush1.msra.mxu0 0.0
      %2129 = vmatprep.subr.mxu0 0.0
      %2130 = vmatpush1.msra.mxu0 0.0
      %2131 = vmatprep.subr.mxu0 0.0
      %2132 = vmatpush1.msra.mxu0 0.0
      %2133 = vmatprep.subr.mxu0 0.0
      %2134 = vmatpush1.msra.mxu0 0.0
      %2135 = vmatprep.subr.mxu0 0.0
      %2136 = vmatpush1.msra.mxu0 0.0
      %2137 = vmatprep.subr.mxu0 0.0
      %2138 = vmatpush1.msra.mxu0 0.0
      %2139 = vmatprep.subr.mxu0 0.0
      %2140 = vmatpush1.msra.mxu0 0.0
      %2141 = vmatprep.subr.mxu0 0.0
      %2142 = vmatpush1.msra.mxu0 0.0
      %2143 = vmatprep.subr.mxu0 0.0
      %2144 = vmatpush1.msra.mxu0 0.0
      %2145 = vmatprep.subr.mxu0 0.0
      %2146 = vmatpush1.msra.mxu0 0.0
      %2147 = vmatprep.subr.mxu0 0.0
      %2148 = vmatpush1.msra.mxu0 0.0
      %2149 = vmatprep.subr.mxu0 0.0
      %2150 = vmatpush1.msra.mxu0 0.0
      %2151 = vmatprep.subr.mxu0 0.0
      %2152 = vmatpush1.msra.mxu0 0.0
      %2153 = vmatprep.mubr.f32.mxu0 0.0
      %2154 = vmatmul.mubr.f32.gmra.mrb[0].mxu0 %v2066
      %v2155 = vpop.f32.mrb[0].mxu0
      %v2156 = vadd.f32 %v2064, %v2155
      %v2157 = vpop.f32.mrb[0].mxu0
      %2158 = vmatprep.mubr.f32.mxu0 0.0
      %2159 = vmatmul.mubr.f32.gmra.mrb[0].mxu0 %v2069
      %v2160 = vpop.f32.mrb[0].mxu0
      %v2161 = vadd.f32 %v2064, %v2160
      %v2162 = vpop.f32.mrb[0].mxu0
      %2163 = vmatprep.mubr.f32.mxu0 0.0
      %2164 = vmatmul.mubr.f32.gmra.mrb[0].mxu0 %v2072
      %v2165 = vpop.f32.mrb[0].mxu0
      %v2166 = vadd.f32 %v2064, %v2165
      %v2167 = vpop.f32.mrb[0].mxu0
      %2168 = vmatprep.mubr.f32.mxu0 0.0
      %2169 = vmatmul.mubr.f32.gmra.mrb[0].mxu0 %v2075
      %v2170 = vpop.f32.mrb[0].mxu0
      %v2171 = vadd.f32 %v2064, %v2170
      %v2172 = vpop.f32.mrb[0].mxu0
      %2173 = vmatprep.mubr.f32.mxu0 0.0
      %2174 = vmatmul.mubr.f32.gmra.mrb[0].mxu0 %v2078
      %v2175 = vpop.f32.mrb[0].mxu0
      %v2176 = vadd.f32 %v2064, %v2175
      %v2177 = vpop.f32.mrb[0].mxu0
      %2178 = vmatprep.mubr.f32.mxu0 0.0
      %2179 = vmatmul.mubr.f32.gmra.mrb[0].mxu0 %v2081
      %v2180 = vpop.f32.mrb[0].mxu0
      %v2181 = vadd.f32 %v2064, %v2180
      %v2182 = vpop.f32.mrb[0].mxu0
      %2183 = vmatprep.mubr.f32.mxu0 0.0
      %2184 = vmatmul.mubr.f32.gmra.mrb[0].mxu0 %v2084
      %v2185 = vpop.f32.mrb[0].mxu0
      %v2186 = vadd.f32 %v2064, %v2185
      %v2187 = vpop.f32.mrb[0].mxu0
      %2188 = vmatprep.mubr.f32.mxu0 0.0
      %2189 = vmatmul.mubr.f32.gmra.mrb[0].mxu0 %v2087
      %v2190 = vpop.f32.mrb[0].mxu0
      %v2191 = vadd.f32 %v2064, %v2190
      %v2192 = vpop.f32.mrb[0].mxu0
      %2193 = vdwg.mxu0
      %v2194 = vlaneseq
      %v2195 = vshrl.u32 %v2194, 7
      %v2196 = vsub.s32 6, %v2195
      %v2197 = vrot.slane %v484, %v2196
      %v2199 = vsel %vm511, %v1947, 0
      %v2202 = vsel %vm511, %v1948, 0
      %v2205 = vsel %vm511, %v1949, 0
      %v2208 = vsel %vm511, %v1950, 0
      %v2211 = vsel %vm511, %v1951, 0
      %v2214 = vsel %vm511, %v1952, 0
      %v2217 = vsel %vm511, %v1953, 0
      %v2220 = vsel %vm511, %v1954, 0
      %2222 = vmatprep.subr.mxu0 0.0
      %2223 = vmatpush1.msra.mxu0 %v1967
      %2224 = vmatprep.subr.mxu0 0.0
      %2225 = vmatpush1.msra.mxu0 %v1968
      %2226 = vmatprep.subr.mxu0 0.0
      %2227 = vmatpush1.msra.mxu0 %v1969
      %2228 = vmatprep.subr.mxu0 0.0
      %2229 = vmatpush1.msra.mxu0 %v1970
      %2230 = vmatprep.subr.mxu0 0.0
      %2231 = vmatpush1.msra.mxu0 0.0
      %2232 = vmatprep.subr.mxu0 0.0
      %2233 = vmatpush1.msra.mxu0 0.0
      %2234 = vmatprep.subr.mxu0 0.0
      %2235 = vmatpush1.msra.mxu0 0.0
      %2236 = vmatprep.subr.mxu0 0.0
      %2237 = vmatpush1.msra.mxu0 0.0
      %2238 = vmatprep.subr.mxu0 0.0
      %2239 = vmatpush1.msra.mxu0 0.0
      %2240 = vmatprep.subr.mxu0 0.0
      %2241 = vmatpush1.msra.mxu0 0.0
      %2242 = vmatprep.subr.mxu0 0.0
      %2243 = vmatpush1.msra.mxu0 0.0
      %2244 = vmatprep.subr.mxu0 0.0
      %2245 = vmatpush1.msra.mxu0 0.0
      %2246 = vmatprep.subr.mxu0 0.0
      %2247 = vmatpush1.msra.mxu0 0.0
      %2248 = vmatprep.subr.mxu0 0.0
      %2249 = vmatpush1.msra.mxu0 0.0
      %2250 = vmatprep.subr.mxu0 0.0
      %2251 = vmatpush1.msra.mxu0 0.0
      %2252 = vmatprep.subr.mxu0 0.0
      %2253 = vmatpush1.msra.mxu0 0.0
      %2254 = vmatprep.subr.mxu0 0.0
      %2255 = vmatpush1.msra.mxu0 0.0
      %2256 = vmatprep.subr.mxu0 0.0
      %2257 = vmatpush1.msra.mxu0 0.0
      %2258 = vmatprep.subr.mxu0 0.0
      %2259 = vmatpush1.msra.mxu0 0.0
      %2260 = vmatprep.subr.mxu0 0.0
      %2261 = vmatpush1.msra.mxu0 0.0
      %2262 = vmatprep.subr.mxu0 0.0
      %2263 = vmatpush1.msra.mxu0 0.0
      %2264 = vmatprep.subr.mxu0 0.0
      %2265 = vmatpush1.msra.mxu0 0.0
      %2266 = vmatprep.subr.mxu0 0.0
      %2267 = vmatpush1.msra.mxu0 0.0
      %2268 = vmatprep.subr.mxu0 0.0
      %2269 = vmatpush1.msra.mxu0 0.0
      %2270 = vmatprep.subr.mxu0 0.0
      %2271 = vmatpush1.msra.mxu0 0.0
      %2272 = vmatprep.subr.mxu0 0.0
      %2273 = vmatpush1.msra.mxu0 0.0
      %2274 = vmatprep.subr.mxu0 0.0
      %2275 = vmatpush1.msra.mxu0 0.0
      %2276 = vmatprep.subr.mxu0 0.0
      %2277 = vmatpush1.msra.mxu0 0.0
      %2278 = vmatprep.subr.mxu0 0.0
      %2279 = vmatpush1.msra.mxu0 0.0
      %2280 = vmatprep.subr.mxu0 0.0
      %2281 = vmatpush1.msra.mxu0 0.0
      %2282 = vmatprep.subr.mxu0 0.0
      %2283 = vmatpush1.msra.mxu0 0.0
      %2284 = vmatprep.subr.mxu0 0.0
      %2285 = vmatpush1.msra.mxu0 0.0
      %2286 = vmatprep.mubr.f32.mxu0 0.0
      %2287 = vmatmul.mubr.f32.gmra.mrb[0].mxu0 %v2199
      %v2288 = vpop.f32.mrb[0].mxu0
      %v2289 = vadd.f32 %v2197, %v2288
      %v2290 = vpop.f32.mrb[0].mxu0
      %2291 = vmatprep.mubr.f32.mxu0 0.0
      %2292 = vmatmul.mubr.f32.gmra.mrb[0].mxu0 %v2202
      %v2293 = vpop.f32.mrb[0].mxu0
      %v2294 = vadd.f32 %v2197, %v2293
      %v2295 = vpop.f32.mrb[0].mxu0
      %2296 = vmatprep.mubr.f32.mxu0 0.0
      %2297 = vmatmul.mubr.f32.gmra.mrb[0].mxu0 %v2205
      %v2298 = vpop.f32.mrb[0].mxu0
      %v2299 = vadd.f32 %v2197, %v2298
      %v2300 = vpop.f32.mrb[0].mxu0
      %2301 = vmatprep.mubr.f32.mxu0 0.0
      %2302 = vmatmul.mubr.f32.gmra.mrb[0].mxu0 %v2208
      %v2303 = vpop.f32.mrb[0].mxu0
      %v2304 = vadd.f32 %v2197, %v2303
      %v2305 = vpop.f32.mrb[0].mxu0
      %2306 = vmatprep.mubr.f32.mxu0 0.0
      %2307 = vmatmul.mubr.f32.gmra.mrb[0].mxu0 %v2211
      %v2308 = vpop.f32.mrb[0].mxu0
      %v2309 = vadd.f32 %v2197, %v2308
      %v2310 = vpop.f32.mrb[0].mxu0
      %2311 = vmatprep.mubr.f32.mxu0 0.0
      %2312 = vmatmul.mubr.f32.gmra.mrb[0].mxu0 %v2214
      %v2313 = vpop.f32.mrb[0].mxu0
      %v2314 = vadd.f32 %v2197, %v2313
      %v2315 = vpop.f32.mrb[0].mxu0
      %2316 = vmatprep.mubr.f32.mxu0 0.0
      %2317 = vmatmul.mubr.f32.gmra.mrb[0].mxu0 %v2217
      %v2318 = vpop.f32.mrb[0].mxu0
      %v2319 = vadd.f32 %v2197, %v2318
      %v2320 = vpop.f32.mrb[0].mxu0
      %2321 = vmatprep.mubr.f32.mxu0 0.0
      %2322 = vmatmul.mubr.f32.gmra.mrb[0].mxu0 %v2220
      %v2323 = vpop.f32.mrb[0].mxu0
      %v2324 = vadd.f32 %v2197, %v2323
      %v2325 = vpop.f32.mrb[0].mxu0
      %2326 = vdwg.mxu0
      %v2327 = vlaneseq
      %v2328 = vshrl.u32 %v2327, 7
      %v2329 = vsub.s32 7, %v2328
      %v2330 = vrot.slane %v484, %v2329
      %v2331 = vadd.f32 %v2330, 0.0
      %v2333 = vsel %vm762, %v2053, 0
      %v2336 = vsel %vm762, %v2058, 0
      %v2339 = vsel %vm762, %v2156, 0
      %v2342 = vsel %vm762, %v2161, 0
      %v2345 = vsel %vm762, %v2166, 0
      %v2348 = vsel %vm762, %v2171, 0
      %v2351 = vsel %vm762, %v2176, 0
      %v2354 = vsel %vm762, %v2181, 0
      %v2357 = vsel %vm762, %v2186, 0
      %v2360 = vsel %vm762, %v2191, 0
      %2362 = vmatprep.subr.mxu0 0.0
      %2363 = vmatpush1.xpose.msra.mxu0 %v2339
      %2364 = vmatprep.subr.mxu0 0.0
      %2365 = vmatpush1.xpose.msra.mxu0 %v2342
      %2366 = vmatprep.subr.mxu0 0.0
      %2367 = vmatpush1.xpose.msra.mxu0 %v2345
      %2368 = vmatprep.subr.mxu0 0.0
      %2369 = vmatpush1.xpose.msra.mxu0 %v2348
      %2370 = vmatprep.subr.mxu0 0.0
      %2371 = vmatpush1.xpose.msra.mxu0 %v2351
      %2372 = vmatprep.subr.mxu0 0.0
      %2373 = vmatpush1.xpose.msra.mxu0 %v2354
      %2374 = vmatprep.subr.mxu0 0.0
      %2375 = vmatpush1.xpose.msra.mxu0 %v2357
      %2376 = vmatprep.subr.mxu0 0.0
      %2377 = vmatpush1.xpose.msra.mxu0 %v2360
      %2378 = vmatprep.subr.mxu0 0.0
      %2379 = vmatpush1.xpose.msra.mxu0 0.0
      %2380 = vmatprep.subr.mxu0 0.0
      %2381 = vmatpush1.xpose.msra.mxu0 0.0
      %2382 = vmatprep.subr.mxu0 0.0
      %2383 = vmatpush1.xpose.msra.mxu0 0.0
      %2384 = vmatprep.subr.mxu0 0.0
      %2385 = vmatpush1.xpose.msra.mxu0 0.0
      %2386 = vmatprep.subr.mxu0 0.0
      %2387 = vmatpush1.xpose.msra.mxu0 0.0
      %2388 = vmatprep.subr.mxu0 0.0
      %2389 = vmatpush1.xpose.msra.mxu0 0.0
      %2390 = vmatprep.subr.mxu0 0.0
      %2391 = vmatpush1.xpose.msra.mxu0 0.0
      %2392 = vmatprep.subr.mxu0 0.0
      %2393 = vmatpush1.xpose.msra.mxu0 0.0
      %2394 = vmatprep.subr.mxu0 0.0
      %2395 = vmatpush1.xpose.msra.mxu0 0.0
      %2396 = vmatprep.subr.mxu0 0.0
      %2397 = vmatpush1.xpose.msra.mxu0 0.0
      %2398 = vmatprep.subr.mxu0 0.0
      %2399 = vmatpush1.xpose.msra.mxu0 0.0
      %2400 = vmatprep.subr.mxu0 0.0
      %2401 = vmatpush1.xpose.msra.mxu0 0.0
      %2402 = vmatprep.subr.mxu0 0.0
      %2403 = vmatpush1.xpose.msra.mxu0 0.0
      %2404 = vmatprep.subr.mxu0 0.0
      %2405 = vmatpush1.xpose.msra.mxu0 0.0
      %2406 = vmatprep.subr.mxu0 0.0
      %2407 = vmatpush1.xpose.msra.mxu0 0.0
      %2408 = vmatprep.subr.mxu0 0.0
      %2409 = vmatpush1.xpose.msra.mxu0 0.0
      %2410 = vmatprep.subr.mxu0 0.0
      %2411 = vmatpush1.xpose.msra.mxu0 0.0
      %2412 = vmatprep.subr.mxu0 0.0
      %2413 = vmatpush1.xpose.msra.mxu0 0.0
      %2414 = vmatprep.subr.mxu0 0.0
      %2415 = vmatpush1.xpose.msra.mxu0 0.0
      %2416 = vmatprep.subr.mxu0 0.0
      %2417 = vmatpush1.xpose.msra.mxu0 0.0
      %2418 = vmatprep.subr.mxu0 0.0
      %2419 = vmatpush1.xpose.msra.mxu0 0.0
      %2420 = vmatprep.subr.mxu0 0.0
      %2421 = vmatpush1.xpose.msra.mxu0 0.0
      %2422 = vmatprep.subr.mxu0 0.0
      %2423 = vmatpush1.xpose.msra.mxu0 0.0
      %2424 = vmatprep.subr.mxu0 0.0
      %2425 = vmatpush1.xpose.msra.mxu0 0.0
      %2426 = vmatprep.mubr.f32.mxu0 0.0
      %2427 = vmatmul.mubr.f32.gmra.mrb[0].mxu0 %v2333
      %v2428 = vpop.f32.mrb[0].mxu0
      %v2429 = vadd.f32 0.0, %v2428
      %v2430 = vpop.f32.mrb[0].mxu0
      %2431 = vmatprep.mubr.f32.mxu0 0.0
      %2432 = vmatmul.mubr.f32.gmra.mrb[0].mxu0 %v2336
      %v2433 = vpop.f32.mrb[0].mxu0
      %v2434 = vadd.f32 0.0, %v2433
      %v2435 = vpop.f32.mrb[0].mxu0
      %2436 = vdwg.mxu0
      %v2437 = vmul.f32 %v2429, 0.35355338
      %v2438 = vmul.f32 %v2434, 0.35355338
      %v2440 = vlaneseq
      %v2441 = vshrl.u32 %v2440, 7
      %v2442 = vsub.s32 0, %v2441
      %v2443 = vrot.slane %v1955, %v2442
      %v2445 = vadd.f32 %v2437, %v2443
      %v2446 = vadd.f32 %v2438, %v2443
      %vm2447 = vcmask 523264
      %v2448 = vsel %vm2447, %v2445, -inf
      %2449 = vmax.xlane.f32.xlu0 %v2448
      %v2450 = vpop.xlane.xlu0 %2449
      %v2451 = vsel %vm2447, %v2446, -inf
      %2452 = vmax.xlane.f32.xlu0 %v2451
      %v2453 = vpop.xlane.xlu0 %2452
      %v2454 = vsub.f32 %v2445, %v2450
      %v2455 = vsub.f32 %v2446, %v2453
      %v2456 = vmul.f32 %v2454, 1.442695
      %v2457 = vpow.pop %v2456
      %v2458 = vmul.f32 %v2455, 1.442695
      %v2459 = vpow.pop %v2458
      %v2460 = vsel %vm2447, %v2457, 0.0
      %2461 = vadd.xlane.f32.xlu0 %v2460
      %v2462 = vpop.xlane.xlu0 %2461
      %v2463 = vsel %vm2447, %v2459, 0.0
      %2464 = vadd.xlane.f32.xlu0 %v2463
      %v2465 = vpop.xlane.xlu0 %2464
      %v2466 = vrcp.pop %v2462
      %v2467 = vrcp.pop %v2465
      %v2468 = vmul.f32 %v2457, %v2466
      %v2469 = vmul.f32 %v2459, %v2467
      %v2471 = vsel %vm2447, %v2468, 0
      %v2474 = vsel %vm2447, %v2469, 0
      %2476 = vmatprep.subr.mxu0 0.0
      %2477 = vmatpush1.msra.mxu0 %v2289
      %2478 = vmatprep.subr.mxu0 0.0
      %2479 = vmatpush1.msra.mxu0 %v2294
      %2480 = vmatprep.subr.mxu0 0.0
      %2481 = vmatpush1.msra.mxu0 %v2299
      %2482 = vmatprep.subr.mxu0 0.0
      %2483 = vmatpush1.msra.mxu0 %v2304
      %2484 = vmatprep.subr.mxu0 0.0
      %2485 = vmatpush1.msra.mxu0 %v2309
      %2486 = vmatprep.subr.mxu0 0.0
      %2487 = vmatpush1.msra.mxu0 %v2314
      %2488 = vmatprep.subr.mxu0 0.0
      %2489 = vmatpush1.msra.mxu0 %v2319
      %2490 = vmatprep.subr.mxu0 0.0
      %2491 = vmatpush1.msra.mxu0 %v2324
      %2492 = vmatprep.subr.mxu0 0.0
      %2493 = vmatpush1.msra.mxu0 0.0
      %2494 = vmatprep.subr.mxu0 0.0
      %2495 = vmatpush1.msra.mxu0 0.0
      %2496 = vmatprep.subr.mxu0 0.0
      %2497 = vmatpush1.msra.mxu0 0.0
      %2498 = vmatprep.subr.mxu0 0.0
      %2499 = vmatpush1.msra.mxu0 0.0
      %2500 = vmatprep.subr.mxu0 0.0
      %2501 = vmatpush1.msra.mxu0 0.0
      %2502 = vmatprep.subr.mxu0 0.0
      %2503 = vmatpush1.msra.mxu0 0.0
      %2504 = vmatprep.subr.mxu0 0.0
      %2505 = vmatpush1.msra.mxu0 0.0
      %2506 = vmatprep.subr.mxu0 0.0
      %2507 = vmatpush1.msra.mxu0 0.0
      %2508 = vmatprep.subr.mxu0 0.0
      %2509 = vmatpush1.msra.mxu0 0.0
      %2510 = vmatprep.subr.mxu0 0.0
      %2511 = vmatpush1.msra.mxu0 0.0
      %2512 = vmatprep.subr.mxu0 0.0
      %2513 = vmatpush1.msra.mxu0 0.0
      %2514 = vmatprep.subr.mxu0 0.0
      %2515 = vmatpush1.msra.mxu0 0.0
      %2516 = vmatprep.subr.mxu0 0.0
      %2517 = vmatpush1.msra.mxu0 0.0
      %2518 = vmatprep.subr.mxu0 0.0
      %2519 = vmatpush1.msra.mxu0 0.0
      %2520 = vmatprep.subr.mxu0 0.0
      %2521 = vmatpush1.msra.mxu0 0.0
      %2522 = vmatprep.subr.mxu0 0.0
      %2523 = vmatpush1.msra.mxu0 0.0
      %2524 = vmatprep.subr.mxu0 0.0
      %2525 = vmatpush1.msra.mxu0 0.0
      %2526 = vmatprep.subr.mxu0 0.0
      %2527 = vmatpush1.msra.mxu0 0.0
      %2528 = vmatprep.subr.mxu0 0.0
      %2529 = vmatpush1.msra.mxu0 0.0
      %2530 = vmatprep.subr.mxu0 0.0
      %2531 = vmatpush1.msra.mxu0 0.0
      %2532 = vmatprep.subr.mxu0 0.0
      %2533 = vmatpush1.msra.mxu0 0.0
      %2534 = vmatprep.subr.mxu0 0.0
      %2535 = vmatpush1.msra.mxu0 0.0
      %2536 = vmatprep.subr.mxu0 0.0
      %2537 = vmatpush1.msra.mxu0 0.0
      %2538 = vmatprep.subr.mxu0 0.0
      %2539 = vmatpush1.msra.mxu0 0.0
      %2540 = vmatprep.mubr.f32.mxu0 0.0
      %2541 = vmatmul.mubr.f32.gmra.mrb[0].mxu0 %v2471
      %v2542 = vpop.f32.mrb[0].mxu0
      %v2543 = vadd.f32 0.0, %v2542
      %v2544 = vpop.f32.mrb[0].mxu0
      %2545 = vmatprep.mubr.f32.mxu0 0.0
      %2546 = vmatmul.mubr.f32.gmra.mrb[0].mxu0 %v2474
      %v2547 = vpop.f32.mrb[0].mxu0
      %v2548 = vadd.f32 0.0, %v2547
      %v2549 = vpop.f32.mrb[0].mxu0
      %2550 = vdwg.mxu0
      %v2552 = vsel %vm762, %v2543, 0
      %v2555 = vsel %vm762, %v2548, 0
      %2557 = vmatprep.subr.mxu0 0.0
      %2558 = vmatpush1.msra.mxu0 %v1972
      %2559 = vmatprep.subr.mxu0 0.0
      %2560 = vmatpush1.msra.mxu0 0.0
      %2561 = vmatprep.subr.mxu0 0.0
      %2562 = vmatpush1.msra.mxu0 0.0
      %2563 = vmatprep.subr.mxu0 0.0
      %2564 = vmatpush1.msra.mxu0 0.0
      %2565 = vmatprep.subr.mxu0 0.0
      %2566 = vmatpush1.msra.mxu0 0.0
      %2567 = vmatprep.subr.mxu0 0.0
      %2568 = vmatpush1.msra.mxu0 0.0
      %2569 = vmatprep.subr.mxu0 0.0
      %2570 = vmatpush1.msra.mxu0 0.0
      %2571 = vmatprep.subr.mxu0 0.0
      %2572 = vmatpush1.msra.mxu0 0.0
      %2573 = vmatprep.subr.mxu0 0.0
      %2574 = vmatpush1.msra.mxu0 0.0
      %2575 = vmatprep.subr.mxu0 0.0
      %2576 = vmatpush1.msra.mxu0 0.0
      %2577 = vmatprep.subr.mxu0 0.0
      %2578 = vmatpush1.msra.mxu0 0.0
      %2579 = vmatprep.subr.mxu0 0.0
      %2580 = vmatpush1.msra.mxu0 0.0
      %2581 = vmatprep.subr.mxu0 0.0
      %2582 = vmatpush1.msra.mxu0 0.0
      %2583 = vmatprep.subr.mxu0 0.0
      %2584 = vmatpush1.msra.mxu0 0.0
      %2585 = vmatprep.subr.mxu0 0.0
      %2586 = vmatpush1.msra.mxu0 0.0
      %2587 = vmatprep.subr.mxu0 0.0
      %2588 = vmatpush1.msra.mxu0 0.0
      %2589 = vmatprep.subr.mxu0 0.0
      %2590 = vmatpush1.msra.mxu0 0.0
      %2591 = vmatprep.subr.mxu0 0.0
      %2592 = vmatpush1.msra.mxu0 0.0
      %2593 = vmatprep.subr.mxu0 0.0
      %2594 = vmatpush1.msra.mxu0 0.0
      %2595 = vmatprep.subr.mxu0 0.0
      %2596 = vmatpush1.msra.mxu0 0.0
      %2597 = vmatprep.subr.mxu0 0.0
      %2598 = vmatpush1.msra.mxu0 0.0
      %2599 = vmatprep.subr.mxu0 0.0
      %2600 = vmatpush1.msra.mxu0 0.0
      %2601 = vmatprep.subr.mxu0 0.0
      %2602 = vmatpush1.msra.mxu0 0.0
      %2603 = vmatprep.subr.mxu0 0.0
      %2604 = vmatpush1.msra.mxu0 0.0
      %2605 = vmatprep.subr.mxu0 0.0
      %2606 = vmatpush1.msra.mxu0 0.0
      %2607 = vmatprep.subr.mxu0 0.0
      %2608 = vmatpush1.msra.mxu0 0.0
      %2609 = vmatprep.subr.mxu0 0.0
      %2610 = vmatpush1.msra.mxu0 0.0
      %2611 = vmatprep.subr.mxu0 0.0
      %2612 = vmatpush1.msra.mxu0 0.0
      %2613 = vmatprep.subr.mxu0 0.0
      %2614 = vmatpush1.msra.mxu0 0.0
      %2615 = vmatprep.subr.mxu0 0.0
      %2616 = vmatpush1.msra.mxu0 0.0
      %2617 = vmatprep.subr.mxu0 0.0
      %2618 = vmatpush1.msra.mxu0 0.0
      %2619 = vmatprep.subr.mxu0 0.0
      %2620 = vmatpush1.msra.mxu0 0.0
      %2621 = vmatprep.mubr.f32.mxu0 0.0
      %2622 = vmatmul.mubr.f32.gmra.mrb[0].mxu0 %v2552
      %v2623 = vpop.f32.mrb[0].mxu0
      %v2624 = vadd.f32 0.0, %v2623
      %v2625 = vpop.f32.mrb[0].mxu0
      %2626 = vmatprep.mubr.f32.mxu0 0.0
      %2627 = vmatmul.mubr.f32.gmra.mrb[0].mxu0 %v2555
      %v2628 = vpop.f32.mrb[0].mxu0
      %v2629 = vadd.f32 0.0, %v2628
      %v2630 = vpop.f32.mrb[0].mxu0
      %2631 = vdwg.mxu0
      %v2632 = vadd.f32 %v2331, %v2624
      %v2633 = vadd.f32 %v2331, %v2629
      %2634 = vrot.lane.b32.xlu0 %v2053, 120
      %v2635 = vpop.permute.xlu0 %2634
      %2636 = vrot.lane.b32.xlu0 %v2058, 120
      %v2637 = vpop.permute.xlu0 %2636
      %2638 = vrot.lane.b32.xlu0 %v2156, 120
      %v2639 = vpop.permute.xlu0 %2638
      %2640 = vrot.lane.b32.xlu0 %v2161, 120
      %v2641 = vpop.permute.xlu0 %2640
      %2642 = vrot.lane.b32.xlu0 %v2166, 120
      %v2643 = vpop.permute.xlu0 %2642
      %2644 = vrot.lane.b32.xlu0 %v2171, 120
      %v2645 = vpop.permute.xlu0 %2644
      %2646 = vrot.lane.b32.xlu0 %v2176, 120
      %v2647 = vpop.permute.xlu0 %2646
      %2648 = vrot.lane.b32.xlu0 %v2181, 120
      %v2649 = vpop.permute.xlu0 %2648
      %2650 = vrot.lane.b32.xlu0 %v2186, 120
      %v2651 = vpop.permute.xlu0 %2650
      %2652 = vrot.lane.b32.xlu0 %v2191, 120
      %v2653 = vpop.permute.xlu0 %2652
      %v2654 = vsel %vm762, %v2635, 0
      %v2656 = vsel %vm762, %v2637, 0
      %v2658 = vsel %vm762, %v2639, 0
      %v2660 = vsel %vm762, %v2641, 0
      %v2662 = vsel %vm762, %v2643, 0
      %v2664 = vsel %vm762, %v2645, 0
      %v2666 = vsel %vm762, %v2647, 0
      %v2668 = vsel %vm762, %v2649, 0
      %v2670 = vsel %vm762, %v2651, 0
      %v2672 = vsel %vm762, %v2653, 0
      %2674 = vmatprep.subr.mxu0 0.0
      %2675 = vmatpush1.xpose.msra.mxu0 %v2658
      %2676 = vmatprep.subr.mxu0 0.0
      %2677 = vmatpush1.xpose.msra.mxu0 %v2660
      %2678 = vmatprep.subr.mxu0 0.0
      %2679 = vmatpush1.xpose.msra.mxu0 %v2662
      %2680 = vmatprep.subr.mxu0 0.0
      %2681 = vmatpush1.xpose.msra.mxu0 %v2664
      %2682 = vmatprep.subr.mxu0 0.0
      %2683 = vmatpush1.xpose.msra.mxu0 %v2666
      %2684 = vmatprep.subr.mxu0 0.0
      %2685 = vmatpush1.xpose.msra.mxu0 %v2668
      %2686 = vmatprep.subr.mxu0 0.0
      %2687 = vmatpush1.xpose.msra.mxu0 %v2670
      %2688 = vmatprep.subr.mxu0 0.0
      %2689 = vmatpush1.xpose.msra.mxu0 %v2672
      %2690 = vmatprep.subr.mxu0 0.0
      %2691 = vmatpush1.xpose.msra.mxu0 0.0
      %2692 = vmatprep.subr.mxu0 0.0
      %2693 = vmatpush1.xpose.msra.mxu0 0.0
      %2694 = vmatprep.subr.mxu0 0.0
      %2695 = vmatpush1.xpose.msra.mxu0 0.0
      %2696 = vmatprep.subr.mxu0 0.0
      %2697 = vmatpush1.xpose.msra.mxu0 0.0
      %2698 = vmatprep.subr.mxu0 0.0
      %2699 = vmatpush1.xpose.msra.mxu0 0.0
      %2700 = vmatprep.subr.mxu0 0.0
      %2701 = vmatpush1.xpose.msra.mxu0 0.0
      %2702 = vmatprep.subr.mxu0 0.0
      %2703 = vmatpush1.xpose.msra.mxu0 0.0
      %2704 = vmatprep.subr.mxu0 0.0
      %2705 = vmatpush1.xpose.msra.mxu0 0.0
      %2706 = vmatprep.subr.mxu0 0.0
      %2707 = vmatpush1.xpose.msra.mxu0 0.0
      %2708 = vmatprep.subr.mxu0 0.0
      %2709 = vmatpush1.xpose.msra.mxu0 0.0
      %2710 = vmatprep.subr.mxu0 0.0
      %2711 = vmatpush1.xpose.msra.mxu0 0.0
      %2712 = vmatprep.subr.mxu0 0.0
      %2713 = vmatpush1.xpose.msra.mxu0 0.0
      %2714 = vmatprep.subr.mxu0 0.0
      %2715 = vmatpush1.xpose.msra.mxu0 0.0
      %2716 = vmatprep.subr.mxu0 0.0
      %2717 = vmatpush1.xpose.msra.mxu0 0.0
      %2718 = vmatprep.subr.mxu0 0.0
      %2719 = vmatpush1.xpose.msra.mxu0 0.0
      %2720 = vmatprep.subr.mxu0 0.0
      %2721 = vmatpush1.xpose.msra.mxu0 0.0
      %2722 = vmatprep.subr.mxu0 0.0
      %2723 = vmatpush1.xpose.msra.mxu0 0.0
      %2724 = vmatprep.subr.mxu0 0.0
      %2725 = vmatpush1.xpose.msra.mxu0 0.0
      %2726 = vmatprep.subr.mxu0 0.0
      %2727 = vmatpush1.xpose.msra.mxu0 0.0
      %2728 = vmatprep.subr.mxu0 0.0
      %2729 = vmatpush1.xpose.msra.mxu0 0.0
      %2730 = vmatprep.subr.mxu0 0.0
      %2731 = vmatpush1.xpose.msra.mxu0 0.0
      %2732 = vmatprep.subr.mxu0 0.0
      %2733 = vmatpush1.xpose.msra.mxu0 0.0
      %2734 = vmatprep.subr.mxu0 0.0
      %2735 = vmatpush1.xpose.msra.mxu0 0.0
      %2736 = vmatprep.subr.mxu0 0.0
      %2737 = vmatpush1.xpose.msra.mxu0 0.0
      %2738 = vmatprep.mubr.f32.mxu0 0.0
      %2739 = vmatmul.mubr.f32.gmra.mrb[0].mxu0 %v2654
      %v2740 = vpop.f32.mrb[0].mxu0
      %v2741 = vadd.f32 0.0, %v2740
      %v2742 = vpop.f32.mrb[0].mxu0
      %2743 = vmatprep.mubr.f32.mxu0 0.0
      %2744 = vmatmul.mubr.f32.gmra.mrb[0].mxu0 %v2656
      %v2745 = vpop.f32.mrb[0].mxu0
      %v2746 = vadd.f32 0.0, %v2745
      %v2747 = vpop.f32.mrb[0].mxu0
      %2748 = vdwg.mxu0
      %v2749 = vmul.f32 %v2741, 0.35355338
      %v2750 = vmul.f32 %v2746, 0.35355338
      %v2751 = vadd.f32 %v2749, %v2443
      %v2752 = vadd.f32 %v2750, %v2443
      %v2753 = vsel %vm2447, %v2751, -inf
      %2754 = vmax.xlane.f32.xlu0 %v2753
      %v2755 = vpop.xlane.xlu0 %2754
      %v2756 = vsel %vm2447, %v2752, -inf
      %2757 = vmax.xlane.f32.xlu0 %v2756
      %v2758 = vpop.xlane.xlu0 %2757
      %v2759 = vsub.f32 %v2751, %v2755
      %v2760 = vsub.f32 %v2752, %v2758
      %v2761 = vmul.f32 %v2759, 1.442695
      %v2762 = vpow.pop %v2761
      %v2763 = vmul.f32 %v2760, 1.442695
      %v2764 = vpow.pop %v2763
      %v2765 = vsel %vm2447, %v2762, 0.0
      %2766 = vadd.xlane.f32.xlu0 %v2765
      %v2767 = vpop.xlane.xlu0 %2766
      %v2768 = vsel %vm2447, %v2764, 0.0
      %2769 = vadd.xlane.f32.xlu0 %v2768
      %v2770 = vpop.xlane.xlu0 %2769
      %v2771 = vrcp.pop %v2767
      %v2772 = vrcp.pop %v2770
      %v2773 = vmul.f32 %v2762, %v2771
      %v2774 = vmul.f32 %v2764, %v2772
      %2783 = vrot.lane.b32.xlu0 %v2289, 120
      %v2784 = vpop.permute.xlu0 %2783
      %2785 = vrot.lane.b32.xlu0 %v2294, 120
      %v2786 = vpop.permute.xlu0 %2785
      %2787 = vrot.lane.b32.xlu0 %v2299, 120
      %v2788 = vpop.permute.xlu0 %2787
      %2789 = vrot.lane.b32.xlu0 %v2304, 120
      %v2790 = vpop.permute.xlu0 %2789
      %2791 = vrot.lane.b32.xlu0 %v2309, 120
      %v2792 = vpop.permute.xlu0 %2791
      %2793 = vrot.lane.b32.xlu0 %v2314, 120
      %v2794 = vpop.permute.xlu0 %2793
      %2795 = vrot.lane.b32.xlu0 %v2319, 120
      %v2796 = vpop.permute.xlu0 %2795
      %2797 = vrot.lane.b32.xlu0 %v2324, 120
      %v2798 = vpop.permute.xlu0 %2797
      %v2808 = vsel %vm2447, %v2773, 0
      %v2811 = vsel %vm2447, %v2774, 0
      %2813 = vmatprep.subr.mxu0 0.0
      %2814 = vmatpush1.msra.mxu0 %v2784
      %2815 = vmatprep.subr.mxu0 0.0
      %2816 = vmatpush1.msra.mxu0 %v2786
      %2817 = vmatprep.subr.mxu0 0.0
      %2818 = vmatpush1.msra.mxu0 %v2788
      %2819 = vmatprep.subr.mxu0 0.0
      %2820 = vmatpush1.msra.mxu0 %v2790
      %2821 = vmatprep.subr.mxu0 0.0
      %2822 = vmatpush1.msra.mxu0 %v2792
      %2823 = vmatprep.subr.mxu0 0.0
      %2824 = vmatpush1.msra.mxu0 %v2794
      %2825 = vmatprep.subr.mxu0 0.0
      %2826 = vmatpush1.msra.mxu0 %v2796
      %2827 = vmatprep.subr.mxu0 0.0
      %2828 = vmatpush1.msra.mxu0 %v2798
      %2829 = vmatprep.subr.mxu0 0.0
      %2830 = vmatpush1.msra.mxu0 0.0
      %2831 = vmatprep.subr.mxu0 0.0
      %2832 = vmatpush1.msra.mxu0 0.0
      %2833 = vmatprep.subr.mxu0 0.0
      %2834 = vmatpush1.msra.mxu0 0.0
      %2835 = vmatprep.subr.mxu0 0.0
      %2836 = vmatpush1.msra.mxu0 0.0
      %2837 = vmatprep.subr.mxu0 0.0
      %2838 = vmatpush1.msra.mxu0 0.0
      %2839 = vmatprep.subr.mxu0 0.0
      %2840 = vmatpush1.msra.mxu0 0.0
      %2841 = vmatprep.subr.mxu0 0.0
      %2842 = vmatpush1.msra.mxu0 0.0
      %2843 = vmatprep.subr.mxu0 0.0
      %2844 = vmatpush1.msra.mxu0 0.0
      %2845 = vmatprep.subr.mxu0 0.0
      %2846 = vmatpush1.msra.mxu0 0.0
      %2847 = vmatprep.subr.mxu0 0.0
      %2848 = vmatpush1.msra.mxu0 0.0
      %2849 = vmatprep.subr.mxu0 0.0
      %2850 = vmatpush1.msra.mxu0 0.0
      %2851 = vmatprep.subr.mxu0 0.0
      %2852 = vmatpush1.msra.mxu0 0.0
      %2853 = vmatprep.subr.mxu0 0.0
      %2854 = vmatpush1.msra.mxu0 0.0
      %2855 = vmatprep.subr.mxu0 0.0
      %2856 = vmatpush1.msra.mxu0 0.0
      %2857 = vmatprep.subr.mxu0 0.0
      %2858 = vmatpush1.msra.mxu0 0.0
      %2859 = vmatprep.subr.mxu0 0.0
      %2860 = vmatpush1.msra.mxu0 0.0
      %2861 = vmatprep.subr.mxu0 0.0
      %2862 = vmatpush1.msra.mxu0 0.0
      %2863 = vmatprep.subr.mxu0 0.0
      %2864 = vmatpush1.msra.mxu0 0.0
      %2865 = vmatprep.subr.mxu0 0.0
      %2866 = vmatpush1.msra.mxu0 0.0
      %2867 = vmatprep.subr.mxu0 0.0
      %2868 = vmatpush1.msra.mxu0 0.0
      %2869 = vmatprep.subr.mxu0 0.0
      %2870 = vmatpush1.msra.mxu0 0.0
      %2871 = vmatprep.subr.mxu0 0.0
      %2872 = vmatpush1.msra.mxu0 0.0
      %2873 = vmatprep.subr.mxu0 0.0
      %2874 = vmatpush1.msra.mxu0 0.0
      %2875 = vmatprep.subr.mxu0 0.0
      %2876 = vmatpush1.msra.mxu0 0.0
      %2877 = vmatprep.mubr.f32.mxu0 0.0
      %2878 = vmatmul.mubr.f32.gmra.mrb[0].mxu0 %v2808
      %v2879 = vpop.f32.mrb[0].mxu0
      %v2880 = vadd.f32 0.0, %v2879
      %v2881 = vpop.f32.mrb[0].mxu0
      %2882 = vmatprep.mubr.f32.mxu0 0.0
      %2883 = vmatmul.mubr.f32.gmra.mrb[0].mxu0 %v2811
      %v2884 = vpop.f32.mrb[0].mxu0
      %v2885 = vadd.f32 0.0, %v2884
      %v2886 = vpop.f32.mrb[0].mxu0
      %2887 = vdwg.mxu0
      %v2889 = vsel %vm762, %v2880, 0
      %v2892 = vsel %vm762, %v2885, 0
      %2894 = vmatprep.subr.mxu0 0.0
      %2895 = vmatpush1.msra.mxu0 %v1973
      %2896 = vmatprep.subr.mxu0 0.0
      %2897 = vmatpush1.msra.mxu0 0.0
      %2898 = vmatprep.subr.mxu0 0.0
      %2899 = vmatpush1.msra.mxu0 0.0
      %2900 = vmatprep.subr.mxu0 0.0
      %2901 = vmatpush1.msra.mxu0 0.0
      %2902 = vmatprep.subr.mxu0 0.0
      %2903 = vmatpush1.msra.mxu0 0.0
      %2904 = vmatprep.subr.mxu0 0.0
      %2905 = vmatpush1.msra.mxu0 0.0
      %2906 = vmatprep.subr.mxu0 0.0
      %2907 = vmatpush1.msra.mxu0 0.0
      %2908 = vmatprep.subr.mxu0 0.0
      %2909 = vmatpush1.msra.mxu0 0.0
      %2910 = vmatprep.subr.mxu0 0.0
      %2911 = vmatpush1.msra.mxu0 0.0
      %2912 = vmatprep.subr.mxu0 0.0
      %2913 = vmatpush1.msra.mxu0 0.0
      %2914 = vmatprep.subr.mxu0 0.0
      %2915 = vmatpush1.msra.mxu0 0.0
      %2916 = vmatprep.subr.mxu0 0.0
      %2917 = vmatpush1.msra.mxu0 0.0
      %2918 = vmatprep.subr.mxu0 0.0
      %2919 = vmatpush1.msra.mxu0 0.0
      %2920 = vmatprep.subr.mxu0 0.0
      %2921 = vmatpush1.msra.mxu0 0.0
      %2922 = vmatprep.subr.mxu0 0.0
      %2923 = vmatpush1.msra.mxu0 0.0
      %2924 = vmatprep.subr.mxu0 0.0
      %2925 = vmatpush1.msra.mxu0 0.0
      %2926 = vmatprep.subr.mxu0 0.0
      %2927 = vmatpush1.msra.mxu0 0.0
      %2928 = vmatprep.subr.mxu0 0.0
      %2929 = vmatpush1.msra.mxu0 0.0
      %2930 = vmatprep.subr.mxu0 0.0
      %2931 = vmatpush1.msra.mxu0 0.0
      %2932 = vmatprep.subr.mxu0 0.0
      %2933 = vmatpush1.msra.mxu0 0.0
      %2934 = vmatprep.subr.mxu0 0.0
      %2935 = vmatpush1.msra.mxu0 0.0
      %2936 = vmatprep.subr.mxu0 0.0
      %2937 = vmatpush1.msra.mxu0 0.0
      %2938 = vmatprep.subr.mxu0 0.0
      %2939 = vmatpush1.msra.mxu0 0.0
      %2940 = vmatprep.subr.mxu0 0.0
      %2941 = vmatpush1.msra.mxu0 0.0
      %2942 = vmatprep.subr.mxu0 0.0
      %2943 = vmatpush1.msra.mxu0 0.0
      %2944 = vmatprep.subr.mxu0 0.0
      %2945 = vmatpush1.msra.mxu0 0.0
      %2946 = vmatprep.subr.mxu0 0.0
      %2947 = vmatpush1.msra.mxu0 0.0
      %2948 = vmatprep.subr.mxu0 0.0
      %2949 = vmatpush1.msra.mxu0 0.0
      %2950 = vmatprep.subr.mxu0 0.0
      %2951 = vmatpush1.msra.mxu0 0.0
      %2952 = vmatprep.subr.mxu0 0.0
      %2953 = vmatpush1.msra.mxu0 0.0
      %2954 = vmatprep.subr.mxu0 0.0
      %2955 = vmatpush1.msra.mxu0 0.0
      %2956 = vmatprep.subr.mxu0 0.0
      %2957 = vmatpush1.msra.mxu0 0.0
      %2958 = vmatprep.mubr.f32.mxu0 0.0
      %2959 = vmatmul.mubr.f32.gmra.mrb[0].mxu0 %v2889
      %v2960 = vpop.f32.mrb[0].mxu0
      %v2961 = vadd.f32 0.0, %v2960
      %v2962 = vpop.f32.mrb[0].mxu0
      %2963 = vmatprep.mubr.f32.mxu0 0.0
      %2964 = vmatmul.mubr.f32.gmra.mrb[0].mxu0 %v2892
      %v2965 = vpop.f32.mrb[0].mxu0
      %v2966 = vadd.f32 0.0, %v2965
      %v2967 = vpop.f32.mrb[0].mxu0
      %2968 = vdwg.mxu0
      %v2969 = vadd.f32 %v2632, %v2961
      %v2970 = vadd.f32 %v2633, %v2966
      %2971 = vrot.lane.b32.xlu0 %v2053, 112
      %v2972 = vpop.permute.xlu0 %2971
      %2973 = vrot.lane.b32.xlu0 %v2058, 112
      %v2974 = vpop.permute.xlu0 %2973
      %2975 = vrot.lane.b32.xlu0 %v2156, 112
      %v2976 = vpop.permute.xlu0 %2975
      %2977 = vrot.lane.b32.xlu0 %v2161, 112
      %v2978 = vpop.permute.xlu0 %2977
      %2979 = vrot.lane.b32.xlu0 %v2166, 112
      %v2980 = vpop.permute.xlu0 %2979
      %2981 = vrot.lane.b32.xlu0 %v2171, 112
      %v2982 = vpop.permute.xlu0 %2981
      %2983 = vrot.lane.b32.xlu0 %v2176, 112
      %v2984 = vpop.permute.xlu0 %2983
      %2985 = vrot.lane.b32.xlu0 %v2181, 112
      %v2986 = vpop.permute.xlu0 %2985
      %2987 = vrot.lane.b32.xlu0 %v2186, 112
      %v2988 = vpop.permute.xlu0 %2987
      %2989 = vrot.lane.b32.xlu0 %v2191, 112
      %v2990 = vpop.permute.xlu0 %2989
      %v2991 = vsel %vm762, %v2972, 0
      %v2993 = vsel %vm762, %v2974, 0
      %v2995 = vsel %vm762, %v2976, 0
      %v2997 = vsel %vm762, %v2978, 0
      %v2999 = vsel %vm762, %v2980, 0
      %v3001 = vsel %vm762, %v2982, 0
      %v3003 = vsel %vm762, %v2984, 0
      %v3005 = vsel %vm762, %v2986, 0
      %v3007 = vsel %vm762, %v2988, 0
      %v3009 = vsel %vm762, %v2990, 0
      %3011 = vmatprep.subr.mxu0 0.0
      %3012 = vmatpush1.xpose.msra.mxu0 %v2995
      %3013 = vmatprep.subr.mxu0 0.0
      %3014 = vmatpush1.xpose.msra.mxu0 %v2997
      %3015 = vmatprep.subr.mxu0 0.0
      %3016 = vmatpush1.xpose.msra.mxu0 %v2999
      %3017 = vmatprep.subr.mxu0 0.0
      %3018 = vmatpush1.xpose.msra.mxu0 %v3001
      %3019 = vmatprep.subr.mxu0 0.0
      %3020 = vmatpush1.xpose.msra.mxu0 %v3003
      %3021 = vmatprep.subr.mxu0 0.0
      %3022 = vmatpush1.xpose.msra.mxu0 %v3005
      %3023 = vmatprep.subr.mxu0 0.0
      %3024 = vmatpush1.xpose.msra.mxu0 %v3007
      %3025 = vmatprep.subr.mxu0 0.0
      %3026 = vmatpush1.xpose.msra.mxu0 %v3009
      %3027 = vmatprep.subr.mxu0 0.0
      %3028 = vmatpush1.xpose.msra.mxu0 0.0
      %3029 = vmatprep.subr.mxu0 0.0
      %3030 = vmatpush1.xpose.msra.mxu0 0.0
      %3031 = vmatprep.subr.mxu0 0.0
      %3032 = vmatpush1.xpose.msra.mxu0 0.0
      %3033 = vmatprep.subr.mxu0 0.0
      %3034 = vmatpush1.xpose.msra.mxu0 0.0
      %3035 = vmatprep.subr.mxu0 0.0
      %3036 = vmatpush1.xpose.msra.mxu0 0.0
      %3037 = vmatprep.subr.mxu0 0.0
      %3038 = vmatpush1.xpose.msra.mxu0 0.0
      %3039 = vmatprep.subr.mxu0 0.0
      %3040 = vmatpush1.xpose.msra.mxu0 0.0
      %3041 = vmatprep.subr.mxu0 0.0
      %3042 = vmatpush1.xpose.msra.mxu0 0.0
      %3043 = vmatprep.subr.mxu0 0.0
      %3044 = vmatpush1.xpose.msra.mxu0 0.0
      %3045 = vmatprep.subr.mxu0 0.0
      %3046 = vmatpush1.xpose.msra.mxu0 0.0
      %3047 = vmatprep.subr.mxu0 0.0
      %3048 = vmatpush1.xpose.msra.mxu0 0.0
      %3049 = vmatprep.subr.mxu0 0.0
      %3050 = vmatpush1.xpose.msra.mxu0 0.0
      %3051 = vmatprep.subr.mxu0 0.0
      %3052 = vmatpush1.xpose.msra.mxu0 0.0
      %3053 = vmatprep.subr.mxu0 0.0
      %3054 = vmatpush1.xpose.msra.mxu0 0.0
      %3055 = vmatprep.subr.mxu0 0.0
      %3056 = vmatpush1.xpose.msra.mxu0 0.0
      %3057 = vmatprep.subr.mxu0 0.0
      %3058 = vmatpush1.xpose.msra.mxu0 0.0
      %3059 = vmatprep.subr.mxu0 0.0
      %3060 = vmatpush1.xpose.msra.mxu0 0.0
      %3061 = vmatprep.subr.mxu0 0.0
      %3062 = vmatpush1.xpose.msra.mxu0 0.0
      %3063 = vmatprep.subr.mxu0 0.0
      %3064 = vmatpush1.xpose.msra.mxu0 0.0
      %3065 = vmatprep.subr.mxu0 0.0
      %3066 = vmatpush1.xpose.msra.mxu0 0.0
      %3067 = vmatprep.subr.mxu0 0.0
      %3068 = vmatpush1.xpose.msra.mxu0 0.0
      %3069 = vmatprep.subr.mxu0 0.0
      %3070 = vmatpush1.xpose.msra.mxu0 0.0
      %3071 = vmatprep.subr.mxu0 0.0
      %3072 = vmatpush1.xpose.msra.mxu0 0.0
      %3073 = vmatprep.subr.mxu0 0.0
      %3074 = vmatpush1.xpose.msra.mxu0 0.0
      %3075 = vmatprep.mubr.f32.mxu0 0.0
      %3076 = vmatmul.mubr.f32.gmra.mrb[0].mxu0 %v2991
      %v3077 = vpop.f32.mrb[0].mxu0
      %v3078 = vadd.f32 0.0, %v3077
      %v3079 = vpop.f32.mrb[0].mxu0
      %3080 = vmatprep.mubr.f32.mxu0 0.0
      %3081 = vmatmul.mubr.f32.gmra.mrb[0].mxu0 %v2993
      %v3082 = vpop.f32.mrb[0].mxu0
      %v3083 = vadd.f32 0.0, %v3082
      %v3084 = vpop.f32.mrb[0].mxu0
      %3085 = vdwg.mxu0
      %v3086 = vmul.f32 %v3078, 0.35355338
      %v3087 = vmul.f32 %v3083, 0.35355338
      %v3088 = vadd.f32 %v3086, %v2443
      %v3089 = vadd.f32 %v3087, %v2443
      %v3090 = vsel %vm2447, %v3088, -inf
      %3091 = vmax.xlane.f32.xlu0 %v3090
      %v3092 = vpop.xlane.xlu0 %3091
      %v3093 = vsel %vm2447, %v3089, -inf
      %3094 = vmax.xlane.f32.xlu0 %v3093
      %v3095 = vpop.xlane.xlu0 %3094
      %v3096 = vsub.f32 %v3088, %v3092
      %v3097 = vsub.f32 %v3089, %v3095
      %v3098 = vmul.f32 %v3096, 1.442695
      %v3099 = vpow.pop %v3098
      %v3100 = vmul.f32 %v3097, 1.442695
      %v3101 = vpow.pop %v3100
      %v3102 = vsel %vm2447, %v3099, 0.0
      %3103 = vadd.xlane.f32.xlu0 %v3102
      %v3104 = vpop.xlane.xlu0 %3103
      %v3105 = vsel %vm2447, %v3101, 0.0
      %3106 = vadd.xlane.f32.xlu0 %v3105
      %v3107 = vpop.xlane.xlu0 %3106
      %v3108 = vrcp.pop %v3104
      %v3109 = vrcp.pop %v3107
      %v3110 = vmul.f32 %v3099, %v3108
      %v3111 = vmul.f32 %v3101, %v3109
      %3112 = vrot.lane.b32.xlu0 %v2289, 112
      %v3113 = vpop.permute.xlu0 %3112
      %3114 = vrot.lane.b32.xlu0 %v2294, 112
      %v3115 = vpop.permute.xlu0 %3114
      %3116 = vrot.lane.b32.xlu0 %v2299, 112
      %v3117 = vpop.permute.xlu0 %3116
      %3118 = vrot.lane.b32.xlu0 %v2304, 112
      %v3119 = vpop.permute.xlu0 %3118
      %3120 = vrot.lane.b32.xlu0 %v2309, 112
      %v3121 = vpop.permute.xlu0 %3120
      %3122 = vrot.lane.b32.xlu0 %v2314, 112
      %v3123 = vpop.permute.xlu0 %3122
      %3124 = vrot.lane.b32.xlu0 %v2319, 112
      %v3125 = vpop.permute.xlu0 %3124
      %3126 = vrot.lane.b32.xlu0 %v2324, 112
      %v3127 = vpop.permute.xlu0 %3126
      %v3137 = vsel %vm2447, %v3110, 0
      %v3140 = vsel %vm2447, %v3111, 0
      %3142 = vmatprep.subr.mxu0 0.0
      %3143 = vmatpush1.msra.mxu0 %v3113
      %3144 = vmatprep.subr.mxu0 0.0
      %3145 = vmatpush1.msra.mxu0 %v3115
      %3146 = vmatprep.subr.mxu0 0.0
      %3147 = vmatpush1.msra.mxu0 %v3117
      %3148 = vmatprep.subr.mxu0 0.0
      %3149 = vmatpush1.msra.mxu0 %v3119
      %3150 = vmatprep.subr.mxu0 0.0
      %3151 = vmatpush1.msra.mxu0 %v3121
      %3152 = vmatprep.subr.mxu0 0.0
      %3153 = vmatpush1.msra.mxu0 %v3123
      %3154 = vmatprep.subr.mxu0 0.0
      %3155 = vmatpush1.msra.mxu0 %v3125
      %3156 = vmatprep.subr.mxu0 0.0
      %3157 = vmatpush1.msra.mxu0 %v3127
      %3158 = vmatprep.subr.mxu0 0.0
      %3159 = vmatpush1.msra.mxu0 0.0
      %3160 = vmatprep.subr.mxu0 0.0
      %3161 = vmatpush1.msra.mxu0 0.0
      %3162 = vmatprep.subr.mxu0 0.0
      %3163 = vmatpush1.msra.mxu0 0.0
      %3164 = vmatprep.subr.mxu0 0.0
      %3165 = vmatpush1.msra.mxu0 0.0
      %3166 = vmatprep.subr.mxu0 0.0
      %3167 = vmatpush1.msra.mxu0 0.0
      %3168 = vmatprep.subr.mxu0 0.0
      %3169 = vmatpush1.msra.mxu0 0.0
      %3170 = vmatprep.subr.mxu0 0.0
      %3171 = vmatpush1.msra.mxu0 0.0
      %3172 = vmatprep.subr.mxu0 0.0
      %3173 = vmatpush1.msra.mxu0 0.0
      %3174 = vmatprep.subr.mxu0 0.0
      %3175 = vmatpush1.msra.mxu0 0.0
      %3176 = vmatprep.subr.mxu0 0.0
      %3177 = vmatpush1.msra.mxu0 0.0
      %3178 = vmatprep.subr.mxu0 0.0
      %3179 = vmatpush1.msra.mxu0 0.0
      %3180 = vmatprep.subr.mxu0 0.0
      %3181 = vmatpush1.msra.mxu0 0.0
      %3182 = vmatprep.subr.mxu0 0.0
      %3183 = vmatpush1.msra.mxu0 0.0
      %3184 = vmatprep.subr.mxu0 0.0
      %3185 = vmatpush1.msra.mxu0 0.0
      %3186 = vmatprep.subr.mxu0 0.0
      %3187 = vmatpush1.msra.mxu0 0.0
      %3188 = vmatprep.subr.mxu0 0.0
      %3189 = vmatpush1.msra.mxu0 0.0
      %3190 = vmatprep.subr.mxu0 0.0
      %3191 = vmatpush1.msra.mxu0 0.0
      %3192 = vmatprep.subr.mxu0 0.0
      %3193 = vmatpush1.msra.mxu0 0.0
      %3194 = vmatprep.subr.mxu0 0.0
      %3195 = vmatpush1.msra.mxu0 0.0
      %3196 = vmatprep.subr.mxu0 0.0
      %3197 = vmatpush1.msra.mxu0 0.0
      %3198 = vmatprep.subr.mxu0 0.0
      %3199 = vmatpush1.msra.mxu0 0.0
      %3200 = vmatprep.subr.mxu0 0.0
      %3201 = vmatpush1.msra.mxu0 0.0
      %3202 = vmatprep.subr.mxu0 0.0
      %3203 = vmatpush1.msra.mxu0 0.0
      %3204 = vmatprep.subr.mxu0 0.0
      %3205 = vmatpush1.msra.mxu0 0.0
      %3206 = vmatprep.mubr.f32.mxu0 0.0
      %3207 = vmatmul.mubr.f32.gmra.mrb[0].mxu0 %v3137
      %v3208 = vpop.f32.mrb[0].mxu0
      %v3209 = vadd.f32 0.0, %v3208
      %v3210 = vpop.f32.mrb[0].mxu0
      %3211 = vmatprep.mubr.f32.mxu0 0.0
      %3212 = vmatmul.mubr.f32.gmra.mrb[0].mxu0 %v3140
      %v3213 = vpop.f32.mrb[0].mxu0
      %v3214 = vadd.f32 0.0, %v3213
      %v3215 = vpop.f32.mrb[0].mxu0
      %3216 = vdwg.mxu0
      %v3218 = vsel %vm762, %v3209, 0
      %v3221 = vsel %vm762, %v3214, 0
      %3223 = vmatprep.subr.mxu0 0.0
      %3224 = vmatpush1.msra.mxu0 %v1974
      %3225 = vmatprep.subr.mxu0 0.0
      %3226 = vmatpush1.msra.mxu0 0.0
      %3227 = vmatprep.subr.mxu0 0.0
      %3228 = vmatpush1.msra.mxu0 0.0
      %3229 = vmatprep.subr.mxu0 0.0
      %3230 = vmatpush1.msra.mxu0 0.0
      %3231 = vmatprep.subr.mxu0 0.0
      %3232 = vmatpush1.msra.mxu0 0.0
      %3233 = vmatprep.subr.mxu0 0.0
      %3234 = vmatpush1.msra.mxu0 0.0
      %3235 = vmatprep.subr.mxu0 0.0
      %3236 = vmatpush1.msra.mxu0 0.0
      %3237 = vmatprep.subr.mxu0 0.0
      %3238 = vmatpush1.msra.mxu0 0.0
      %3239 = vmatprep.subr.mxu0 0.0
      %3240 = vmatpush1.msra.mxu0 0.0
      %3241 = vmatprep.subr.mxu0 0.0
      %3242 = vmatpush1.msra.mxu0 0.0
      %3243 = vmatprep.subr.mxu0 0.0
      %3244 = vmatpush1.msra.mxu0 0.0
      %3245 = vmatprep.subr.mxu0 0.0
      %3246 = vmatpush1.msra.mxu0 0.0
      %3247 = vmatprep.subr.mxu0 0.0
      %3248 = vmatpush1.msra.mxu0 0.0
      %3249 = vmatprep.subr.mxu0 0.0
      %3250 = vmatpush1.msra.mxu0 0.0
      %3251 = vmatprep.subr.mxu0 0.0
      %3252 = vmatpush1.msra.mxu0 0.0
      %3253 = vmatprep.subr.mxu0 0.0
      %3254 = vmatpush1.msra.mxu0 0.0
      %3255 = vmatprep.subr.mxu0 0.0
      %3256 = vmatpush1.msra.mxu0 0.0
      %3257 = vmatprep.subr.mxu0 0.0
      %3258 = vmatpush1.msra.mxu0 0.0
      %3259 = vmatprep.subr.mxu0 0.0
      %3260 = vmatpush1.msra.mxu0 0.0
      %3261 = vmatprep.subr.mxu0 0.0
      %3262 = vmatpush1.msra.mxu0 0.0
      %3263 = vmatprep.subr.mxu0 0.0
      %3264 = vmatpush1.msra.mxu0 0.0
      %3265 = vmatprep.subr.mxu0 0.0
      %3266 = vmatpush1.msra.mxu0 0.0
      %3267 = vmatprep.subr.mxu0 0.0
      %3268 = vmatpush1.msra.mxu0 0.0
      %3269 = vmatprep.subr.mxu0 0.0
      %3270 = vmatpush1.msra.mxu0 0.0
      %3271 = vmatprep.subr.mxu0 0.0
      %3272 = vmatpush1.msra.mxu0 0.0
      %3273 = vmatprep.subr.mxu0 0.0
      %3274 = vmatpush1.msra.mxu0 0.0
      %3275 = vmatprep.subr.mxu0 0.0
      %3276 = vmatpush1.msra.mxu0 0.0
      %3277 = vmatprep.subr.mxu0 0.0
      %3278 = vmatpush1.msra.mxu0 0.0
      %3279 = vmatprep.subr.mxu0 0.0
      %3280 = vmatpush1.msra.mxu0 0.0
      %3281 = vmatprep.subr.mxu0 0.0
      %3282 = vmatpush1.msra.mxu0 0.0
      %3283 = vmatprep.subr.mxu0 0.0
      %3284 = vmatpush1.msra.mxu0 0.0
      %3285 = vmatprep.subr.mxu0 0.0
      %3286 = vmatpush1.msra.mxu0 0.0
      %3287 = vmatprep.mubr.f32.mxu0 0.0
      %3288 = vmatmul.mubr.f32.gmra.mrb[0].mxu0 %v3218
      %v3289 = vpop.f32.mrb[0].mxu0
      %v3290 = vadd.f32 0.0, %v3289
      %v3291 = vpop.f32.mrb[0].mxu0
      %3292 = vmatprep.mubr.f32.mxu0 0.0
      %3293 = vmatmul.mubr.f32.gmra.mrb[0].mxu0 %v3221
      %v3294 = vpop.f32.mrb[0].mxu0
      %v3295 = vadd.f32 0.0, %v3294
      %v3296 = vpop.f32.mrb[0].mxu0
      %3297 = vdwg.mxu0
      %v3298 = vadd.f32 %v2969, %v3290
      %v3299 = vadd.f32 %v2970, %v3295
      %3300 = vrot.lane.b32.xlu0 %v2053, 104
      %v3301 = vpop.permute.xlu0 %3300
      %3302 = vrot.lane.b32.xlu0 %v2058, 104
      %v3303 = vpop.permute.xlu0 %3302
      %3304 = vrot.lane.b32.xlu0 %v2156, 104
      %v3305 = vpop.permute.xlu0 %3304
      %3306 = vrot.lane.b32.xlu0 %v2161, 104
      %v3307 = vpop.permute.xlu0 %3306
      %3308 = vrot.lane.b32.xlu0 %v2166, 104
      %v3309 = vpop.permute.xlu0 %3308
      %3310 = vrot.lane.b32.xlu0 %v2171, 104
      %v3311 = vpop.permute.xlu0 %3310
      %3312 = vrot.lane.b32.xlu0 %v2176, 104
      %v3313 = vpop.permute.xlu0 %3312
      %3314 = vrot.lane.b32.xlu0 %v2181, 104
      %v3315 = vpop.permute.xlu0 %3314
      %3316 = vrot.lane.b32.xlu0 %v2186, 104
      %v3317 = vpop.permute.xlu0 %3316
      %3318 = vrot.lane.b32.xlu0 %v2191, 104
      %v3319 = vpop.permute.xlu0 %3318
      %v3320 = vsel %vm762, %v3301, 0
      %v3322 = vsel %vm762, %v3303, 0
      %v3324 = vsel %vm762, %v3305, 0
      %v3326 = vsel %vm762, %v3307, 0
      %v3328 = vsel %vm762, %v3309, 0
      %v3330 = vsel %vm762, %v3311, 0
      %v3332 = vsel %vm762, %v3313, 0
      %v3334 = vsel %vm762, %v3315, 0
      %v3336 = vsel %vm762, %v3317, 0
      %v3338 = vsel %vm762, %v3319, 0
      %3340 = vmatprep.subr.mxu0 0.0
      %3341 = vmatpush1.xpose.msra.mxu0 %v3324
      %3342 = vmatprep.subr.mxu0 0.0
      %3343 = vmatpush1.xpose.msra.mxu0 %v3326
      %3344 = vmatprep.subr.mxu0 0.0
      %3345 = vmatpush1.xpose.msra.mxu0 %v3328
      %3346 = vmatprep.subr.mxu0 0.0
      %3347 = vmatpush1.xpose.msra.mxu0 %v3330
      %3348 = vmatprep.subr.mxu0 0.0
      %3349 = vmatpush1.xpose.msra.mxu0 %v3332
      %3350 = vmatprep.subr.mxu0 0.0
      %3351 = vmatpush1.xpose.msra.mxu0 %v3334
      %3352 = vmatprep.subr.mxu0 0.0
      %3353 = vmatpush1.xpose.msra.mxu0 %v3336
      %3354 = vmatprep.subr.mxu0 0.0
      %3355 = vmatpush1.xpose.msra.mxu0 %v3338
      %3356 = vmatprep.subr.mxu0 0.0
      %3357 = vmatpush1.xpose.msra.mxu0 0.0
      %3358 = vmatprep.subr.mxu0 0.0
      %3359 = vmatpush1.xpose.msra.mxu0 0.0
      %3360 = vmatprep.subr.mxu0 0.0
      %3361 = vmatpush1.xpose.msra.mxu0 0.0
      %3362 = vmatprep.subr.mxu0 0.0
      %3363 = vmatpush1.xpose.msra.mxu0 0.0
      %3364 = vmatprep.subr.mxu0 0.0
      %3365 = vmatpush1.xpose.msra.mxu0 0.0
      %3366 = vmatprep.subr.mxu0 0.0
      %3367 = vmatpush1.xpose.msra.mxu0 0.0
      %3368 = vmatprep.subr.mxu0 0.0
      %3369 = vmatpush1.xpose.msra.mxu0 0.0
      %3370 = vmatprep.subr.mxu0 0.0
      %3371 = vmatpush1.xpose.msra.mxu0 0.0
      %3372 = vmatprep.subr.mxu0 0.0
      %3373 = vmatpush1.xpose.msra.mxu0 0.0
      %3374 = vmatprep.subr.mxu0 0.0
      %3375 = vmatpush1.xpose.msra.mxu0 0.0
      %3376 = vmatprep.subr.mxu0 0.0
      %3377 = vmatpush1.xpose.msra.mxu0 0.0
      %3378 = vmatprep.subr.mxu0 0.0
      %3379 = vmatpush1.xpose.msra.mxu0 0.0
      %3380 = vmatprep.subr.mxu0 0.0
      %3381 = vmatpush1.xpose.msra.mxu0 0.0
      %3382 = vmatprep.subr.mxu0 0.0
      %3383 = vmatpush1.xpose.msra.mxu0 0.0
      %3384 = vmatprep.subr.mxu0 0.0
      %3385 = vmatpush1.xpose.msra.mxu0 0.0
      %3386 = vmatprep.subr.mxu0 0.0
      %3387 = vmatpush1.xpose.msra.mxu0 0.0
      %3388 = vmatprep.subr.mxu0 0.0
      %3389 = vmatpush1.xpose.msra.mxu0 0.0
      %3390 = vmatprep.subr.mxu0 0.0
      %3391 = vmatpush1.xpose.msra.mxu0 0.0
      %3392 = vmatprep.subr.mxu0 0.0
      %3393 = vmatpush1.xpose.msra.mxu0 0.0
      %3394 = vmatprep.subr.mxu0 0.0
      %3395 = vmatpush1.xpose.msra.mxu0 0.0
      %3396 = vmatprep.subr.mxu0 0.0
      %3397 = vmatpush1.xpose.msra.mxu0 0.0
      %3398 = vmatprep.subr.mxu0 0.0
      %3399 = vmatpush1.xpose.msra.mxu0 0.0
      %3400 = vmatprep.subr.mxu0 0.0
      %3401 = vmatpush1.xpose.msra.mxu0 0.0
      %3402 = vmatprep.subr.mxu0 0.0
      %3403 = vmatpush1.xpose.msra.mxu0 0.0
      %3404 = vmatprep.mubr.f32.mxu0 0.0
      %3405 = vmatmul.mubr.f32.gmra.mrb[0].mxu0 %v3320
      %v3406 = vpop.f32.mrb[0].mxu0
      %v3407 = vadd.f32 0.0, %v3406
      %v3408 = vpop.f32.mrb[0].mxu0
      %3409 = vmatprep.mubr.f32.mxu0 0.0
      %3410 = vmatmul.mubr.f32.gmra.mrb[0].mxu0 %v3322
      %v3411 = vpop.f32.mrb[0].mxu0
      %v3412 = vadd.f32 0.0, %v3411
      %v3413 = vpop.f32.mrb[0].mxu0
      %3414 = vdwg.mxu0
      %v3415 = vmul.f32 %v3407, 0.35355338
      %v3416 = vmul.f32 %v3412, 0.35355338
      %v3417 = vadd.f32 %v3415, %v2443
      %v3418 = vadd.f32 %v3416, %v2443
      %v3419 = vsel %vm2447, %v3417, -inf
      %3420 = vmax.xlane.f32.xlu0 %v3419
      %v3421 = vpop.xlane.xlu0 %3420
      %v3422 = vsel %vm2447, %v3418, -inf
      %3423 = vmax.xlane.f32.xlu0 %v3422
      %v3424 = vpop.xlane.xlu0 %3423
      %v3425 = vsub.f32 %v3417, %v3421
      %v3426 = vsub.f32 %v3418, %v3424
      %v3427 = vmul.f32 %v3425, 1.442695
      %v3428 = vpow.pop %v3427
      %v3429 = vmul.f32 %v3426, 1.442695
      %v3430 = vpow.pop %v3429
      %v3431 = vsel %vm2447, %v3428, 0.0
      %3432 = vadd.xlane.f32.xlu0 %v3431
      %v3433 = vpop.xlane.xlu0 %3432
      %v3434 = vsel %vm2447, %v3430, 0.0
      %3435 = vadd.xlane.f32.xlu0 %v3434
      %v3436 = vpop.xlane.xlu0 %3435
      %v3437 = vrcp.pop %v3433
      %v3438 = vrcp.pop %v3436
      %v3439 = vmul.f32 %v3428, %v3437
      %v3440 = vmul.f32 %v3430, %v3438
      %3441 = vrot.lane.b32.xlu0 %v2289, 104
      %v3442 = vpop.permute.xlu0 %3441
      %3443 = vrot.lane.b32.xlu0 %v2294, 104
      %v3444 = vpop.permute.xlu0 %3443
      %3445 = vrot.lane.b32.xlu0 %v2299, 104
      %v3446 = vpop.permute.xlu0 %3445
      %3447 = vrot.lane.b32.xlu0 %v2304, 104
      %v3448 = vpop.permute.xlu0 %3447
      %3449 = vrot.lane.b32.xlu0 %v2309, 104
      %v3450 = vpop.permute.xlu0 %3449
      %3451 = vrot.lane.b32.xlu0 %v2314, 104
      %v3452 = vpop.permute.xlu0 %3451
      %3453 = vrot.lane.b32.xlu0 %v2319, 104
      %v3454 = vpop.permute.xlu0 %3453
      %3455 = vrot.lane.b32.xlu0 %v2324, 104
      %v3456 = vpop.permute.xlu0 %3455
      %v3466 = vsel %vm2447, %v3439, 0
      %v3469 = vsel %vm2447, %v3440, 0
      %3471 = vmatprep.subr.mxu0 0.0
      %3472 = vmatpush1.msra.mxu0 %v3442
      %3473 = vmatprep.subr.mxu0 0.0
      %3474 = vmatpush1.msra.mxu0 %v3444
      %3475 = vmatprep.subr.mxu0 0.0
      %3476 = vmatpush1.msra.mxu0 %v3446
      %3477 = vmatprep.subr.mxu0 0.0
      %3478 = vmatpush1.msra.mxu0 %v3448
      %3479 = vmatprep.subr.mxu0 0.0
      %3480 = vmatpush1.msra.mxu0 %v3450
      %3481 = vmatprep.subr.mxu0 0.0
      %3482 = vmatpush1.msra.mxu0 %v3452
      %3483 = vmatprep.subr.mxu0 0.0
      %3484 = vmatpush1.msra.mxu0 %v3454
      %3485 = vmatprep.subr.mxu0 0.0
      %3486 = vmatpush1.msra.mxu0 %v3456
      %3487 = vmatprep.subr.mxu0 0.0
      %3488 = vmatpush1.msra.mxu0 0.0
      %3489 = vmatprep.subr.mxu0 0.0
      %3490 = vmatpush1.msra.mxu0 0.0
      %3491 = vmatprep.subr.mxu0 0.0
      %3492 = vmatpush1.msra.mxu0 0.0
      %3493 = vmatprep.subr.mxu0 0.0
      %3494 = vmatpush1.msra.mxu0 0.0
      %3495 = vmatprep.subr.mxu0 0.0
      %3496 = vmatpush1.msra.mxu0 0.0
      %3497 = vmatprep.subr.mxu0 0.0
      %3498 = vmatpush1.msra.mxu0 0.0
      %3499 = vmatprep.subr.mxu0 0.0
      %3500 = vmatpush1.msra.mxu0 0.0
      %3501 = vmatprep.subr.mxu0 0.0
      %3502 = vmatpush1.msra.mxu0 0.0
      %3503 = vmatprep.subr.mxu0 0.0
      %3504 = vmatpush1.msra.mxu0 0.0
      %3505 = vmatprep.subr.mxu0 0.0
      %3506 = vmatpush1.msra.mxu0 0.0
      %3507 = vmatprep.subr.mxu0 0.0
      %3508 = vmatpush1.msra.mxu0 0.0
      %3509 = vmatprep.subr.mxu0 0.0
      %3510 = vmatpush1.msra.mxu0 0.0
      %3511 = vmatprep.subr.mxu0 0.0
      %3512 = vmatpush1.msra.mxu0 0.0
      %3513 = vmatprep.subr.mxu0 0.0
      %3514 = vmatpush1.msra.mxu0 0.0
      %3515 = vmatprep.subr.mxu0 0.0
      %3516 = vmatpush1.msra.mxu0 0.0
      %3517 = vmatprep.subr.mxu0 0.0
      %3518 = vmatpush1.msra.mxu0 0.0
      %3519 = vmatprep.subr.mxu0 0.0
      %3520 = vmatpush1.msra.mxu0 0.0
      %3521 = vmatprep.subr.mxu0 0.0
      %3522 = vmatpush1.msra.mxu0 0.0
      %3523 = vmatprep.subr.mxu0 0.0
      %3524 = vmatpush1.msra.mxu0 0.0
      %3525 = vmatprep.subr.mxu0 0.0
      %3526 = vmatpush1.msra.mxu0 0.0
      %3527 = vmatprep.subr.mxu0 0.0
      %3528 = vmatpush1.msra.mxu0 0.0
      %3529 = vmatprep.subr.mxu0 0.0
      %3530 = vmatpush1.msra.mxu0 0.0
      %3531 = vmatprep.subr.mxu0 0.0
      %3532 = vmatpush1.msra.mxu0 0.0
      %3533 = vmatprep.subr.mxu0 0.0
      %3534 = vmatpush1.msra.mxu0 0.0
      %3535 = vmatprep.mubr.f32.mxu0 0.0
      %3536 = vmatmul.mubr.f32.gmra.mrb[0].mxu0 %v3466
      %v3537 = vpop.f32.mrb[0].mxu0
      %v3538 = vadd.f32 0.0, %v3537
      %v3539 = vpop.f32.mrb[0].mxu0
      %3540 = vmatprep.mubr.f32.mxu0 0.0
      %3541 = vmatmul.mubr.f32.gmra.mrb[0].mxu0 %v3469
      %v3542 = vpop.f32.mrb[0].mxu0
      %v3543 = vadd.f32 0.0, %v3542
      %v3544 = vpop.f32.mrb[0].mxu0
      %3545 = vdwg.mxu0
      %v3547 = vsel %vm762, %v3538, 0
      %v3550 = vsel %vm762, %v3543, 0
      %3552 = vmatprep.subr.mxu0 0.0
      %3553 = vmatpush1.msra.mxu0 %v1975
      %3554 = vmatprep.subr.mxu0 0.0
      %3555 = vmatpush1.msra.mxu0 0.0
      %3556 = vmatprep.subr.mxu0 0.0
      %3557 = vmatpush1.msra.mxu0 0.0
      %3558 = vmatprep.subr.mxu0 0.0
      %3559 = vmatpush1.msra.mxu0 0.0
      %3560 = vmatprep.subr.mxu0 0.0
      %3561 = vmatpush1.msra.mxu0 0.0
      %3562 = vmatprep.subr.mxu0 0.0
      %3563 = vmatpush1.msra.mxu0 0.0
      %3564 = vmatprep.subr.mxu0 0.0
      %3565 = vmatpush1.msra.mxu0 0.0
      %3566 = vmatprep.subr.mxu0 0.0
      %3567 = vmatpush1.msra.mxu0 0.0
      %3568 = vmatprep.subr.mxu0 0.0
      %3569 = vmatpush1.msra.mxu0 0.0
      %3570 = vmatprep.subr.mxu0 0.0
      %3571 = vmatpush1.msra.mxu0 0.0
      %3572 = vmatprep.subr.mxu0 0.0
      %3573 = vmatpush1.msra.mxu0 0.0
      %3574 = vmatprep.subr.mxu0 0.0
      %3575 = vmatpush1.msra.mxu0 0.0
      %3576 = vmatprep.subr.mxu0 0.0
      %3577 = vmatpush1.msra.mxu0 0.0
      %3578 = vmatprep.subr.mxu0 0.0
      %3579 = vmatpush1.msra.mxu0 0.0
      %3580 = vmatprep.subr.mxu0 0.0
      %3581 = vmatpush1.msra.mxu0 0.0
      %3582 = vmatprep.subr.mxu0 0.0
      %3583 = vmatpush1.msra.mxu0 0.0
      %3584 = vmatprep.subr.mxu0 0.0
      %3585 = vmatpush1.msra.mxu0 0.0
      %3586 = vmatprep.subr.mxu0 0.0
      %3587 = vmatpush1.msra.mxu0 0.0
      %3588 = vmatprep.subr.mxu0 0.0
      %3589 = vmatpush1.msra.mxu0 0.0
      %3590 = vmatprep.subr.mxu0 0.0
      %3591 = vmatpush1.msra.mxu0 0.0
      %3592 = vmatprep.subr.mxu0 0.0
      %3593 = vmatpush1.msra.mxu0 0.0
      %3594 = vmatprep.subr.mxu0 0.0
      %3595 = vmatpush1.msra.mxu0 0.0
      %3596 = vmatprep.subr.mxu0 0.0
      %3597 = vmatpush1.msra.mxu0 0.0
      %3598 = vmatprep.subr.mxu0 0.0
      %3599 = vmatpush1.msra.mxu0 0.0
      %3600 = vmatprep.subr.mxu0 0.0
      %3601 = vmatpush1.msra.mxu0 0.0
      %3602 = vmatprep.subr.mxu0 0.0
      %3603 = vmatpush1.msra.mxu0 0.0
      %3604 = vmatprep.subr.mxu0 0.0
      %3605 = vmatpush1.msra.mxu0 0.0
      %3606 = vmatprep.subr.mxu0 0.0
      %3607 = vmatpush1.msra.mxu0 0.0
      %3608 = vmatprep.subr.mxu0 0.0
      %3609 = vmatpush1.msra.mxu0 0.0
      %3610 = vmatprep.subr.mxu0 0.0
      %3611 = vmatpush1.msra.mxu0 0.0
      %3612 = vmatprep.subr.mxu0 0.0
      %3613 = vmatpush1.msra.mxu0 0.0
      %3614 = vmatprep.subr.mxu0 0.0
      %3615 = vmatpush1.msra.mxu0 0.0
      %3616 = vmatprep.mubr.f32.mxu0 0.0
      %3617 = vmatmul.mubr.f32.gmra.mrb[0].mxu0 %v3547
      %v3618 = vpop.f32.mrb[0].mxu0
      %v3619 = vadd.f32 0.0, %v3618
      %v3620 = vpop.f32.mrb[0].mxu0
      %3621 = vmatprep.mubr.f32.mxu0 0.0
      %3622 = vmatmul.mubr.f32.gmra.mrb[0].mxu0 %v3550
      %v3623 = vpop.f32.mrb[0].mxu0
      %v3624 = vadd.f32 0.0, %v3623
      %v3625 = vpop.f32.mrb[0].mxu0
      %3626 = vdwg.mxu0
      %v3627 = vadd.f32 %v3298, %v3619
      %v3628 = vadd.f32 %v3299, %v3624
      %v3629 = vadd.f32 %v1935, %v3627
      %v3630 = vadd.f32 %v1936, %v3628
      %v3631 = vsel %vm511, %v3629, 0.0
      %3632 = vadd.xlane.f32.xlu0 %v3631
      %v3633 = vpop.xlane.xlu0 %3632
      %v3634 = vsel %vm511, %v3630, 0.0
      %3635 = vadd.xlane.f32.xlu0 %v3634
      %v3636 = vpop.xlane.xlu0 %3635
      %v3637 = vmul.f32 %v3633, %v1904
      %v3638 = vmul.f32 %v3636, %v1904
      %v3639 = vsub.f32 %v3629, %v3637
      %v3640 = vsub.f32 %v3630, %v3638
      %v3641 = vmul.f32 %v3639, %v3639
      %v3642 = vmul.f32 %v3640, %v3640
      %v3643 = vsel %vm511, %v3641, 0.0
      %3644 = vadd.xlane.f32.xlu0 %v3643
      %v3645 = vpop.xlane.xlu0 %3644
      %v3646 = vsel %vm511, %v3642, 0.0
      %3647 = vadd.xlane.f32.xlu0 %v3646
      %v3648 = vpop.xlane.xlu0 %3647
      %v3649 = vmul.f32 %v3645, %v1904
      %v3650 = vmul.f32 %v3648, %v1904
      %v3651 = vadd.f32 %v3649, 1e-05
      %v3652 = vadd.f32 %v3650, 1e-05
      %v3653 = vrsqrt.pop %v3651
      %v3654 = vrsqrt.pop %v3652
      %v3655 = vmul.f32 %v3639, %v3653
      %v3656 = vmul.f32 %v3640, %v3654
      %v3657 = vlaneseq
      %v3658 = vshrl.u32 %v3657, 7
      %v3659 = vsub.s32 3, %v3658
      %v3660 = vrot.slane %v485, %v3659
      %v3661 = vmul.f32 %v3655, %v3660
      %v3662 = vmul.f32 %v3656, %v3660
      %v3663 = vlaneseq
      %v3664 = vshrl.u32 %v3663, 7
      %v3665 = vsub.s32 4, %v3664
      %v3666 = vrot.slane %v485, %v3665
      %v3667 = vadd.f32 %v3661, %v3666
      %v3668 = vadd.f32 %v3662, %v3666
      %v3669 = vld [vmem:[%s454] sm:$0xff]
      %v3670 = vld [vmem:[%s454 + $0x8] sm:$0xff]
      %v3671 = vld [vmem:[%s454 + $0x10] sm:$0xff]
      %v3672 = vld [vmem:[%s454 + $0x18] sm:$0xff]
      %v3673 = vld [vmem:[%s467] sm:$0x1]
      %v3675 = vlaneseq
      %v3676 = vshrl.u32 %v3675, 7
      %v3677 = vsub.s32 0, %v3676
      %v3678 = vrot.slane %v3673, %v3677
      %v3681 = vsel %vm511, %v3667, 0
      %v3684 = vsel %vm511, %v3668, 0
      %3686 = vmatprep.subr.mxu0 0.0
      %3687 = vmatpush1.msra.mxu0 %v3669
      %3688 = vmatprep.subr.mxu0 0.0
      %3689 = vmatpush1.msra.mxu0 %v3670
      %3690 = vmatprep.subr.mxu0 0.0
      %3691 = vmatpush1.msra.mxu0 %v3671
      %3692 = vmatprep.subr.mxu0 0.0
      %3693 = vmatpush1.msra.mxu0 %v3672
      %3694 = vmatprep.subr.mxu0 0.0
      %3695 = vmatpush1.msra.mxu0 0.0
      %3696 = vmatprep.subr.mxu0 0.0
      %3697 = vmatpush1.msra.mxu0 0.0
      %3698 = vmatprep.subr.mxu0 0.0
      %3699 = vmatpush1.msra.mxu0 0.0
      %3700 = vmatprep.subr.mxu0 0.0
      %3701 = vmatpush1.msra.mxu0 0.0
      %3702 = vmatprep.subr.mxu0 0.0
      %3703 = vmatpush1.msra.mxu0 0.0
      %3704 = vmatprep.subr.mxu0 0.0
      %3705 = vmatpush1.msra.mxu0 0.0
      %3706 = vmatprep.subr.mxu0 0.0
      %3707 = vmatpush1.msra.mxu0 0.0
      %3708 = vmatprep.subr.mxu0 0.0
      %3709 = vmatpush1.msra.mxu0 0.0
      %3710 = vmatprep.subr.mxu0 0.0
      %3711 = vmatpush1.msra.mxu0 0.0
      %3712 = vmatprep.subr.mxu0 0.0
      %3713 = vmatpush1.msra.mxu0 0.0
      %3714 = vmatprep.subr.mxu0 0.0
      %3715 = vmatpush1.msra.mxu0 0.0
      %3716 = vmatprep.subr.mxu0 0.0
      %3717 = vmatpush1.msra.mxu0 0.0
      %3718 = vmatprep.subr.mxu0 0.0
      %3719 = vmatpush1.msra.mxu0 0.0
      %3720 = vmatprep.subr.mxu0 0.0
      %3721 = vmatpush1.msra.mxu0 0.0
      %3722 = vmatprep.subr.mxu0 0.0
      %3723 = vmatpush1.msra.mxu0 0.0
      %3724 = vmatprep.subr.mxu0 0.0
      %3725 = vmatpush1.msra.mxu0 0.0
      %3726 = vmatprep.subr.mxu0 0.0
      %3727 = vmatpush1.msra.mxu0 0.0
      %3728 = vmatprep.subr.mxu0 0.0
      %3729 = vmatpush1.msra.mxu0 0.0
      %3730 = vmatprep.subr.mxu0 0.0
      %3731 = vmatpush1.msra.mxu0 0.0
      %3732 = vmatprep.subr.mxu0 0.0
      %3733 = vmatpush1.msra.mxu0 0.0
      %3734 = vmatprep.subr.mxu0 0.0
      %3735 = vmatpush1.msra.mxu0 0.0
      %3736 = vmatprep.subr.mxu0 0.0
      %3737 = vmatpush1.msra.mxu0 0.0
      %3738 = vmatprep.subr.mxu0 0.0
      %3739 = vmatpush1.msra.mxu0 0.0
      %3740 = vmatprep.subr.mxu0 0.0
      %3741 = vmatpush1.msra.mxu0 0.0
      %3742 = vmatprep.subr.mxu0 0.0
      %3743 = vmatpush1.msra.mxu0 0.0
      %3744 = vmatprep.subr.mxu0 0.0
      %3745 = vmatpush1.msra.mxu0 0.0
      %3746 = vmatprep.subr.mxu0 0.0
      %3747 = vmatpush1.msra.mxu0 0.0
      %3748 = vmatprep.subr.mxu0 0.0
      %3749 = vmatpush1.msra.mxu0 0.0
      %3750 = vmatprep.mubr.f32.mxu0 0.0
      %3751 = vmatmul.mubr.f32.gmra.mrb[0].mxu0 %v3681
      %v3752 = vpop.f32.mrb[0].mxu0
      %v3753 = vadd.f32 %v3678, %v3752
      %v3754 = vpop.f32.mrb[0].mxu0
      %3755 = vmatprep.mubr.f32.mxu0 0.0
      %3756 = vmatmul.mubr.f32.gmra.mrb[0].mxu0 %v3684
      %v3757 = vpop.f32.mrb[0].mxu0
      %v3758 = vadd.f32 %v3678, %v3757
      %v3759 = vpop.f32.mrb[0].mxu0
      %3760 = vdwg.mxu0
      %v3761 = vmax.f32 %v3753, 0.0
      %v3762 = vmax.f32 %v3758, 0.0
      %v3763 = vld [vmem:[%s459] sm:$0xff]
      %v3764 = vld [vmem:[%s459 + $0x8] sm:$0xff]
      %v3765 = vld [vmem:[%s459 + $0x10] sm:$0xff]
      %v3766 = vld [vmem:[%s459 + $0x18] sm:$0xff]
      %v3767 = vld [vmem:[%s459 + $0x20] sm:$0xff]
      %v3768 = vld [vmem:[%s459 + $0x28] sm:$0xff]
      %v3769 = vld [vmem:[%s459 + $0x30] sm:$0xff]
      %v3770 = vld [vmem:[%s459 + $0x38] sm:$0xff]
      %v3771 = vld [vmem:[%s459 + $0x40] sm:$0xff]
      %v3772 = vld [vmem:[%s459 + $0x48] sm:$0xff]
      %v3773 = vld [vmem:[%s459 + $0x50] sm:$0xff]
      %v3774 = vld [vmem:[%s459 + $0x58] sm:$0xff]
      %v3775 = vld [vmem:[%s459 + $0x60] sm:$0xff]
      %v3776 = vld [vmem:[%s459 + $0x68] sm:$0xff]
      %v3777 = vld [vmem:[%s459 + $0x70] sm:$0xff]
      %v3778 = vld [vmem:[%s459 + $0x78] sm:$0xff]
      %v3779 = vlaneseq
      %v3780 = vshrl.u32 %v3779, 7
      %v3781 = vsub.s32 0, %v3780
      %v3782 = vrot.slane %v485, %v3781
      %3783 = vmatprep.subr.mxu0 0.0
      %3784 = vmatpush1.msra.mxu0 %v3763
      %3785 = vmatprep.subr.mxu0 0.0
      %3786 = vmatpush1.msra.mxu0 %v3764
      %3787 = vmatprep.subr.mxu0 0.0
      %3788 = vmatpush1.msra.mxu0 %v3765
      %3789 = vmatprep.subr.mxu0 0.0
      %3790 = vmatpush1.msra.mxu0 %v3766
      %3791 = vmatprep.subr.mxu0 0.0
      %3792 = vmatpush1.msra.mxu0 %v3767
      %3793 = vmatprep.subr.mxu0 0.0
      %3794 = vmatpush1.msra.mxu0 %v3768
      %3795 = vmatprep.subr.mxu0 0.0
      %3796 = vmatpush1.msra.mxu0 %v3769
      %3797 = vmatprep.subr.mxu0 0.0
      %3798 = vmatpush1.msra.mxu0 %v3770
      %3799 = vmatprep.subr.mxu0 0.0
      %3800 = vmatpush1.msra.mxu0 %v3771
      %3801 = vmatprep.subr.mxu0 0.0
      %3802 = vmatpush1.msra.mxu0 %v3772
      %3803 = vmatprep.subr.mxu0 0.0
      %3804 = vmatpush1.msra.mxu0 %v3773
      %3805 = vmatprep.subr.mxu0 0.0
      %3806 = vmatpush1.msra.mxu0 %v3774
      %3807 = vmatprep.subr.mxu0 0.0
      %3808 = vmatpush1.msra.mxu0 %v3775
      %3809 = vmatprep.subr.mxu0 0.0
      %3810 = vmatpush1.msra.mxu0 %v3776
      %3811 = vmatprep.subr.mxu0 0.0
      %3812 = vmatpush1.msra.mxu0 %v3777
      %3813 = vmatprep.subr.mxu0 0.0
      %3814 = vmatpush1.msra.mxu0 %v3778
      %3815 = vmatprep.subr.mxu0 0.0
      %3816 = vmatpush1.msra.mxu0 0.0
      %3817 = vmatprep.subr.mxu0 0.0
      %3818 = vmatpush1.msra.mxu0 0.0
      %3819 = vmatprep.subr.mxu0 0.0
      %3820 = vmatpush1.msra.mxu0 0.0
      %3821 = vmatprep.subr.mxu0 0.0
      %3822 = vmatpush1.msra.mxu0 0.0
      %3823 = vmatprep.subr.mxu0 0.0
      %3824 = vmatpush1.msra.mxu0 0.0
      %3825 = vmatprep.subr.mxu0 0.0
      %3826 = vmatpush1.msra.mxu0 0.0
      %3827 = vmatprep.subr.mxu0 0.0
      %3828 = vmatpush1.msra.mxu0 0.0
      %3829 = vmatprep.subr.mxu0 0.0
      %3830 = vmatpush1.msra.mxu0 0.0
      %3831 = vmatprep.subr.mxu0 0.0
      %3832 = vmatpush1.msra.mxu0 0.0
      %3833 = vmatprep.subr.mxu0 0.0
      %3834 = vmatpush1.msra.mxu0 0.0
      %3835 = vmatprep.subr.mxu0 0.0
      %3836 = vmatpush1.msra.mxu0 0.0
      %3837 = vmatprep.subr.mxu0 0.0
      %3838 = vmatpush1.msra.mxu0 0.0
      %3839 = vmatprep.subr.mxu0 0.0
      %3840 = vmatpush1.msra.mxu0 0.0
      %3841 = vmatprep.subr.mxu0 0.0
      %3842 = vmatpush1.msra.mxu0 0.0
      %3843 = vmatprep.subr.mxu0 0.0
      %3844 = vmatpush1.msra.mxu0 0.0
      %3845 = vmatprep.subr.mxu0 0.0
      %3846 = vmatpush1.msra.mxu0 0.0
      %3847 = vmatprep.mubr.f32.mxu0 0.0
      %3848 = vmatmul.mubr.f32.gmra.mrb[0].mxu0 %v3761
      %v3849 = vpop.f32.mrb[0].mxu0
      %v3850 = vadd.f32 %v3782, %v3849
      %v3851 = vpop.f32.mrb[0].mxu0
      %3852 = vmatprep.mubr.f32.mxu0 0.0
      %3853 = vmatmul.mubr.f32.gmra.mrb[0].mxu0 %v3762
      %v3854 = vpop.f32.mrb[0].mxu0
      %v3855 = vadd.f32 %v3782, %v3854
      %v3856 = vpop.f32.mrb[0].mxu0
      %3857 = vdwg.mxu0
      %v3858 = vadd.f32 %v3667, %v3850
      %v3859 = vadd.f32 %v3668, %v3855
      %v3860 = vsel %vm511, %v3858, 0.0
      %3861 = vadd.xlane.f32.xlu0 %v3860
      %v3862 = vpop.xlane.xlu0 %3861
      %v3863 = vsel %vm511, %v3859, 0.0
      %3864 = vadd.xlane.f32.xlu0 %v3863
      %v3865 = vpop.xlane.xlu0 %3864
      %v3866 = vmul.f32 %v3862, %v1904
      %v3867 = vmul.f32 %v3865, %v1904
      %v3868 = vsub.f32 %v3858, %v3866
      %v3869 = vsub.f32 %v3859, %v3867
      %v3870 = vmul.f32 %v3868, %v3868
      %v3871 = vmul.f32 %v3869, %v3869
      %v3872 = vsel %vm511, %v3870, 0.0
      %3873 = vadd.xlane.f32.xlu0 %v3872
      %v3874 = vpop.xlane.xlu0 %3873
      %v3875 = vsel %vm511, %v3871, 0.0
      %3876 = vadd.xlane.f32.xlu0 %v3875
      %v3877 = vpop.xlane.xlu0 %3876
      %v3878 = vmul.f32 %v3874, %v1904
      %v3879 = vmul.f32 %v3877, %v1904
      %v3880 = vadd.f32 %v3878, 1e-05
      %v3881 = vadd.f32 %v3879, 1e-05
      %v3882 = vrsqrt.pop %v3880
      %v3883 = vrsqrt.pop %v3881
      %v3884 = vmul.f32 %v3868, %v3882
      %v3885 = vmul.f32 %v3869, %v3883
      %v3886 = vlaneseq
      %v3887 = vshrl.u32 %v3886, 7
      %v3888 = vsub.s32 5, %v3887
      %v3889 = vrot.slane %v485, %v3888
      %v3890 = vmul.f32 %v3884, %v3889
      %v3891 = vmul.f32 %v3885, %v3889
      %v3892 = vlaneseq
      %v3893 = vshrl.u32 %v3892, 7
      %v3894 = vsub.s32 6, %v3893
      %v3895 = vrot.slane %v485, %v3894
      %v3896 = vadd.f32 %v3890, %v3895
      %v3897 = vadd.f32 %v3891, %v3895
      %3898 = vst.msk [vmem:[%s472] sm:$0xff] %vm511, %v3896
      %3899 = vst.msk [vmem:[%s472 + $0x8] sm:$0xff] %vm511, %v3897
      %p3900 = scmp.lt.s32.totalorder %s24, 1
      %s3901 = scalar_select %p3900, %s24, 1
      %s3902 = smul.addr %s3901, 2
      %s3903 = smul.addr %s3902, 8
      %s3904 = scalar_lea.vmem %s9, %s3903
      // Predicated region
      $region61: #{detr_decoder_forward.2} parent=55 // pred_check
        %p3905 = pneg %p279
      $region62: #{detr_decoder_forward.2} parent=55 // pred_check_branch
        %3907 = sbr.rel (%p3905) target = $region64
      $region63: #{detr_decoder_forward.2} parent=55 // pred_region
        _
      $region64: #{detr_decoder_forward.2} parent=55 // pred_fallthru
        _
    $region56: #{detr_decoder_forward.2} parent=5 // pred_fallthru
      _
    %p3908 = scmp.le.s32.totalorder 2, %s15
    // Predicated region
    $region65: #{detr_decoder_forward.2} parent=5 // pred_check
      %p3909 = pneg %p3908
    $region66: #{detr_decoder_forward.2} parent=5 // pred_check_branch
      %3911 = sbr.rel (%p3909) target = $region68
    $region67: #{detr_decoder_forward.2} parent=5 // pred_region
      %s3912 = ssub.s32 %s15, 2
      // Predicated region
      $region69: #{detr_decoder_forward.2} parent=67 // pred_check
        %p3913 = pneg %p285
      $region70: #{detr_decoder_forward.2} parent=67 // pred_check_branch
        %3915 = sbr.rel (%p3913) target = $region72
      $region71: #{detr_decoder_forward.2} parent=67 // pred_region
        %p3916 = scmp.lt.s32.totalorder %s26, 1
        %s3917 = scalar_select %p3916, %s26, 1
        %s3918 = smul.addr %s3917, 2
        %s3919 = smul.addr %s3918, 8
        %s3920 = scalar_lea.vmem %s9, %s3919
      $region72: #{detr_decoder_forward.2} parent=67 // pred_fallthru
        _
    $region68: #{detr_decoder_forward.2} parent=5 // pred_fallthru
      _
  $region6: #{detr_decoder_forward.2} parent=0 // loop_footer
    %s19 = sadd.s32 1, %s15
  $region7: #{detr_decoder_forward.2} parent=0 // loop_footer_branch
    %14 = sbr.rel target = $region3
  $region8: #{detr_decoder_forward.2} parent=0 // loop_exit
    _

</llo_original>
